<compile_context>
chip_gen: v5e
topology: v5e:2x2
jax: 0.10.0
libtpu: 0.0.40
codegen_flags: <defaults>
</compile_context>

<pallas_src>
import functools

import jax
import jax.numpy as jnp
from jax.experimental import pallas as pl
from jax.experimental.pallas import tpu as pltpu

NEG_SLOPE = 0.1  # LeakyReLU slope used by UnaryBlock / 2D block stand-ins


def _leaky(x):
    return jnp.where(x >= 0.0, x, NEG_SLOPE * x)


def _target_steps():
    """Grid steps per kernel: 1 on single-TC chips (v5e/v6e), 2 on v7x (2 TCs)."""
    try:
        kind = jax.devices()[0].device_kind.lower()
    except Exception:
        return 1
    return 2 if "v7" in kind else 1


def _pick_tile(m, bytes_per_row, target_steps, vmem_budget=10 << 20):
    """Row tile sized from the VMEM budget, not a fixed step count.

    Whole problem in one (v5e/v6e) or two (v7x) grid steps whenever the
    double-buffered per-row footprint fits the budget; per-step overhead
    (~0.35 us) otherwise dominates these tiny-K kernels.
    """
    max_rows = max(16, vmem_budget // max(1, bytes_per_row))
    t = -(-m // max(1, target_steps))              # ceil(m / target_steps)
    t = min(t, max_rows)
    if t >= m:
        return m                                   # single step, full-dim block
    return -(-t // 16) * 16                        # bf16 sublane-pack multiple


def _bcast_spec(shape):
    # Broadcast (grid-invariant) operand: same block every grid step.
    # TODO(synk): pl.Buffered(1) single-buffering would save VMEM at large F;
    # skipped — at F=32 all broadcast weights together are ~70 KB.
    return pl.BlockSpec(shape, lambda i: (0,) * len(shape))


# ----------------------------------------------------------------------------
# Fused 3D path:  backbone stand-in -> (x backbone feats, head_mlp -> head_softmax)
#   feats (tile, Din) bf16 stays in vregs/VMEM through all three matmuls.
# ----------------------------------------------------------------------------
def _fused3d_kernel(f_ref, wb_ref, bb_ref, wm_ref, bm_ref, ws_ref, bs_ref,
                    x_ref, p_ref):
    # backbone stand-in (UnaryBlock Din->F, LeakyReLU)
    x = _leaky(jnp.dot(f_ref[...], wb_ref[...],
                       preferred_element_type=jnp.float32) + bb_ref[...])
    x_ref[...] = x.astype(x_ref.dtype)             # bf16 feats for the projector
    # head_mlp (UnaryBlock F->F, LeakyReLU)
    h = _leaky(jnp.dot(x.astype(jnp.bfloat16), wm_ref[...],
                       preferred_element_type=jnp.float32) + bm_ref[...])
    # head_softmax (UnaryBlock F->C): raw logits (no activation), zero-padded to
    # 128 lanes for a dense store.
    p = jnp.dot(h.astype(jnp.bfloat16), ws_ref[...],
                preferred_element_type=jnp.float32) + bs_ref[...]
    p_ref[...] = p.astype(p_ref.dtype)             # bf16 padded store


def _fused_3d(params, feats, c_pad):
    N, Din = feats.shape
    F = params["head_mlp_w"].shape[0]
    # rough per-row VMEM footprint: double-buffered bf16 in/out tiles + f32 live
    bpr = 2 * 2 * (Din + F + c_pad) + 4 * (2 * F + c_pad)
    tile = _pick_tile(N, bpr, _target_steps())
    grid = (pl.cdiv(N, tile),)
    return pl.pallas_call(
        _fused3d_kernel,
        out_shape=(jax.ShapeDtypeStruct((N, F), jnp.bfloat16),
                   jax.ShapeDtypeStruct((N, c_pad), jnp.bfloat16)),
        grid_spec=pltpu.PrefetchScalarGridSpec(
            num_scalar_prefetch=0,
            grid=grid,
            in_specs=[pl.BlockSpec((tile, Din), lambda i: (i, 0)),
                      _bcast_spec((Din, F)), _bcast_spec((1, F)),
                      _bcast_spec((F, F)), _bcast_spec((1, F)),
                      _bcast_spec((F, c_pad)), _bcast_spec((1, c_pad))],
            out_specs=[pl.BlockSpec((tile, F), lambda i: (i, 0)),
                       pl.BlockSpec((tile, c_pad), lambda i: (i, 0))]),
        compiler_params=pltpu.CompilerParams(
            dimension_semantics=("parallel",)),
    )(feats.astype(jnp.bfloat16),
      params["backbone_w"], params["backbone_b"],
      params["head_mlp_w"], params["head_mlp_b"],
      params["head_softmax_w"], params["head_softmax_b"])


# ----------------------------------------------------------------------------
# Fused 2D pipeline:  init2d + (init/merge softmax heads) + L-step propagation
#   and per-layer heads, all on a VMEM-resident (tile, F) activation tile.
#   Output is a single lane-dense (tile, out_w=128) bf16 slab:
#     cols 0:3  init_softmax_2D     cols 3:6  merge_softmax_2D
#     cols 6+3l : 9+3l              head_softmax_2D output of layer l
#   The x_2D_0 half of head_softmax_2D (skip connection) plus its bias are
#   baked into one matmul applied once (hoisted out of the loop).
# ----------------------------------------------------------------------------
def _fused2d_kernel(x_ref, wi_ref, bi_ref, wp_ref, bp_ref, w0_ref, b0_ref,
                    wa_ref, o_ref, acc_ref, *, n_layers):
    # Initial2DBlock stand-in: 1x1 conv + LeakyReLU  -> x_2D_0
    x0 = _leaky(jnp.dot(x_ref[...], wi_ref[...],
                        preferred_element_type=jnp.float32) + bi_ref[...])
    # one lane-dense matmul covers init/merge heads + the hoisted skip halves;
    # accumulate in an explicit f32 VMEM scratch (keeps vreg pressure bounded)
    acc_ref[...] = jnp.dot(x0.astype(jnp.bfloat16), w0_ref[...],
                           preferred_element_type=jnp.float32) + b0_ref[...]
    # hoist loop-invariant weight/bias loads out of the unrolled layer loop
    wp = wp_ref[...]
    bp = bp_ref[...]
    x = x0
    for l in range(n_layers):                      # static unroll (L is small)
        # Propagation2DBlock stand-in: residual 1x1 conv + LeakyReLU (shared W)
        x = x + _leaky(jnp.dot(x.astype(jnp.bfloat16), wp,
                               preferred_element_type=jnp.float32) + bp)
        # x_2D half of head_softmax_2D, weights pre-placed at layer-l columns
        acc_ref[...] += jnp.dot(x.astype(jnp.bfloat16), wa_ref[l],
                                preferred_element_type=jnp.float32)
    o_ref[...] = acc_ref[...].astype(o_ref.dtype)  # single bf16 128-wide store


def _fused_2d(params, x2d_flat, n_layers, out_w):
    M, F = x2d_flat.shape
    # rough per-row footprint: bf16 in/out double-buffers + f32 acc + f32 x/x0
    bpr = 2 * 2 * (F + out_w) + 4 * out_w + 4 * 2 * F
    tile = _pick_tile(M, bpr, _target_steps())
    grid = (pl.cdiv(M, tile),)
    return pl.pallas_call(
        functools.partial(_fused2d_kernel, n_layers=n_layers),
        out_shape=jax.ShapeDtypeStruct((M, out_w), jnp.bfloat16),
        grid_spec=pltpu.PrefetchScalarGridSpec(
            num_scalar_prefetch=0,
            grid=grid,
            in_specs=[pl.BlockSpec((tile, F), lambda i: (i, 0)),
                      _bcast_spec((F, F)), _bcast_spec((1, F)),
                      _bcast_spec((F, F)), _bcast_spec((1, F)),
                      _bcast_spec((F, out_w)), _bcast_spec((1, out_w)),
                      _bcast_spec((n_layers, F, out_w))],
            out_specs=pl.BlockSpec((tile, out_w), lambda i: (i, 0)),
            scratch_shapes=[pltpu.VMEM((tile, out_w), jnp.float32)]),
        compiler_params=pltpu.CompilerParams(
            dimension_semantics=("parallel",)),
    )(x2d_flat,
      params["init2d_w"], params["init2d_b"],
      params["prop_w"], params["prop_b"],
      params["head_x0_w"], params["head_x0_b"],
      params["head_xa_w"])


# ----------------------------------------------------------------------------
# Deterministic parameter init (shapes follow KPCollider.__init__), followed by
# one-time packing into kernel-ready (lane-dense, bf16) layouts.
# ----------------------------------------------------------------------------
def init_params(key, Din, F, C, n_2D_layers, C_pad=128):
    L = n_2D_layers
    out_w = 128 * pl.cdiv(6 + 3 * L, 128)          # lane-dense 2D output slab width
    ks = jax.random.split(key, 16)

    def lin(k, i, o, scale=0.1):
        return scale * jax.random.normal(k, (i, o), jnp.float32)

    # raw (PyTorch-equivalent) parameters
    backbone_w = lin(ks[0], Din, F)
    init2d_w = lin(ks[1], F, F)
    init2d_b = 0.01 * jax.random.normal(ks[2], (F,), jnp.float32)
    prop_w = lin(ks[3], F, F)
    prop_b = 0.01 * jax.random.normal(ks[4], (F,), jnp.float32)
    init_softmax_w = lin(ks[5], F, 3)
    init_softmax_b = 0.01 * jax.random.normal(ks[6], (3,), jnp.float32)
    merge_softmax_w = lin(ks[7], F, 3)
    merge_softmax_b = 0.01 * jax.random.normal(ks[8], (3,), jnp.float32)
    head2d_w = lin(ks[9], 2 * F, 3)                # acts on cat([x_2D, x_2D_0])
    head2d_b = 0.01 * jax.random.normal(ks[10], (3,), jnp.float32)
    head_mlp_w = lin(ks[11], F, F)
    head_softmax_w = lin(ks[12], F, C)

    # --- kernel-ready packing (one time, outside jit) ---
    w_a, w_b = head2d_w[:F], head2d_w[F:]          # x_2D half / x_2D_0 (skip) half

    head_x0_w = jnp.zeros((F, out_w), jnp.float32)
    head_x0_w = head_x0_w.at[:, 0:3].set(init_softmax_w)
    head_x0_w = head_x0_w.at[:, 3:6].set(merge_softmax_w)
    head_x0_b = jnp.zeros((out_w,), jnp.float32)
    head_x0_b = head_x0_b.at[0:3].set(init_softmax_b)
    head_x0_b = head_x0_b.at[3:6].set(merge_softmax_b)
    head_xa_w = jnp.zeros((L, F, out_w), jnp.float32)
    for l in range(L):
        c = 6 + 3 * l
        head_x0_w = head_x0_w.at[:, c:c + 3].set(w_b)     # hoisted skip weights
        head_x0_b = head_x0_b.at[c:c + 3].set(head2d_b)   # head bias (once per layer col)
        head_xa_w = head_xa_w.at[l, :, c:c + 3].set(w_a)  # per-layer column placement

    # 3D class head padded to a dense 128-lane store (extra cols stay exactly 0)
    hs_w = jnp.zeros((F, C_pad), jnp.float32).at[:, :C].set(head_softmax_w)

    bf = jnp.bfloat16
    params = {
        # stand-in for the KPConv 3D backbone (UnaryBlock-style)
        "backbone_w": backbone_w.astype(bf),
        "backbone_b": jnp.zeros((1, F), jnp.float32),
        # head_mlp / head_softmax (UnaryBlock, use_bn=False)
        "head_mlp_w": head_mlp_w.astype(bf),
        "head_mlp_b": jnp.zeros((1, F), jnp.float32),
        "head_softmax_w": hs_w.astype(bf),
        "head_softmax_b": jnp.zeros((1, C_pad), jnp.float32),
        # Initial2DBlock / Propagation2DBlock stand-ins (1x1 convs)
        "init2d_w": init2d_w.astype(bf),
        "init2d_b": init2d_b.reshape(1, F),
        "prop_w": prop_w.astype(bf),
        "prop_b": prop_b.reshape(1, F),
        # packed lane-dense 2D heads
        "head_x0_w": head_x0_w.astype(bf),
        "head_x0_b": head_x0_b.reshape(1, out_w),
        "head_xa_w": head_xa_w.astype(bf),
    }
    return params, out_w


# ----------------------------------------------------------------------------
# KPCollider.forward (inference path, train_only_3D == False, shared_2D == True,
# skipcut_2D == True)
# ----------------------------------------------------------------------------
def kpcollider_forward(params, feats, pixel_inds, *, B, H, W, n_2D_layers, C,
                       C_pad=128, out_w=128):
    L = n_2D_layers
    assert out_w >= 6 + 3 * L

    # --- fused 3D path (backend_3D_forward stand-in + head_mlp + head_softmax) ---
    # TODO(synk): real KPConv encoder/decoder (block_decider/KPConv) is not in the
    # provided code; the backbone stand-in is a single UnaryBlock-style linear.
    x, p3 = _fused_3d(params, feats, C_pad)
    preds_3D = p3[:, :C].astype(jnp.float32)       # widen only the useful columns

    # --- ProjectorBlock(detach_2D, pooling='max') ---
    # TODO(synk): exact ProjectorBlock not provided; the data-dependent scatter-max
    # onto the BxHxW grid stays in XLA glue (now bf16); fusing it via sorted points
    # + scalar-prefetch segment offsets is the next structural step.
    x_det = jax.lax.stop_gradient(x)                       # bf16, detach_2D
    g = jax.ops.segment_max(x_det, pixel_inds, num_segments=B * H * W)
    counts = jax.ops.segment_sum(jnp.ones((feats.shape[0],), jnp.int32),
                                 pixel_inds, num_segments=B * H * W)
    # untouched pixels -> 0 (TODO(synk): a zero-initialized scatter-max would give
    # max(feat, 0) for touched pixels instead; real ProjectorBlock convention unknown)
    g = jnp.where(counts[:, None] > 0, g, 0).astype(jnp.bfloat16)

    # --- fused 2D pipeline (init2d + heads + L-layer propagation, one kernel) ---
    # TODO(synk): Initial2DBlock / Propagation2DBlock 3x3-resnet internals not
    # provided; stand-ins are 1x1 convs + LeakyReLU (shared weights, shared_2D).
    slab = _fused_2d(params, g, L, out_w)          # (B*H*W, out_w) bf16

    # == torch.stack([init, merge], axis=2).permute(0,2,3,4,1) on NCHW maps
    preds_init_2D = jnp.transpose(
        slab[:, :6].reshape(B, H, W, 2, 3), (0, 3, 1, 2, 4)).astype(jnp.float32)
    # == torch.stack(preds_2D, axis=2).permute(0,2,3,4,1)
    preds_2D = jnp.transpose(
        slab[:, 6:6 + 3 * L].reshape(B, H, W, L, 3),
        (0, 3, 1, 2, 4)).astype(jnp.float32)

    return preds_3D, preds_init_2D, preds_2D


if __name__ == "__main__":
    # small config: in_features_dim=4, first_features_dim=32, C=5 classes,
    # n_2D_layers=3, 2D grid 16x16, batch of 2 "frames", 200 points.
    N, Din, F, C = 200, 4, 32, 5
    B, H, W, L = 2, 16, 16, 3

    key = jax.random.PRNGKey(0)
    k1, k2, k3 = jax.random.split(key, 3)
    feats = jax.random.normal(k1, (N, Din), jnp.float32)           # batch.features
    pixel_inds = jax.random.randint(k2, (N,), 0, B * H * W)        # projector indices
    params, out_w = init_params(k3, Din, F, C, L)

    fwd = jax.jit(functools.partial(kpcollider_forward, B=B, H=H, W=W,
                                    n_2D_layers=L, C=C, out_w=out_w))
    preds_3D, preds_init_2D, preds_2D = fwd(params, feats, pixel_inds)
    jax.block_until_ready((preds_3D, preds_init_2D, preds_2D))

    assert preds_3D.shape == (N, C)
    assert preds_init_2D.shape == (B, 2, H, W, 3)
    assert preds_2D.shape == (B, L, H, W, 3)
    print("KERNEL_OK")
</pallas_src>

<mosaic_0001>
module attributes {stable_mosaic.version = 11 : i64} {
  func.func @_fused3d_kernel(%arg0: i32, %arg1: memref<200x4xbf16, #tpu.memory_space<vmem>>, %arg2: memref<4x32xbf16, #tpu.memory_space<vmem>>, %arg3: memref<1x32xf32, #tpu.memory_space<vmem>>, %arg4: memref<32x32xbf16, #tpu.memory_space<vmem>>, %arg5: memref<1x32xf32, #tpu.memory_space<vmem>>, %arg6: memref<32x128xbf16, #tpu.memory_space<vmem>>, %arg7: memref<1x128xf32, #tpu.memory_space<vmem>>, %arg8: memref<200x32xbf16, #tpu.memory_space<vmem>>, %arg9: memref<200x128xbf16, #tpu.memory_space<vmem>>) attributes {dimension_semantics = [#tpu.dimension_semantics<parallel>], iteration_bounds = array<i64: 1>, scalar_prefetch = 0 : i64, scratch_operands = 0 : i64, tpu.core_type = #tpu.core_type<tc>, window_params = [{transform_indices = @transform_0, window_bounds = array<i64: 200, 4>}, {pipeline_mode = #tpu.pipeline_mode<synchronous>, transform_indices = @transform_1, window_bounds = array<i64: 4, 32>}, {pipeline_mode = #tpu.pipeline_mode<synchronous>, transform_indices = @transform_2, window_bounds = array<i64: 1, 32>}, {pipeline_mode = #tpu.pipeline_mode<synchronous>, transform_indices = @transform_3, window_bounds = array<i64: 32, 32>}, {pipeline_mode = #tpu.pipeline_mode<synchronous>, transform_indices = @transform_4, window_bounds = array<i64: 1, 32>}, {pipeline_mode = #tpu.pipeline_mode<synchronous>, transform_indices = @transform_5, window_bounds = array<i64: 32, 128>}, {pipeline_mode = #tpu.pipeline_mode<synchronous>, transform_indices = @transform_6, window_bounds = array<i64: 1, 128>}, {transform_indices = @transform_7, window_bounds = array<i64: 200, 32>}, {transform_indices = @transform_8, window_bounds = array<i64: 200, 128>}]} {
    %c0 = arith.constant 0 : index
    %c0_0 = arith.constant 0 : index
    %0 = vector.load %arg1[%c0, %c0_0] : memref<200x4xbf16, #tpu.memory_space<vmem>>, vector<200x4xbf16>
    %c0_1 = arith.constant 0 : index
    %c0_2 = arith.constant 0 : index
    %1 = vector.load %arg2[%c0_1, %c0_2] : memref<4x32xbf16, #tpu.memory_space<vmem>>, vector<4x32xbf16>
    %cst = arith.constant dense<0.000000e+00> : vector<200x32xf32>
    %2 = tpu.matmul %0, %1, %cst {dimension_numbers = #tpu.dot_dimension_numbers<[1], [0], [0], [1], [0, 0, 1, 1], [], []>} : vector<200x4xbf16>, vector<4x32xbf16>, vector<200x32xf32> -> vector<200x32xf32>
    %c0_3 = arith.constant 0 : index
    %c0_4 = arith.constant 0 : index
    %3 = vector.load %arg3[%c0_3, %c0_4] : memref<1x32xf32, #tpu.memory_space<vmem>>, vector<1x32xf32>
    %4 = vector.broadcast %3 : vector<1x32xf32> to vector<200x32xf32>
    %5 = arith.addf %2, %4 : vector<200x32xf32>
    %cst_5 = arith.constant 0.000000e+00 : f32
    %6 = vector.broadcast %cst_5 : f32 to vector<200x32xf32>
    %7 = arith.cmpf oge, %5, %6 : vector<200x32xf32>
    %cst_6 = arith.constant 1.000000e-01 : f32
    %8 = vector.broadcast %cst_6 : f32 to vector<200x32xf32>
    %9 = arith.mulf %8, %5 : vector<200x32xf32>
    %10 = arith.select %7, %5, %9 : vector<200x32xi1>, vector<200x32xf32>
    %11 = arith.truncf %10 : vector<200x32xf32> to vector<200x32xbf16>
    %c0_7 = arith.constant 0 : index
    %c0_8 = arith.constant 0 : index
    %12 = vector.load %arg8[%c0_7, %c0_8] : memref<200x32xbf16, #tpu.memory_space<vmem>>, vector<200x32xbf16>
    tpu.vector_store %arg8[%c0_7, %c0_8], %11 {strides = array<i32>} : memref<200x32xbf16, #tpu.memory_space<vmem>>, vector<200x32xbf16>,
    %13 = arith.truncf %10 : vector<200x32xf32> to vector<200x32xbf16>
    %c0_9 = arith.constant 0 : index
    %c0_10 = arith.constant 0 : index
    %14 = vector.load %arg4[%c0_9, %c0_10] : memref<32x32xbf16, #tpu.memory_space<vmem>>, vector<32x32xbf16>
    %cst_11 = arith.constant dense<0.000000e+00> : vector<200x32xf32>
    %15 = tpu.matmul %13, %14, %cst_11 {dimension_numbers = #tpu.dot_dimension_numbers<[1], [0], [0], [1], [0, 0, 1, 1], [], []>} : vector<200x32xbf16>, vector<32x32xbf16>, vector<200x32xf32> -> vector<200x32xf32>
    %c0_12 = arith.constant 0 : index
    %c0_13 = arith.constant 0 : index
    %16 = vector.load %arg5[%c0_12, %c0_13] : memref<1x32xf32, #tpu.memory_space<vmem>>, vector<1x32xf32>
    %17 = vector.broadcast %16 : vector<1x32xf32> to vector<200x32xf32>
    %18 = arith.addf %15, %17 : vector<200x32xf32>
    %cst_14 = arith.constant 0.000000e+00 : f32
    %19 = vector.broadcast %cst_14 : f32 to vector<200x32xf32>
    %20 = arith.cmpf oge, %18, %19 : vector<200x32xf32>
    %cst_15 = arith.constant 1.000000e-01 : f32
    %21 = vector.broadcast %cst_15 : f32 to vector<200x32xf32>
    %22 = arith.mulf %21, %18 : vector<200x32xf32>
    %23 = arith.select %20, %18, %22 : vector<200x32xi1>, vector<200x32xf32>
    %24 = arith.truncf %23 : vector<200x32xf32> to vector<200x32xbf16>
    %c0_16 = arith.constant 0 : index
    %c0_17 = arith.constant 0 : index
    %25 = vector.load %arg6[%c0_16, %c0_17] : memref<32x128xbf16, #tpu.memory_space<vmem>>, vector<32x128xbf16>
    %cst_18 = arith.constant dense<0.000000e+00> : vector<200x128xf32>
    %26 = tpu.matmul %24, %25, %cst_18 {dimension_numbers = #tpu.dot_dimension_numbers<[1], [0], [0], [1], [0, 0, 1, 1], [], []>} : vector<200x32xbf16>, vector<32x128xbf16>, vector<200x128xf32> -> vector<200x128xf32>
    %c0_19 = arith.constant 0 : index
    %c0_20 = arith.constant 0 : index
    %27 = vector.load %arg7[%c0_19, %c0_20] : memref<1x128xf32, #tpu.memory_space<vmem>>, vector<1x128xf32>
    %28 = vector.broadcast %27 : vector<1x128xf32> to vector<200x128xf32>
    %29 = arith.addf %26, %28 : vector<200x128xf32>
    %30 = arith.truncf %29 : vector<200x128xf32> to vector<200x128xbf16>
    %c0_21 = arith.constant 0 : index
    %c0_22 = arith.constant 0 : index
    %31 = vector.load %arg9[%c0_21, %c0_22] : memref<200x128xbf16, #tpu.memory_space<vmem>>, vector<200x128xbf16>
    tpu.vector_store %arg9[%c0_21, %c0_22], %30 {strides = array<i32>} : memref<200x128xbf16, #tpu.memory_space<vmem>>, vector<200x128xbf16>,
    return
  }
  func.func @transform_0(%arg0: i32) -> (i32, i32) {
    %c0_i32 = arith.constant 0 : i32
    %c0_i32_0 = arith.constant 0 : i32
    return %arg0, %c0_i32 : i32, i32
  }
  func.func @transform_1(%arg0: i32) -> (i32, i32) {
    %c0_i32 = arith.constant 0 : i32
    %c0_i32_0 = arith.constant 0 : i32
    %c0_i32_1 = arith.constant 0 : i32
    return %c0_i32, %c0_i32_0 : i32, i32
  }
  func.func @transform_2(%arg0: i32) -> (i32, i32) {
    %c0_i32 = arith.constant 0 : i32
    %c0_i32_0 = arith.constant 0 : i32
    %c0_i32_1 = arith.constant 0 : i32
    return %c0_i32, %c0_i32_0 : i32, i32
  }
  func.func @transform_3(%arg0: i32) -> (i32, i32) {
    %c0_i32 = arith.constant 0 : i32
    %c0_i32_0 = arith.constant 0 : i32
    %c0_i32_1 = arith.constant 0 : i32
    return %c0_i32, %c0_i32_0 : i32, i32
  }
  func.func @transform_4(%arg0: i32) -> (i32, i32) {
    %c0_i32 = arith.constant 0 : i32
    %c0_i32_0 = arith.constant 0 : i32
    %c0_i32_1 = arith.constant 0 : i32
    return %c0_i32, %c0_i32_0 : i32, i32
  }
  func.func @transform_5(%arg0: i32) -> (i32, i32) {
    %c0_i32 = arith.constant 0 : i32
    %c0_i32_0 = arith.constant 0 : i32
    %c0_i32_1 = arith.constant 0 : i32
    return %c0_i32, %c0_i32_0 : i32, i32
  }
  func.func @transform_6(%arg0: i32) -> (i32, i32) {
    %c0_i32 = arith.constant 0 : i32
    %c0_i32_0 = arith.constant 0 : i32
    %c0_i32_1 = arith.constant 0 : i32
    return %c0_i32, %c0_i32_0 : i32, i32
  }
  func.func @transform_7(%arg0: i32) -> (i32, i32) {
    %c0_i32 = arith.constant 0 : i32
    %c0_i32_0 = arith.constant 0 : i32
    return %arg0, %c0_i32 : i32, i32
  }
  func.func @transform_8(%arg0: i32) -> (i32, i32) {
    %c0_i32 = arith.constant 0 : i32
    %c0_i32_0 = arith.constant 0 : i32
    return %arg0, %c0_i32 : i32, i32
  }
}

module attributes {stable_mosaic.version = 11 : i64} {
  func.func @_fused2d_kernel(%arg0: i32, %arg1: memref<512x32xbf16, #tpu.memory_space<vmem>>, %arg2: memref<32x32xbf16, #tpu.memory_space<vmem>>, %arg3: memref<1x32xf32, #tpu.memory_space<vmem>>, %arg4: memref<32x32xbf16, #tpu.memory_space<vmem>>, %arg5: memref<1x32xf32, #tpu.memory_space<vmem>>, %arg6: memref<32x128xbf16, #tpu.memory_space<vmem>>, %arg7: memref<1x128xf32, #tpu.memory_space<vmem>>, %arg8: memref<3x32x128xbf16, #tpu.memory_space<vmem>>, %arg9: memref<512x128xbf16, #tpu.memory_space<vmem>>, %arg10: memref<512x128xf32, #tpu.memory_space<vmem>>) attributes {dimension_semantics = [#tpu.dimension_semantics<parallel>], iteration_bounds = array<i64: 1>, scalar_prefetch = 0 : i64, scratch_operands = 1 : i64, tpu.core_type = #tpu.core_type<tc>, window_params = [{transform_indices = @transform_0, window_bounds = array<i64: 512, 32>}, {pipeline_mode = #tpu.pipeline_mode<synchronous>, transform_indices = @transform_1, window_bounds = array<i64: 32, 32>}, {pipeline_mode = #tpu.pipeline_mode<synchronous>, transform_indices = @transform_2, window_bounds = array<i64: 1, 32>}, {pipeline_mode = #tpu.pipeline_mode<synchronous>, transform_indices = @transform_3, window_bounds = array<i64: 32, 32>}, {pipeline_mode = #tpu.pipeline_mode<synchronous>, transform_indices = @transform_4, window_bounds = array<i64: 1, 32>}, {pipeline_mode = #tpu.pipeline_mode<synchronous>, transform_indices = @transform_5, window_bounds = array<i64: 32, 128>}, {pipeline_mode = #tpu.pipeline_mode<synchronous>, transform_indices = @transform_6, window_bounds = array<i64: 1, 128>}, {pipeline_mode = #tpu.pipeline_mode<synchronous>, transform_indices = @transform_7, window_bounds = array<i64: 3, 32, 128>}, {transform_indices = @transform_8, window_bounds = array<i64: 512, 128>}]} {
    %c0 = arith.constant 0 : index
    %c0_0 = arith.constant 0 : index
    %0 = vector.load %arg1[%c0, %c0_0] : memref<512x32xbf16, #tpu.memory_space<vmem>>, vector<512x32xbf16>
    %c0_1 = arith.constant 0 : index
    %c0_2 = arith.constant 0 : index
    %1 = vector.load %arg2[%c0_1, %c0_2] : memref<32x32xbf16, #tpu.memory_space<vmem>>, vector<32x32xbf16>
    %cst = arith.constant dense<0.000000e+00> : vector<512x32xf32>
    %2 = tpu.matmul %0, %1, %cst {dimension_numbers = #tpu.dot_dimension_numbers<[1], [0], [0], [1], [0, 0, 1, 1], [], []>} : vector<512x32xbf16>, vector<32x32xbf16>, vector<512x32xf32> -> vector<512x32xf32>
    %c0_3 = arith.constant 0 : index
    %c0_4 = arith.constant 0 : index
    %3 = vector.load %arg3[%c0_3, %c0_4] : memref<1x32xf32, #tpu.memory_space<vmem>>, vector<1x32xf32>
    %4 = vector.broadcast %3 : vector<1x32xf32> to vector<512x32xf32>
    %5 = arith.addf %2, %4 : vector<512x32xf32>
    %cst_5 = arith.constant 0.000000e+00 : f32
    %6 = vector.broadcast %cst_5 : f32 to vector<512x32xf32>
    %7 = arith.cmpf oge, %5, %6 : vector<512x32xf32>
    %cst_6 = arith.constant 1.000000e-01 : f32
    %8 = vector.broadcast %cst_6 : f32 to vector<512x32xf32>
    %9 = arith.mulf %8, %5 : vector<512x32xf32>
    %10 = arith.select %7, %5, %9 : vector<512x32xi1>, vector<512x32xf32>
    %11 = arith.truncf %10 : vector<512x32xf32> to vector<512x32xbf16>
    %c0_7 = arith.constant 0 : index
    %c0_8 = arith.constant 0 : index
    %12 = vector.load %arg6[%c0_7, %c0_8] : memref<32x128xbf16, #tpu.memory_space<vmem>>, vector<32x128xbf16>
    %cst_9 = arith.constant dense<0.000000e+00> : vector<512x128xf32>
    %13 = tpu.matmul %11, %12, %cst_9 {dimension_numbers = #tpu.dot_dimension_numbers<[1], [0], [0], [1], [0, 0, 1, 1], [], []>} : vector<512x32xbf16>, vector<32x128xbf16>, vector<512x128xf32> -> vector<512x128xf32>
    %c0_10 = arith.constant 0 : index
    %c0_11 = arith.constant 0 : index
    %14 = vector.load %arg7[%c0_10, %c0_11] : memref<1x128xf32, #tpu.memory_space<vmem>>, vector<1x128xf32>
    %15 = vector.broadcast %14 : vector<1x128xf32> to vector<512x128xf32>
    %16 = arith.addf %13, %15 : vector<512x128xf32>
    %c0_12 = arith.constant 0 : index
    %c0_13 = arith.constant 0 : index
    %17 = vector.load %arg10[%c0_12, %c0_13] : memref<512x128xf32, #tpu.memory_space<vmem>>, vector<512x128xf32>
    tpu.vector_store %arg10[%c0_12, %c0_13], %16 {strides = array<i32>} : memref<512x128xf32, #tpu.memory_space<vmem>>, vector<512x128xf32>,
    %c0_14 = arith.constant 0 : index
    %c0_15 = arith.constant 0 : index
    %18 = vector.load %arg4[%c0_14, %c0_15] : memref<32x32xbf16, #tpu.memory_space<vmem>>, vector<32x32xbf16>
    %c0_16 = arith.constant 0 : index
    %c0_17 = arith.constant 0 : index
    %19 = vector.load %arg5[%c0_16, %c0_17] : memref<1x32xf32, #tpu.memory_space<vmem>>, vector<1x32xf32>
    %20 = arith.truncf %10 : vector<512x32xf32> to vector<512x32xbf16>
    %cst_18 = arith.constant dense<0.000000e+00> : vector<512x32xf32>
    %21 = tpu.matmul %20, %18, %cst_18 {dimension_numbers = #tpu.dot_dimension_numbers<[1], [0], [0], [1], [0, 0, 1, 1], [], []>} : vector<512x32xbf16>, vector<32x32xbf16>, vector<512x32xf32> -> vector<512x32xf32>
    %22 = vector.broadcast %19 : vector<1x32xf32> to vector<512x32xf32>
    %23 = arith.addf %21, %22 : vector<512x32xf32>
    %cst_19 = arith.constant 0.000000e+00 : f32
    %24 = vector.broadcast %cst_19 : f32 to vector<512x32xf32>
    %25 = arith.cmpf oge, %23, %24 : vector<512x32xf32>
    %cst_20 = arith.constant 1.000000e-01 : f32
    %26 = vector.broadcast %cst_20 : f32 to vector<512x32xf32>
    %27 = arith.mulf %26, %23 : vector<512x32xf32>
    %28 = arith.select %25, %23, %27 : vector<512x32xi1>, vector<512x32xf32>
    %29 = arith.addf %10, %28 : vector<512x32xf32>
    %c0_21 = arith.constant 0 : index
    %c0_22 = arith.constant 0 : index
    %30 = vector.load %arg10[%c0_21, %c0_22] : memref<512x128xf32, #tpu.memory_space<vmem>>, vector<512x128xf32>
    %31 = arith.truncf %29 : vector<512x32xf32> to vector<512x32xbf16>
    %c0_23 = arith.constant 0 : index
    %c0_24 = arith.constant 0 : index
    %c0_25 = arith.constant 0 : index
    %32 = vector.load %arg8[%c0_23, %c0_24, %c0_25] : memref<3x32x128xbf16, #tpu.memory_space<vmem>>, vector<1x32x128xbf16>
    %33 = vector.shape_cast %32 : vector<1x32x128xbf16> to vector<32x128xbf16>
    %cst_26 = arith.constant dense<0.000000e+00> : vector<512x128xf32>
    %34 = tpu.matmul %31, %33, %cst_26 {dimension_numbers = #tpu.dot_dimension_numbers<[1], [0], [0], [1], [0, 0, 1, 1], [], []>} : vector<512x32xbf16>, vector<32x128xbf16>, vector<512x128xf32> -> vector<512x128xf32>
    %35 = arith.addf %30, %34 : vector<512x128xf32>
    %c0_27 = arith.constant 0 : index
    %c0_28 = arith.constant 0 : index
    %36 = vector.load %arg10[%c0_27, %c0_28] : memref<512x128xf32, #tpu.memory_space<vmem>>, vector<512x128xf32>
    tpu.vector_store %arg10[%c0_27, %c0_28], %35 {strides = array<i32>} : memref<512x128xf32, #tpu.memory_space<vmem>>, vector<512x128xf32>,
    %37 = arith.truncf %29 : vector<512x32xf32> to vector<512x32xbf16>
    %cst_29 = arith.constant dense<0.000000e+00> : vector<512x32xf32>
    %38 = tpu.matmul %37, %18, %cst_29 {dimension_numbers = #tpu.dot_dimension_numbers<[1], [0], [0], [1], [0, 0, 1, 1], [], []>} : vector<512x32xbf16>, vector<32x32xbf16>, vector<512x32xf32> -> vector<512x32xf32>
    %39 = vector.broadcast %19 : vector<1x32xf32> to vector<512x32xf32>
    %40 = arith.addf %38, %39 : vector<512x32xf32>
    %cst_30 = arith.constant 0.000000e+00 : f32
    %41 = vector.broadcast %cst_30 : f32 to vector<512x32xf32>
    %42 = arith.cmpf oge, %40, %41 : vector<512x32xf32>
    %cst_31 = arith.constant 1.000000e-01 : f32
    %43 = vector.broadcast %cst_31 : f32 to vector<512x32xf32>
    %44 = arith.mulf %43, %40 : vector<512x32xf32>
    %45 = arith.select %42, %40, %44 : vector<512x32xi1>, vector<512x32xf32>
    %46 = arith.addf %29, %45 : vector<512x32xf32>
    %c0_32 = arith.constant 0 : index
    %c0_33 = arith.constant 0 : index
    %47 = vector.load %arg10[%c0_32, %c0_33] : memref<512x128xf32, #tpu.memory_space<vmem>>, vector<512x128xf32>
    %48 = arith.truncf %46 : vector<512x32xf32> to vector<512x32xbf16>
    %c1 = arith.constant 1 : index
    %c0_34 = arith.constant 0 : index
    %c0_35 = arith.constant 0 : index
    %49 = vector.load %arg8[%c1, %c0_34, %c0_35] : memref<3x32x128xbf16, #tpu.memory_space<vmem>>, vector<1x32x128xbf16>
    %50 = vector.shape_cast %49 : vector<1x32x128xbf16> to vector<32x128xbf16>
    %cst_36 = arith.constant dense<0.000000e+00> : vector<512x128xf32>
    %51 = tpu.matmul %48, %50, %cst_36 {dimension_numbers = #tpu.dot_dimension_numbers<[1], [0], [0], [1], [0, 0, 1, 1], [], []>} : vector<512x32xbf16>, vector<32x128xbf16>, vector<512x128xf32> -> vector<512x128xf32>
    %52 = arith.addf %47, %51 : vector<512x128xf32>
    %c0_37 = arith.constant 0 : index
    %c0_38 = arith.constant 0 : index
    %53 = vector.load %arg10[%c0_37, %c0_38] : memref<512x128xf32, #tpu.memory_space<vmem>>, vector<512x128xf32>
    tpu.vector_store %arg10[%c0_37, %c0_38], %52 {strides = array<i32>} : memref<512x128xf32, #tpu.memory_space<vmem>>, vector<512x128xf32>,
    %54 = arith.truncf %46 : vector<512x32xf32> to vector<512x32xbf16>
    %cst_39 = arith.constant dense<0.000000e+00> : vector<512x32xf32>
    %55 = tpu.matmul %54, %18, %cst_39 {dimension_numbers = #tpu.dot_dimension_numbers<[1], [0], [0], [1], [0, 0, 1, 1], [], []>} : vector<512x32xbf16>, vector<32x32xbf16>, vector<512x32xf32> -> vector<512x32xf32>
    %56 = vector.broadcast %19 : vector<1x32xf32> to vector<512x32xf32>
    %57 = arith.addf %55, %56 : vector<512x32xf32>
    %cst_40 = arith.constant 0.000000e+00 : f32
    %58 = vector.broadcast %cst_40 : f32 to vector<512x32xf32>
    %59 = arith.cmpf oge, %57, %58 : vector<512x32xf32>
    %cst_41 = arith.constant 1.000000e-01 : f32
    %60 = vector.broadcast %cst_41 : f32 to vector<512x32xf32>
    %61 = arith.mulf %60, %57 : vector<512x32xf32>
    %62 = arith.select %59, %57, %61 : vector<512x32xi1>, vector<512x32xf32>
    %63 = arith.addf %46, %62 : vector<512x32xf32>
    %c0_42 = arith.constant 0 : index
    %c0_43 = arith.constant 0 : index
    %64 = vector.load %arg10[%c0_42, %c0_43] : memref<512x128xf32, #tpu.memory_space<vmem>>, vector<512x128xf32>
    %65 = arith.truncf %63 : vector<512x32xf32> to vector<512x32xbf16>
    %c2 = arith.constant 2 : index
    %c0_44 = arith.constant 0 : index
    %c0_45 = arith.constant 0 : index
    %66 = vector.load %arg8[%c2, %c0_44, %c0_45] : memref<3x32x128xbf16, #tpu.memory_space<vmem>>, vector<1x32x128xbf16>
    %67 = vector.shape_cast %66 : vector<1x32x128xbf16> to vector<32x128xbf16>
    %cst_46 = arith.constant dense<0.000000e+00> : vector<512x128xf32>
    %68 = tpu.matmul %65, %67, %cst_46 {dimension_numbers = #tpu.dot_dimension_numbers<[1], [0], [0], [1], [0, 0, 1, 1], [], []>} : vector<512x32xbf16>, vector<32x128xbf16>, vector<512x128xf32> -> vector<512x128xf32>
    %69 = arith.addf %64, %68 : vector<512x128xf32>
    %c0_47 = arith.constant 0 : index
    %c0_48 = arith.constant 0 : index
    %70 = vector.load %arg10[%c0_47, %c0_48] : memref<512x128xf32, #tpu.memory_space<vmem>>, vector<512x128xf32>
    tpu.vector_store %arg10[%c0_47, %c0_48], %69 {strides = array<i32>} : memref<512x128xf32, #tpu.memory_space<vmem>>, vector<512x128xf32>,
    %c0_49 = arith.constant 0 : index
    %c0_50 = arith.constant 0 : index
    %71 = vector.load %arg10[%c0_49, %c0_50] : memref<512x128xf32, #tpu.memory_space<vmem>>, vector<512x128xf32>
    %72 = arith.truncf %71 : vector<512x128xf32> to vector<512x128xbf16>
    %c0_51 = arith.constant 0 : index
    %c0_52 = arith.constant 0 : index
    %73 = vector.load %arg9[%c0_51, %c0_52] : memref<512x128xbf16, #tpu.memory_space<vmem>>, vector<512x128xbf16>
    tpu.vector_store %arg9[%c0_51, %c0_52], %72 {strides = array<i32>} : memref<512x128xbf16, #tpu.memory_space<vmem>>, vector<512x128xbf16>,
    return
  }
  func.func @transform_0(%arg0: i32) -> (i32, i32) {
    %c0_i32 = arith.constant 0 : i32
    %c0_i32_0 = arith.constant 0 : i32
    return %arg0, %c0_i32 : i32, i32
  }
  func.func @transform_1(%arg0: i32) -> (i32, i32) {
    %c0_i32 = arith.constant 0 : i32
    %c0_i32_0 = arith.constant 0 : i32
    %c0_i32_1 = arith.constant 0 : i32
    return %c0_i32, %c0_i32_0 : i32, i32
  }
  func.func @transform_2(%arg0: i32) -> (i32, i32) {
    %c0_i32 = arith.constant 0 : i32
    %c0_i32_0 = arith.constant 0 : i32
    %c0_i32_1 = arith.constant 0 : i32
    return %c0_i32, %c0_i32_0 : i32, i32
  }
  func.func @transform_3(%arg0: i32) -> (i32, i32) {
    %c0_i32 = arith.constant 0 : i32
    %c0_i32_0 = arith.constant 0 : i32
    %c0_i32_1 = arith.constant 0 : i32
    return %c0_i32, %c0_i32_0 : i32, i32
  }
  func.func @transform_4(%arg0: i32) -> (i32, i32) {
    %c0_i32 = arith.constant 0 : i32
    %c0_i32_0 = arith.constant 0 : i32
    %c0_i32_1 = arith.constant 0 : i32
    return %c0_i32, %c0_i32_0 : i32, i32
  }
  func.func @transform_5(%arg0: i32) -> (i32, i32) {
    %c0_i32 = arith.constant 0 : i32
    %c0_i32_0 = arith.constant 0 : i32
    %c0_i32_1 = arith.constant 0 : i32
    return %c0_i32, %c0_i32_0 : i32, i32
  }
  func.func @transform_6(%arg0: i32) -> (i32, i32) {
    %c0_i32 = arith.constant 0 : i32
    %c0_i32_0 = arith.constant 0 : i32
    %c0_i32_1 = arith.constant 0 : i32
    return %c0_i32, %c0_i32_0 : i32, i32
  }
  func.func @transform_7(%arg0: i32) -> (i32, i32, i32) {
    %c0_i32 = arith.constant 0 : i32
    %c0_i32_0 = arith.constant 0 : i32
    %c0_i32_1 = arith.constant 0 : i32
    %c0_i32_2 = arith.constant 0 : i32
    return %c0_i32, %c0_i32_0, %c0_i32_1 : i32, i32, i32
  }
  func.func @transform_8(%arg0: i32) -> (i32, i32) {
    %c0_i32 = arith.constant 0 : i32
    %c0_i32_0 = arith.constant 0 : i32
    return %arg0, %c0_i32 : i32, i32
  }
}

</mosaic_0001>

<llo_original>
// kernel: kpcollider_forward.2
$region0: #{kpcollider_forward.2}
  #allocation0 [shape = 'u32[]', space=smem, size = 0x4, offset = 0x4, fixed_abs, tag = 'smem constant byte address 0x4 - core index']
  #allocation1 [shape = 'u32[72,128]{1,0:T(1,128)}', space=vmem, size = 0x9000, scoped, tag = 'internal scratch']
  %s0 = inlined_call_operand.vmem [shape: bf16[200,4], index: 0, kind: input, shape index: {}]
  %s1 = inlined_call_operand.vmem [shape: bf16[4,32], index: 1, kind: input, shape index: {}]
  %s2 = inlined_call_operand.vmem [shape: f32[1,32], index: 2, kind: input, shape index: {}]
  %s3 = inlined_call_operand.vmem [shape: bf16[32,32], index: 3, kind: input, shape index: {}]
  %s4 = inlined_call_operand.vmem [shape: f32[1,32], index: 4, kind: input, shape index: {}]
  %s5 = inlined_call_operand.vmem [shape: bf16[32,128], index: 5, kind: input, shape index: {}]
  %s6 = inlined_call_operand.vmem [shape: f32[1,128], index: 6, kind: input, shape index: {}]
  %s7 = inlined_call_operand.vmem [shape: bf16[200,32], index: 7, kind: output, shape index: {0}]
  %s8 = inlined_call_operand.vmem [shape: bf16[200,128], index: 8, kind: output, shape index: {1}]
  %9 = xla_tuple %s7, %s8
  %s10 = sld [smem:[#allocation0]]
  $region46: #{kpcollider_forward.2} parent=0
    _
  %s12 = ssub.s32 1, %s10
  %s13 = scalar_select 0, %s12, %s10
  // Predicated region
  $region2: #{kpcollider_forward.2} parent=0 // pred_check
    _
  $region3: #{kpcollider_forward.2} parent=0 // pred_check_branch
    %15 = sbr.rel (0) target = $region5
  $region4: #{kpcollider_forward.2} parent=0 // pred_region
    _
  $region5: #{kpcollider_forward.2} parent=0 // pred_fallthru
    _
  // Predicated region
  $region6: #{kpcollider_forward.2} parent=0 // pred_check
    _
  $region7: #{kpcollider_forward.2} parent=0 // pred_check_branch
    %17 = sbr.rel (0) target = $region9
  $region8: #{kpcollider_forward.2} parent=0 // pred_region
    _
  $region9: #{kpcollider_forward.2} parent=0 // pred_fallthru
    _
  // Predicated region
  $region10: #{kpcollider_forward.2} parent=0 // pred_check
    _
  $region11: #{kpcollider_forward.2} parent=0 // pred_check_branch
    %19 = sbr.rel (0) target = $region13
  $region12: #{kpcollider_forward.2} parent=0 // pred_region
    _
  $region13: #{kpcollider_forward.2} parent=0 // pred_fallthru
    _
  // Predicated region
  $region14: #{kpcollider_forward.2} parent=0 // pred_check
    _
  $region15: #{kpcollider_forward.2} parent=0 // pred_check_branch
    %21 = sbr.rel (0) target = $region17
  $region16: #{kpcollider_forward.2} parent=0 // pred_region
    _
  $region17: #{kpcollider_forward.2} parent=0 // pred_fallthru
    _
  // Predicated region
  $region18: #{kpcollider_forward.2} parent=0 // pred_check
    _
  $region19: #{kpcollider_forward.2} parent=0 // pred_check_branch
    %23 = sbr.rel (0) target = $region21
  $region20: #{kpcollider_forward.2} parent=0 // pred_region
    _
  $region21: #{kpcollider_forward.2} parent=0 // pred_fallthru
    _
  // Predicated region
  $region22: #{kpcollider_forward.2} parent=0 // pred_check
    _
  $region23: #{kpcollider_forward.2} parent=0 // pred_check_branch
    %25 = sbr.rel (0) target = $region25
  $region24: #{kpcollider_forward.2} parent=0 // pred_region
    _
  $region25: #{kpcollider_forward.2} parent=0 // pred_fallthru
    _
  // Predicated region
  $region26: #{kpcollider_forward.2} parent=0 // pred_check
    _
  $region27: #{kpcollider_forward.2} parent=0 // pred_check_branch
    %27 = sbr.rel (0) target = $region29
  $region28: #{kpcollider_forward.2} parent=0 // pred_region
    _
  $region29: #{kpcollider_forward.2} parent=0 // pred_fallthru
    _
  %v29 = vld [vmem:[%s0] sm:$0xf]
  %v30 = vld [vmem:[%s0 + $0x4] sm:$0xf]
  %v31 = vld [vmem:[%s0 + $0x8] sm:$0xf]
  %v32 = vld [vmem:[%s0 + $0xc] sm:$0xf]
  %v33 = vld [vmem:[%s0 + $0x10] sm:$0xf]
  %v34 = vld [vmem:[%s0 + $0x14] sm:$0xf]
  %v35 = vld [vmem:[%s0 + $0x18] sm:$0xf]
  %v36 = vld [vmem:[%s0 + $0x1c] sm:$0xf]
  %v37 = vld [vmem:[%s0 + $0x20] sm:$0xf]
  %v38 = vld [vmem:[%s0 + $0x24] sm:$0xf]
  %v39 = vld [vmem:[%s0 + $0x28] sm:$0xf]
  %v40 = vld [vmem:[%s0 + $0x2c] sm:$0xf]
  %v41 = vld [vmem:[%s0 + $0x30] sm:$0xf]
  %v42 = vld [vmem:[%s0 + $0x34] sm:$0xf]
  %v43 = vld [vmem:[%s0 + $0x38] sm:$0xf]
  %v44 = vld [vmem:[%s0 + $0x3c] sm:$0xf]
  %v45 = vld [vmem:[%s0 + $0x40] sm:$0xf]
  %v46 = vld [vmem:[%s0 + $0x44] sm:$0xf]
  %v47 = vld [vmem:[%s0 + $0x48] sm:$0xf]
  %v48 = vld [vmem:[%s0 + $0x4c] sm:$0xf]
  %v49 = vld [vmem:[%s0 + $0x50] sm:$0xf]
  %v50 = vld [vmem:[%s0 + $0x54] sm:$0xf]
  %v51 = vld [vmem:[%s0 + $0x58] sm:$0xf]
  %v52 = vld [vmem:[%s0 + $0x5c] sm:$0xf]
  %v53 = vld [vmem:[%s0 + $0x60] sm:$0xf]
  %v54 = vld [vmem:[%s1] sm:$0x3]
  %v55 = vld [vmem:[%s2] sm:$0x1]
  %v57 = vperm.slane %v55, 0
  %v84 = vunpack.c.l.b16 %v29
  %v85 = vunpack.c.l.b16 %v30
  %v86 = vunpack.c.l.b16 %v31
  %v87 = vunpack.c.l.b16 %v32
  %v88 = vunpack.c.l.b16 %v33
  %v89 = vunpack.c.l.b16 %v34
  %v90 = vunpack.c.l.b16 %v35
  %v91 = vunpack.c.l.b16 %v36
  %v92 = vunpack.c.l.b16 %v37
  %v93 = vunpack.c.l.b16 %v38
  %v94 = vunpack.c.l.b16 %v39
  %v95 = vunpack.c.l.b16 %v40
  %v96 = vunpack.c.l.b16 %v41
  %v97 = vunpack.c.l.b16 %v42
  %v98 = vunpack.c.l.b16 %v43
  %v99 = vunpack.c.l.b16 %v44
  %v100 = vunpack.c.l.b16 %v45
  %v101 = vunpack.c.l.b16 %v46
  %v102 = vunpack.c.l.b16 %v47
  %v103 = vunpack.c.l.b16 %v48
  %v104 = vunpack.c.l.b16 %v49
  %v105 = vunpack.c.l.b16 %v50
  %v106 = vunpack.c.l.b16 %v51
  %v107 = vunpack.c.l.b16 %v52
  %v108 = vunpack.c.l.b16 %v53
  %v109 = vpack.c.b16 %v85, %v84
  %v110 = vpack.c.b16 %v87, %v86
  %v111 = vpack.c.b16 %v89, %v88
  %v112 = vpack.c.b16 %v91, %v90
  %v113 = vpack.c.b16 %v93, %v92
  %v114 = vpack.c.b16 %v95, %v94
  %v115 = vpack.c.b16 %v97, %v96
  %v116 = vpack.c.b16 %v99, %v98
  %v117 = vpack.c.b16 %v101, %v100
  %v118 = vpack.c.b16 %v103, %v102
  %v119 = vpack.c.b16 %v105, %v104
  %v120 = vpack.c.b16 %v107, %v106
  %v121 = vpack.c.b16 %v108, %v108
  %vm122 = vcmask 31744
  %v124 = vsel %vm122, %v109, 0
  %v127 = vsel %vm122, %v110, 0
  %v130 = vsel %vm122, %v111, 0
  %v133 = vsel %vm122, %v112, 0
  %v136 = vsel %vm122, %v113, 0
  %v139 = vsel %vm122, %v114, 0
  %v142 = vsel %vm122, %v115, 0
  %v145 = vsel %vm122, %v116, 0
  %v148 = vsel %vm122, %v117, 0
  %v151 = vsel %vm122, %v118, 0
  %v154 = vsel %vm122, %v119, 0
  %v157 = vsel %vm122, %v120, 0
  %v160 = vsel %vm122, %v121, 0
  %vm162 = vcmask 1041408
  %v164 = vsel %vm162, %v54, 0
  %166 = vmatpush.bf16.msra.mxu0 0
  %167 = vmatpush.bf16.msra.mxu0 0
  %168 = vmatpush.bf16.msra.mxu0 0
  %169 = vmatpush.bf16.msra.mxu0 0
  %170 = vmatpush.bf16.msra.mxu0 0
  %171 = vmatpush.bf16.msra.mxu0 0
  %172 = vmatpush.bf16.msra.mxu0 0
  %173 = vmatpush.bf16.msra.mxu0 %v164
  %174 = vmatmul.bf16.gmra.mxu0 %v124
  %v175 = vpop.f32.mrf.mxu0
  %v176 = vadd.f32 %v57, %v175
  %v177 = vpop.f32.mrf.mxu0
  %v178 = vadd.f32 %v57, %v177
  %179 = vmatmul.bf16.gmra.mxu0 %v127
  %v180 = vpop.f32.mrf.mxu0
  %v181 = vadd.f32 %v57, %v180
  %v182 = vpop.f32.mrf.mxu0
  %v183 = vadd.f32 %v57, %v182
  %184 = vmatmul.bf16.gmra.mxu0 %v130
  %v185 = vpop.f32.mrf.mxu0
  %v186 = vadd.f32 %v57, %v185
  %v187 = vpop.f32.mrf.mxu0
  %v188 = vadd.f32 %v57, %v187
  %189 = vmatmul.bf16.gmra.mxu0 %v133
  %v190 = vpop.f32.mrf.mxu0
  %v191 = vadd.f32 %v57, %v190
  %v192 = vpop.f32.mrf.mxu0
  %v193 = vadd.f32 %v57, %v192
  %194 = vmatmul.bf16.gmra.mxu0 %v136
  %v195 = vpop.f32.mrf.mxu0
  %v196 = vadd.f32 %v57, %v195
  %v197 = vpop.f32.mrf.mxu0
  %v198 = vadd.f32 %v57, %v197
  %199 = vmatmul.bf16.gmra.mxu0 %v139
  %v200 = vpop.f32.mrf.mxu0
  %v201 = vadd.f32 %v57, %v200
  %v202 = vpop.f32.mrf.mxu0
  %v203 = vadd.f32 %v57, %v202
  %204 = vmatmul.bf16.gmra.mxu0 %v142
  %v205 = vpop.f32.mrf.mxu0
  %v206 = vadd.f32 %v57, %v205
  %v207 = vpop.f32.mrf.mxu0
  %v208 = vadd.f32 %v57, %v207
  %209 = vmatmul.bf16.gmra.mxu0 %v145
  %v210 = vpop.f32.mrf.mxu0
  %v211 = vadd.f32 %v57, %v210
  %v212 = vpop.f32.mrf.mxu0
  %v213 = vadd.f32 %v57, %v212
  %214 = vmatmul.bf16.gmra.mxu0 %v148
  %v215 = vpop.f32.mrf.mxu0
  %v216 = vadd.f32 %v57, %v215
  %v217 = vpop.f32.mrf.mxu0
  %v218 = vadd.f32 %v57, %v217
  %219 = vmatmul.bf16.gmra.mxu0 %v151
  %v220 = vpop.f32.mrf.mxu0
  %v221 = vadd.f32 %v57, %v220
  %v222 = vpop.f32.mrf.mxu0
  %v223 = vadd.f32 %v57, %v222
  %224 = vmatmul.bf16.gmra.mxu0 %v154
  %v225 = vpop.f32.mrf.mxu0
  %v226 = vadd.f32 %v57, %v225
  %v227 = vpop.f32.mrf.mxu0
  %v228 = vadd.f32 %v57, %v227
  %229 = vmatmul.bf16.gmra.mxu0 %v157
  %v230 = vpop.f32.mrf.mxu0
  %v231 = vadd.f32 %v57, %v230
  %v232 = vpop.f32.mrf.mxu0
  %v233 = vadd.f32 %v57, %v232
  %234 = vmatmul.bf16.gmra.mxu0 %v160
  %v235 = vpop.f32.mrf.mxu0
  %v236 = vadd.f32 %v57, %v235
  %v237 = vpop.f32.mrf.mxu0
  %238 = vdwg.mxu0
  %vm239 = vcmp.ge.f32.partialorder %v176, 0.0
  %vm240 = vcmp.ge.f32.partialorder %v178, 0.0
  %vm241 = vcmp.ge.f32.partialorder %v181, 0.0
  %vm242 = vcmp.ge.f32.partialorder %v183, 0.0
  %vm243 = vcmp.ge.f32.partialorder %v186, 0.0
  %vm244 = vcmp.ge.f32.partialorder %v188, 0.0
  %vm245 = vcmp.ge.f32.partialorder %v191, 0.0
  %vm246 = vcmp.ge.f32.partialorder %v193, 0.0
  %vm247 = vcmp.ge.f32.partialorder %v196, 0.0
  %vm248 = vcmp.ge.f32.partialorder %v198, 0.0
  %vm249 = vcmp.ge.f32.partialorder %v201, 0.0
  %vm250 = vcmp.ge.f32.partialorder %v203, 0.0
  %vm251 = vcmp.ge.f32.partialorder %v206, 0.0
  %vm252 = vcmp.ge.f32.partialorder %v208, 0.0
  %vm253 = vcmp.ge.f32.partialorder %v211, 0.0
  %vm254 = vcmp.ge.f32.partialorder %v213, 0.0
  %vm255 = vcmp.ge.f32.partialorder %v216, 0.0
  %vm256 = vcmp.ge.f32.partialorder %v218, 0.0
  %vm257 = vcmp.ge.f32.partialorder %v221, 0.0
  %vm258 = vcmp.ge.f32.partialorder %v223, 0.0
  %vm259 = vcmp.ge.f32.partialorder %v226, 0.0
  %vm260 = vcmp.ge.f32.partialorder %v228, 0.0
  %vm261 = vcmp.ge.f32.partialorder %v231, 0.0
  %vm262 = vcmp.ge.f32.partialorder %v233, 0.0
  %vm263 = vcmp.ge.f32.partialorder %v236, 0.0
  %v264 = vmul.f32 %v176, 0.1
  %v265 = vmul.f32 %v178, 0.1
  %v266 = vmul.f32 %v181, 0.1
  %v267 = vmul.f32 %v183, 0.1
  %v268 = vmul.f32 %v186, 0.1
  %v269 = vmul.f32 %v188, 0.1
  %v270 = vmul.f32 %v191, 0.1
  %v271 = vmul.f32 %v193, 0.1
  %v272 = vmul.f32 %v196, 0.1
  %v273 = vmul.f32 %v198, 0.1
  %v274 = vmul.f32 %v201, 0.1
  %v275 = vmul.f32 %v203, 0.1
  %v276 = vmul.f32 %v206, 0.1
  %v277 = vmul.f32 %v208, 0.1
  %v278 = vmul.f32 %v211, 0.1
  %v279 = vmul.f32 %v213, 0.1
  %v280 = vmul.f32 %v216, 0.1
  %v281 = vmul.f32 %v218, 0.1
  %v282 = vmul.f32 %v221, 0.1
  %v283 = vmul.f32 %v223, 0.1
  %v284 = vmul.f32 %v226, 0.1
  %v285 = vmul.f32 %v228, 0.1
  %v286 = vmul.f32 %v231, 0.1
  %v287 = vmul.f32 %v233, 0.1
  %v288 = vmul.f32 %v236, 0.1
  %v289 = vsel %vm239, %v176, %v264
  %v290 = vsel %vm240, %v178, %v265
  %v291 = vsel %vm241, %v181, %v266
  %v292 = vsel %vm242, %v183, %v267
  %v293 = vsel %vm243, %v186, %v268
  %v294 = vsel %vm244, %v188, %v269
  %v295 = vsel %vm245, %v191, %v270
  %v296 = vsel %vm246, %v193, %v271
  %v297 = vsel %vm247, %v196, %v272
  %v298 = vsel %vm248, %v198, %v273
  %v299 = vsel %vm249, %v201, %v274
  %v300 = vsel %vm250, %v203, %v275
  %v301 = vsel %vm251, %v206, %v276
  %v302 = vsel %vm252, %v208, %v277
  %v303 = vsel %vm253, %v211, %v278
  %v304 = vsel %vm254, %v213, %v279
  %v305 = vsel %vm255, %v216, %v280
  %v306 = vsel %vm256, %v218, %v281
  %v307 = vsel %vm257, %v221, %v282
  %v308 = vsel %vm258, %v223, %v283
  %v309 = vsel %vm259, %v226, %v284
  %v310 = vsel %vm260, %v228, %v285
  %v311 = vsel %vm261, %v231, %v286
  %v312 = vsel %vm262, %v233, %v287
  %v313 = vsel %vm263, %v236, %v288
  %v314 = vpack.c.bf16 %v289, %v289
  %v315 = vpack.c.bf16 %v290, %v290
  %v316 = vpack.c.bf16 %v291, %v291
  %v317 = vpack.c.bf16 %v292, %v292
  %v318 = vpack.c.bf16 %v293, %v293
  %v319 = vpack.c.bf16 %v294, %v294
  %v320 = vpack.c.bf16 %v295, %v295
  %v321 = vpack.c.bf16 %v296, %v296
  %v322 = vpack.c.bf16 %v297, %v297
  %v323 = vpack.c.bf16 %v298, %v298
  %v324 = vpack.c.bf16 %v299, %v299
  %v325 = vpack.c.bf16 %v300, %v300
  %v326 = vpack.c.bf16 %v301, %v301
  %v327 = vpack.c.bf16 %v302, %v302
  %v328 = vpack.c.bf16 %v303, %v303
  %v329 = vpack.c.bf16 %v304, %v304
  %v330 = vpack.c.bf16 %v305, %v305
  %v331 = vpack.c.bf16 %v306, %v306
  %v332 = vpack.c.bf16 %v307, %v307
  %v333 = vpack.c.bf16 %v308, %v308
  %v334 = vpack.c.bf16 %v309, %v309
  %v335 = vpack.c.bf16 %v310, %v310
  %v336 = vpack.c.bf16 %v311, %v311
  %v337 = vpack.c.bf16 %v312, %v312
  %v338 = vpack.c.bf16 %v313, %v313
  %vm339 = vcmask 257024
  %340 = vst.msk [vmem:[%s7] sm:$0xf] %vm339, %v314
  %341 = vst.msk [vmem:[%s7 + $0x4] sm:$0xf] %vm339, %v315
  %342 = vst.msk [vmem:[%s7 + $0x8] sm:$0xf] %vm339, %v316
  %343 = vst.msk [vmem:[%s7 + $0xc] sm:$0xf] %vm339, %v317
  %344 = vst.msk [vmem:[%s7 + $0x10] sm:$0xf] %vm339, %v318
  %345 = vst.msk [vmem:[%s7 + $0x14] sm:$0xf] %vm339, %v319
  %346 = vst.msk [vmem:[%s7 + $0x18] sm:$0xf] %vm339, %v320
  %347 = vst.msk [vmem:[%s7 + $0x1c] sm:$0xf] %vm339, %v321
  %348 = vst.msk [vmem:[%s7 + $0x20] sm:$0xf] %vm339, %v322
  %349 = vst.msk [vmem:[%s7 + $0x24] sm:$0xf] %vm339, %v323
  %350 = vst.msk [vmem:[%s7 + $0x28] sm:$0xf] %vm339, %v324
  %351 = vst.msk [vmem:[%s7 + $0x2c] sm:$0xf] %vm339, %v325
  %352 = vst.msk [vmem:[%s7 + $0x30] sm:$0xf] %vm339, %v326
  %353 = vst.msk [vmem:[%s7 + $0x34] sm:$0xf] %vm339, %v327
  %354 = vst.msk [vmem:[%s7 + $0x38] sm:$0xf] %vm339, %v328
  %355 = vst.msk [vmem:[%s7 + $0x3c] sm:$0xf] %vm339, %v329
  %356 = vst.msk [vmem:[%s7 + $0x40] sm:$0xf] %vm339, %v330
  %357 = vst.msk [vmem:[%s7 + $0x44] sm:$0xf] %vm339, %v331
  %358 = vst.msk [vmem:[%s7 + $0x48] sm:$0xf] %vm339, %v332
  %359 = vst.msk [vmem:[%s7 + $0x4c] sm:$0xf] %vm339, %v333
  %360 = vst.msk [vmem:[%s7 + $0x50] sm:$0xf] %vm339, %v334
  %361 = vst.msk [vmem:[%s7 + $0x54] sm:$0xf] %vm339, %v335
  %362 = vst.msk [vmem:[%s7 + $0x58] sm:$0xf] %vm339, %v336
  %363 = vst.msk [vmem:[%s7 + $0x5c] sm:$0xf] %vm339, %v337
  %364 = vst.msk [vmem:[%s7 + $0x60] sm:$0xf] %vm339, %v338
  %v365 = vld [vmem:[%s3] sm:$0xf]
  %v366 = vld [vmem:[%s3 + $0x4] sm:$0xf]
  %v367 = vld [vmem:[%s3 + $0x8] sm:$0xf]
  %v368 = vld [vmem:[%s3 + $0xc] sm:$0xf]
  %v369 = vld [vmem:[%s4] sm:$0x1]
  %v371 = vperm.slane %v369, 0
  %v398 = vunpack.c.l.b16 %v314
  %v399 = vunpack.c.l.b16 %v315
  %v400 = vunpack.c.l.b16 %v316
  %v401 = vunpack.c.l.b16 %v317
  %v402 = vunpack.c.l.b16 %v318
  %v403 = vunpack.c.l.b16 %v319
  %v404 = vunpack.c.l.b16 %v320
  %v405 = vunpack.c.l.b16 %v321
  %v406 = vunpack.c.l.b16 %v322
  %v407 = vunpack.c.l.b16 %v323
  %v408 = vunpack.c.l.b16 %v324
  %v409 = vunpack.c.l.b16 %v325
  %v410 = vunpack.c.l.b16 %v326
  %v411 = vunpack.c.l.b16 %v327
  %v412 = vunpack.c.l.b16 %v328
  %v413 = vunpack.c.l.b16 %v329
  %v414 = vunpack.c.l.b16 %v330
  %v415 = vunpack.c.l.b16 %v331
  %v416 = vunpack.c.l.b16 %v332
  %v417 = vunpack.c.l.b16 %v333
  %v418 = vunpack.c.l.b16 %v334
  %v419 = vunpack.c.l.b16 %v335
  %v420 = vunpack.c.l.b16 %v336
  %v421 = vunpack.c.l.b16 %v337
  %v422 = vunpack.c.l.b16 %v338
  %v423 = vpack.c.b16 %v399, %v398
  %v424 = vpack.c.b16 %v401, %v400
  %v425 = vpack.c.b16 %v403, %v402
  %v426 = vpack.c.b16 %v405, %v404
  %v427 = vpack.c.b16 %v407, %v406
  %v428 = vpack.c.b16 %v409, %v408
  %v429 = vpack.c.b16 %v411, %v410
  %v430 = vpack.c.b16 %v413, %v412
  %v431 = vpack.c.b16 %v415, %v414
  %v432 = vpack.c.b16 %v417, %v416
  %v433 = vpack.c.b16 %v419, %v418
  %v434 = vpack.c.b16 %v421, %v420
  %v435 = vpack.c.b16 %v422, %v422
  %v440 = vunpack.c.l.b16 %v365
  %v441 = vunpack.c.l.b16 %v366
  %v442 = vunpack.c.l.b16 %v367
  %v443 = vunpack.c.l.b16 %v368
  %v444 = vpack.c.b16 %v441, %v440
  %v445 = vpack.c.b16 %v443, %v442
  %vm448 = vcmask 261120
  %v450 = vsel %vm448, %v423, 0
  %v453 = vsel %vm448, %v424, 0
  %v456 = vsel %vm448, %v425, 0
  %v459 = vsel %vm448, %v426, 0
  %v462 = vsel %vm448, %v427, 0
  %v465 = vsel %vm448, %v428, 0
  %v468 = vsel %vm448, %v429, 0
  %v471 = vsel %vm448, %v430, 0
  %v474 = vsel %vm448, %v431, 0
  %v477 = vsel %vm448, %v432, 0
  %v480 = vsel %vm448, %v433, 0
  %v483 = vsel %vm448, %v434, 0
  %v486 = vsel %vm448, %v435, 0
  %488 = vmatpush.bf16.msra.mxu0 0
  %489 = vmatpush.bf16.msra.mxu0 0
  %490 = vmatpush.bf16.msra.mxu0 0
  %491 = vmatpush.bf16.msra.mxu0 0
  %492 = vmatpush.bf16.msra.mxu0 0
  %493 = vmatpush.bf16.msra.mxu0 0
  %494 = vmatpush.bf16.msra.mxu0 %v445
  %495 = vmatpush.bf16.msra.mxu0 %v444
  %496 = vmatmul.bf16.gmra.mxu0 %v450
  %v497 = vpop.f32.mrf.mxu0
  %v498 = vadd.f32 %v371, %v497
  %v499 = vpop.f32.mrf.mxu0
  %v500 = vadd.f32 %v371, %v499
  %501 = vmatmul.bf16.gmra.mxu0 %v453
  %v502 = vpop.f32.mrf.mxu0
  %v503 = vadd.f32 %v371, %v502
  %v504 = vpop.f32.mrf.mxu0
  %v505 = vadd.f32 %v371, %v504
  %506 = vmatmul.bf16.gmra.mxu0 %v456
  %v507 = vpop.f32.mrf.mxu0
  %v508 = vadd.f32 %v371, %v507
  %v509 = vpop.f32.mrf.mxu0
  %v510 = vadd.f32 %v371, %v509
  %511 = vmatmul.bf16.gmra.mxu0 %v459
  %v512 = vpop.f32.mrf.mxu0
  %v513 = vadd.f32 %v371, %v512
  %v514 = vpop.f32.mrf.mxu0
  %v515 = vadd.f32 %v371, %v514
  %516 = vmatmul.bf16.gmra.mxu0 %v462
  %v517 = vpop.f32.mrf.mxu0
  %v518 = vadd.f32 %v371, %v517
  %v519 = vpop.f32.mrf.mxu0
  %v520 = vadd.f32 %v371, %v519
  %521 = vmatmul.bf16.gmra.mxu0 %v465
  %v522 = vpop.f32.mrf.mxu0
  %v523 = vadd.f32 %v371, %v522
  %v524 = vpop.f32.mrf.mxu0
  %v525 = vadd.f32 %v371, %v524
  %526 = vmatmul.bf16.gmra.mxu0 %v468
  %v527 = vpop.f32.mrf.mxu0
  %v528 = vadd.f32 %v371, %v527
  %v529 = vpop.f32.mrf.mxu0
  %v530 = vadd.f32 %v371, %v529
  %531 = vmatmul.bf16.gmra.mxu0 %v471
  %v532 = vpop.f32.mrf.mxu0
  %v533 = vadd.f32 %v371, %v532
  %v534 = vpop.f32.mrf.mxu0
  %v535 = vadd.f32 %v371, %v534
  %536 = vmatmul.bf16.gmra.mxu0 %v474
  %v537 = vpop.f32.mrf.mxu0
  %v538 = vadd.f32 %v371, %v537
  %v539 = vpop.f32.mrf.mxu0
  %v540 = vadd.f32 %v371, %v539
  %541 = vmatmul.bf16.gmra.mxu0 %v477
  %v542 = vpop.f32.mrf.mxu0
  %v543 = vadd.f32 %v371, %v542
  %v544 = vpop.f32.mrf.mxu0
  %v545 = vadd.f32 %v371, %v544
  %546 = vmatmul.bf16.gmra.mxu0 %v480
  %v547 = vpop.f32.mrf.mxu0
  %v548 = vadd.f32 %v371, %v547
  %v549 = vpop.f32.mrf.mxu0
  %v550 = vadd.f32 %v371, %v549
  %551 = vmatmul.bf16.gmra.mxu0 %v483
  %v552 = vpop.f32.mrf.mxu0
  %v553 = vadd.f32 %v371, %v552
  %v554 = vpop.f32.mrf.mxu0
  %v555 = vadd.f32 %v371, %v554
  %556 = vmatmul.bf16.gmra.mxu0 %v486
  %v557 = vpop.f32.mrf.mxu0
  %v558 = vadd.f32 %v371, %v557
  %v559 = vpop.f32.mrf.mxu0
  %560 = vdwg.mxu0
  %vm561 = vcmp.ge.f32.partialorder %v498, 0.0
  %vm562 = vcmp.ge.f32.partialorder %v500, 0.0
  %vm563 = vcmp.ge.f32.partialorder %v503, 0.0
  %vm564 = vcmp.ge.f32.partialorder %v505, 0.0
  %vm565 = vcmp.ge.f32.partialorder %v508, 0.0
  %vm566 = vcmp.ge.f32.partialorder %v510, 0.0
  %vm567 = vcmp.ge.f32.partialorder %v513, 0.0
  %vm568 = vcmp.ge.f32.partialorder %v515, 0.0
  %vm569 = vcmp.ge.f32.partialorder %v518, 0.0
  %vm570 = vcmp.ge.f32.partialorder %v520, 0.0
  %vm571 = vcmp.ge.f32.partialorder %v523, 0.0
  %vm572 = vcmp.ge.f32.partialorder %v525, 0.0
  %vm573 = vcmp.ge.f32.partialorder %v528, 0.0
  %vm574 = vcmp.ge.f32.partialorder %v530, 0.0
  %vm575 = vcmp.ge.f32.partialorder %v533, 0.0
  %vm576 = vcmp.ge.f32.partialorder %v535, 0.0
  %vm577 = vcmp.ge.f32.partialorder %v538, 0.0
  %vm578 = vcmp.ge.f32.partialorder %v540, 0.0
  %vm579 = vcmp.ge.f32.partialorder %v543, 0.0
  %vm580 = vcmp.ge.f32.partialorder %v545, 0.0
  %vm581 = vcmp.ge.f32.partialorder %v548, 0.0
  %vm582 = vcmp.ge.f32.partialorder %v550, 0.0
  %vm583 = vcmp.ge.f32.partialorder %v553, 0.0
  %vm584 = vcmp.ge.f32.partialorder %v555, 0.0
  %vm585 = vcmp.ge.f32.partialorder %v558, 0.0
  %v586 = vmul.f32 %v498, 0.1
  %v587 = vmul.f32 %v500, 0.1
  %v588 = vmul.f32 %v503, 0.1
  %v589 = vmul.f32 %v505, 0.1
  %v590 = vmul.f32 %v508, 0.1
  %v591 = vmul.f32 %v510, 0.1
  %v592 = vmul.f32 %v513, 0.1
  %v593 = vmul.f32 %v515, 0.1
  %v594 = vmul.f32 %v518, 0.1
  %v595 = vmul.f32 %v520, 0.1
  %v596 = vmul.f32 %v523, 0.1
  %v597 = vmul.f32 %v525, 0.1
  %v598 = vmul.f32 %v528, 0.1
  %v599 = vmul.f32 %v530, 0.1
  %v600 = vmul.f32 %v533, 0.1
  %v601 = vmul.f32 %v535, 0.1
  %v602 = vmul.f32 %v538, 0.1
  %v603 = vmul.f32 %v540, 0.1
  %v604 = vmul.f32 %v543, 0.1
  %v605 = vmul.f32 %v545, 0.1
  %v606 = vmul.f32 %v548, 0.1
  %v607 = vmul.f32 %v550, 0.1
  %v608 = vmul.f32 %v553, 0.1
  %v609 = vmul.f32 %v555, 0.1
  %v610 = vmul.f32 %v558, 0.1
  %v611 = vsel %vm561, %v498, %v586
  %v612 = vsel %vm562, %v500, %v587
  %v613 = vsel %vm563, %v503, %v588
  %v614 = vsel %vm564, %v505, %v589
  %v615 = vsel %vm565, %v508, %v590
  %v616 = vsel %vm566, %v510, %v591
  %v617 = vsel %vm567, %v513, %v592
  %v618 = vsel %vm568, %v515, %v593
  %v619 = vsel %vm569, %v518, %v594
  %v620 = vsel %vm570, %v520, %v595
  %v621 = vsel %vm571, %v523, %v596
  %v622 = vsel %vm572, %v525, %v597
  %v623 = vsel %vm573, %v528, %v598
  %v624 = vsel %vm574, %v530, %v599
  %v625 = vsel %vm575, %v533, %v600
  %v626 = vsel %vm576, %v535, %v601
  %v627 = vsel %vm577, %v538, %v602
  %v628 = vsel %vm578, %v540, %v603
  %v629 = vsel %vm579, %v543, %v604
  %v630 = vsel %vm580, %v545, %v605
  %v631 = vsel %vm581, %v548, %v606
  %v632 = vsel %vm582, %v550, %v607
  %v633 = vsel %vm583, %v553, %v608
  %v634 = vsel %vm584, %v555, %v609
  %v635 = vsel %vm585, %v558, %v610
  %v636 = vpack.c.bf16 %v612, %v611
  %v637 = vpack.c.bf16 %v614, %v613
  %v638 = vpack.c.bf16 %v616, %v615
  %v639 = vpack.c.bf16 %v618, %v617
  %v640 = vpack.c.bf16 %v620, %v619
  %v641 = vpack.c.bf16 %v622, %v621
  %v642 = vpack.c.bf16 %v624, %v623
  %v643 = vpack.c.bf16 %v626, %v625
  %v644 = vpack.c.bf16 %v628, %v627
  %v645 = vpack.c.bf16 %v630, %v629
  %v646 = vpack.c.bf16 %v632, %v631
  %v647 = vpack.c.bf16 %v634, %v633
  %v648 = vpack.c.bf16 %v635, %v635
  %v649 = vld [vmem:[%s5] sm:$0xf]
  %v650 = vld [vmem:[%s5 + $0x4] sm:$0xf]
  %v651 = vld [vmem:[%s5 + $0x8] sm:$0xf]
  %v652 = vld [vmem:[%s5 + $0xc] sm:$0xf]
  %v653 = vld [vmem:[%s6] sm:$0x1]
  %v655 = vperm.slane %v653, 0
  %v661 = vunpack.c.l.b16 %v649
  %v662 = vunpack.c.l.b16 %v650
  %v663 = vunpack.c.l.b16 %v651
  %v664 = vunpack.c.l.b16 %v652
  %v665 = vpack.c.b16 %v662, %v661
  %v666 = vpack.c.b16 %v664, %v663
  %v670 = vsel %vm448, %v636, 0
  %v673 = vsel %vm448, %v637, 0
  %v676 = vsel %vm448, %v638, 0
  %v679 = vsel %vm448, %v639, 0
  %v682 = vsel %vm448, %v640, 0
  %v685 = vsel %vm448, %v641, 0
  %v688 = vsel %vm448, %v642, 0
  %v691 = vsel %vm448, %v643, 0
  %v694 = vsel %vm448, %v644, 0
  %v697 = vsel %vm448, %v645, 0
  %v700 = vsel %vm448, %v646, 0
  %v703 = vsel %vm448, %v647, 0
  %v706 = vsel %vm448, %v648, 0
  %708 = vmatpush.bf16.msra.mxu0 0
  %709 = vmatpush.bf16.msra.mxu0 0
  %710 = vmatpush.bf16.msra.mxu0 0
  %711 = vmatpush.bf16.msra.mxu0 0
  %712 = vmatpush.bf16.msra.mxu0 0
  %713 = vmatpush.bf16.msra.mxu0 0
  %714 = vmatpush.bf16.msra.mxu0 %v666
  %715 = vmatpush.bf16.msra.mxu0 %v665
  %716 = vmatmul.bf16.gmra.mxu0 %v670
  %v717 = vpop.f32.mrf.mxu0
  %v718 = vadd.f32 %v655, %v717
  %v719 = vpop.f32.mrf.mxu0
  %v720 = vadd.f32 %v655, %v719
  %721 = vmatmul.bf16.gmra.mxu0 %v673
  %v722 = vpop.f32.mrf.mxu0
  %v723 = vadd.f32 %v655, %v722
  %v724 = vpop.f32.mrf.mxu0
  %v725 = vadd.f32 %v655, %v724
  %726 = vmatmul.bf16.gmra.mxu0 %v676
  %v727 = vpop.f32.mrf.mxu0
  %v728 = vadd.f32 %v655, %v727
  %v729 = vpop.f32.mrf.mxu0
  %v730 = vadd.f32 %v655, %v729
  %731 = vmatmul.bf16.gmra.mxu0 %v679
  %v732 = vpop.f32.mrf.mxu0
  %v733 = vadd.f32 %v655, %v732
  %v734 = vpop.f32.mrf.mxu0
  %v735 = vadd.f32 %v655, %v734
  %736 = vmatmul.bf16.gmra.mxu0 %v682
  %v737 = vpop.f32.mrf.mxu0
  %v738 = vadd.f32 %v655, %v737
  %v739 = vpop.f32.mrf.mxu0
  %v740 = vadd.f32 %v655, %v739
  %741 = vmatmul.bf16.gmra.mxu0 %v685
  %v742 = vpop.f32.mrf.mxu0
  %v743 = vadd.f32 %v655, %v742
  %v744 = vpop.f32.mrf.mxu0
  %v745 = vadd.f32 %v655, %v744
  %746 = vmatmul.bf16.gmra.mxu0 %v688
  %v747 = vpop.f32.mrf.mxu0
  %v748 = vadd.f32 %v655, %v747
  %v749 = vpop.f32.mrf.mxu0
  %v750 = vadd.f32 %v655, %v749
  %751 = vmatmul.bf16.gmra.mxu0 %v691
  %v752 = vpop.f32.mrf.mxu0
  %v753 = vadd.f32 %v655, %v752
  %v754 = vpop.f32.mrf.mxu0
  %v755 = vadd.f32 %v655, %v754
  %756 = vmatmul.bf16.gmra.mxu0 %v694
  %v757 = vpop.f32.mrf.mxu0
  %v758 = vadd.f32 %v655, %v757
  %v759 = vpop.f32.mrf.mxu0
  %v760 = vadd.f32 %v655, %v759
  %761 = vmatmul.bf16.gmra.mxu0 %v697
  %v762 = vpop.f32.mrf.mxu0
  %v763 = vadd.f32 %v655, %v762
  %v764 = vpop.f32.mrf.mxu0
  %v765 = vadd.f32 %v655, %v764
  %766 = vmatmul.bf16.gmra.mxu0 %v700
  %v767 = vpop.f32.mrf.mxu0
  %v768 = vadd.f32 %v655, %v767
  %v769 = vpop.f32.mrf.mxu0
  %v770 = vadd.f32 %v655, %v769
  %771 = vmatmul.bf16.gmra.mxu0 %v703
  %v772 = vpop.f32.mrf.mxu0
  %v773 = vadd.f32 %v655, %v772
  %v774 = vpop.f32.mrf.mxu0
  %v775 = vadd.f32 %v655, %v774
  %776 = vmatmul.bf16.gmra.mxu0 %v706
  %v777 = vpop.f32.mrf.mxu0
  %v778 = vadd.f32 %v655, %v777
  %v779 = vpop.f32.mrf.mxu0
  %780 = vdwg.mxu0
  %v781 = vpack.c.bf16 %v718, %v718
  %v782 = vpack.c.bf16 %v720, %v720
  %v783 = vpack.c.bf16 %v723, %v723
  %v784 = vpack.c.bf16 %v725, %v725
  %v785 = vpack.c.bf16 %v728, %v728
  %v786 = vpack.c.bf16 %v730, %v730
  %v787 = vpack.c.bf16 %v733, %v733
  %v788 = vpack.c.bf16 %v735, %v735
  %v789 = vpack.c.bf16 %v738, %v738
  %v790 = vpack.c.bf16 %v740, %v740
  %v791 = vpack.c.bf16 %v743, %v743
  %v792 = vpack.c.bf16 %v745, %v745
  %v793 = vpack.c.bf16 %v748, %v748
  %v794 = vpack.c.bf16 %v750, %v750
  %v795 = vpack.c.bf16 %v753, %v753
  %v796 = vpack.c.bf16 %v755, %v755
  %v797 = vpack.c.bf16 %v758, %v758
  %v798 = vpack.c.bf16 %v760, %v760
  %v799 = vpack.c.bf16 %v763, %v763
  %v800 = vpack.c.bf16 %v765, %v765
  %v801 = vpack.c.bf16 %v768, %v768
  %v802 = vpack.c.bf16 %v770, %v770
  %v803 = vpack.c.bf16 %v773, %v773
  %v804 = vpack.c.bf16 %v775, %v775
  %v805 = vpack.c.bf16 %v778, %v778
  %806 = vst [vmem:[%s8] sm:$0xf] %v781
  %807 = vst [vmem:[%s8 + $0x4] sm:$0xf] %v782
  %808 = vst [vmem:[%s8 + $0x8] sm:$0xf] %v783
  %809 = vst [vmem:[%s8 + $0xc] sm:$0xf] %v784
  %810 = vst [vmem:[%s8 + $0x10] sm:$0xf] %v785
  %811 = vst [vmem:[%s8 + $0x14] sm:$0xf] %v786
  %812 = vst [vmem:[%s8 + $0x18] sm:$0xf] %v787
  %813 = vst [vmem:[%s8 + $0x1c] sm:$0xf] %v788
  %814 = vst [vmem:[%s8 + $0x20] sm:$0xf] %v789
  %815 = vst [vmem:[%s8 + $0x24] sm:$0xf] %v790
  %816 = vst [vmem:[%s8 + $0x28] sm:$0xf] %v791
  %817 = vst [vmem:[%s8 + $0x2c] sm:$0xf] %v792
  %818 = vst [vmem:[%s8 + $0x30] sm:$0xf] %v793
  %819 = vst [vmem:[%s8 + $0x34] sm:$0xf] %v794
  %820 = vst [vmem:[%s8 + $0x38] sm:$0xf] %v795
  %821 = vst [vmem:[%s8 + $0x3c] sm:$0xf] %v796
  %822 = vst [vmem:[%s8 + $0x40] sm:$0xf] %v797
  %823 = vst [vmem:[%s8 + $0x44] sm:$0xf] %v798
  %824 = vst [vmem:[%s8 + $0x48] sm:$0xf] %v799
  %825 = vst [vmem:[%s8 + $0x4c] sm:$0xf] %v800
  %826 = vst [vmem:[%s8 + $0x50] sm:$0xf] %v801
  %827 = vst [vmem:[%s8 + $0x54] sm:$0xf] %v802
  %828 = vst [vmem:[%s8 + $0x58] sm:$0xf] %v803
  %829 = vst [vmem:[%s8 + $0x5c] sm:$0xf] %v804
  %830 = vst [vmem:[%s8 + $0x60] sm:$0xf] %v805
  // Predicated region
  $region30: #{kpcollider_forward.2} parent=0 // pred_check
    _
  $region31: #{kpcollider_forward.2} parent=0 // pred_check_branch
    %832 = sbr.rel (0) target = $region33
  $region32: #{kpcollider_forward.2} parent=0 // pred_region
    _
  $region33: #{kpcollider_forward.2} parent=0 // pred_fallthru
    _
  // Predicated region
  $region34: #{kpcollider_forward.2} parent=0 // pred_check
    _
  $region35: #{kpcollider_forward.2} parent=0 // pred_check_branch
    %834 = sbr.rel (0) target = $region37
  $region36: #{kpcollider_forward.2} parent=0 // pred_region
    _
  $region37: #{kpcollider_forward.2} parent=0 // pred_fallthru
    _
  // Predicated region
  $region38: #{kpcollider_forward.2} parent=0 // pred_check
    _
  $region39: #{kpcollider_forward.2} parent=0 // pred_check_branch
    %836 = sbr.rel (0) target = $region41
  $region40: #{kpcollider_forward.2} parent=0 // pred_region
    _
  $region41: #{kpcollider_forward.2} parent=0 // pred_fallthru
    _
  // Predicated region
  $region42: #{kpcollider_forward.2} parent=0 // pred_check
    _
  $region43: #{kpcollider_forward.2} parent=0 // pred_check_branch
    %838 = sbr.rel (0) target = $region45
  $region44: #{kpcollider_forward.2} parent=0 // pred_region
    _
  $region45: #{kpcollider_forward.2} parent=0 // pred_fallthru
    _

// kernel: kpcollider_forward.3
$region0: #{kpcollider_forward.3}
  #allocation0 [shape = 'u32[]', space=smem, size = 0x4, offset = 0x4, fixed_abs, tag = 'smem constant byte address 0x4 - core index']
  #allocation1 [shape = 'u32[72,128]{1,0:T(1,128)}', space=vmem, size = 0x9000, scoped, tag = 'internal scratch']
  #allocation2 [shape = 'f32[512,128]{1,0:T(8,128)}', space=vmem, size = 0x40000, scoped, tag = 'scratch operand']
  %s0 = inlined_call_operand.vmem [shape: bf16[512,32], index: 0, kind: input, shape index: {}]
  %s1 = inlined_call_operand.vmem [shape: bf16[32,32], index: 1, kind: input, shape index: {}]
  %s2 = inlined_call_operand.vmem [shape: f32[1,32], index: 2, kind: input, shape index: {}]
  %s3 = inlined_call_operand.vmem [shape: bf16[32,32], index: 3, kind: input, shape index: {}]
  %s4 = inlined_call_operand.vmem [shape: f32[1,32], index: 4, kind: input, shape index: {}]
  %s5 = inlined_call_operand.vmem [shape: bf16[32,128], index: 5, kind: input, shape index: {}]
  %s6 = inlined_call_operand.vmem [shape: f32[1,128], index: 6, kind: input, shape index: {}]
  %s7 = inlined_call_operand.vmem [shape: bf16[3,32,128], index: 7, kind: input, shape index: {}]
  %s8 = inlined_call_operand.vmem [shape: bf16[512,128], index: 8, kind: output, shape index: {}]
  %s9 = sld [smem:[#allocation0]]
  $region42: #{kpcollider_forward.3} parent=0
    _
  %s11 = ssub.s32 1, %s9
  %s12 = scalar_select 0, %s11, %s9
  // Predicated region
  $region2: #{kpcollider_forward.3} parent=0 // pred_check
    _
  $region3: #{kpcollider_forward.3} parent=0 // pred_check_branch
    %14 = sbr.rel (0) target = $region5
  $region4: #{kpcollider_forward.3} parent=0 // pred_region
    _
  $region5: #{kpcollider_forward.3} parent=0 // pred_fallthru
    _
  // Predicated region
  $region6: #{kpcollider_forward.3} parent=0 // pred_check
    _
  $region7: #{kpcollider_forward.3} parent=0 // pred_check_branch
    %16 = sbr.rel (0) target = $region9
  $region8: #{kpcollider_forward.3} parent=0 // pred_region
    _
  $region9: #{kpcollider_forward.3} parent=0 // pred_fallthru
    _
  // Predicated region
  $region10: #{kpcollider_forward.3} parent=0 // pred_check
    _
  $region11: #{kpcollider_forward.3} parent=0 // pred_check_branch
    %18 = sbr.rel (0) target = $region13
  $region12: #{kpcollider_forward.3} parent=0 // pred_region
    _
  $region13: #{kpcollider_forward.3} parent=0 // pred_fallthru
    _
  // Predicated region
  $region14: #{kpcollider_forward.3} parent=0 // pred_check
    _
  $region15: #{kpcollider_forward.3} parent=0 // pred_check_branch
    %20 = sbr.rel (0) target = $region17
  $region16: #{kpcollider_forward.3} parent=0 // pred_region
    _
  $region17: #{kpcollider_forward.3} parent=0 // pred_fallthru
    _
  // Predicated region
  $region18: #{kpcollider_forward.3} parent=0 // pred_check
    _
  $region19: #{kpcollider_forward.3} parent=0 // pred_check_branch
    %22 = sbr.rel (0) target = $region21
  $region20: #{kpcollider_forward.3} parent=0 // pred_region
    _
  $region21: #{kpcollider_forward.3} parent=0 // pred_fallthru
    _
  // Predicated region
  $region22: #{kpcollider_forward.3} parent=0 // pred_check
    _
  $region23: #{kpcollider_forward.3} parent=0 // pred_check_branch
    %24 = sbr.rel (0) target = $region25
  $region24: #{kpcollider_forward.3} parent=0 // pred_region
    _
  $region25: #{kpcollider_forward.3} parent=0 // pred_fallthru
    _
  // Predicated region
  $region26: #{kpcollider_forward.3} parent=0 // pred_check
    _
  $region27: #{kpcollider_forward.3} parent=0 // pred_check_branch
    %26 = sbr.rel (0) target = $region29
  $region28: #{kpcollider_forward.3} parent=0 // pred_region
    _
  $region29: #{kpcollider_forward.3} parent=0 // pred_fallthru
    _
  // Predicated region
  $region30: #{kpcollider_forward.3} parent=0 // pred_check
    _
  $region31: #{kpcollider_forward.3} parent=0 // pred_check_branch
    %28 = sbr.rel (0) target = $region33
  $region32: #{kpcollider_forward.3} parent=0 // pred_region
    _
  $region33: #{kpcollider_forward.3} parent=0 // pred_fallthru
    _
  %v30 = vld [vmem:[%s0] sm:$0xf]
  %v31 = vld [vmem:[%s0 + $0x4] sm:$0xf]
  %v32 = vld [vmem:[%s0 + $0x8] sm:$0xf]
  %v33 = vld [vmem:[%s0 + $0xc] sm:$0xf]
  %v34 = vld [vmem:[%s0 + $0x10] sm:$0xf]
  %v35 = vld [vmem:[%s0 + $0x14] sm:$0xf]
  %v36 = vld [vmem:[%s0 + $0x18] sm:$0xf]
  %v37 = vld [vmem:[%s0 + $0x1c] sm:$0xf]
  %v38 = vld [vmem:[%s0 + $0x20] sm:$0xf]
  %v39 = vld [vmem:[%s0 + $0x24] sm:$0xf]
  %v40 = vld [vmem:[%s0 + $0x28] sm:$0xf]
  %v41 = vld [vmem:[%s0 + $0x2c] sm:$0xf]
  %v42 = vld [vmem:[%s0 + $0x30] sm:$0xf]
  %v43 = vld [vmem:[%s0 + $0x34] sm:$0xf]
  %v44 = vld [vmem:[%s0 + $0x38] sm:$0xf]
  %v45 = vld [vmem:[%s0 + $0x3c] sm:$0xf]
  %v46 = vld [vmem:[%s0 + $0x40] sm:$0xf]
  %v47 = vld [vmem:[%s0 + $0x44] sm:$0xf]
  %v48 = vld [vmem:[%s0 + $0x48] sm:$0xf]
  %v49 = vld [vmem:[%s0 + $0x4c] sm:$0xf]
  %v50 = vld [vmem:[%s0 + $0x50] sm:$0xf]
  %v51 = vld [vmem:[%s0 + $0x54] sm:$0xf]
  %v52 = vld [vmem:[%s0 + $0x58] sm:$0xf]
  %v53 = vld [vmem:[%s0 + $0x5c] sm:$0xf]
  %v54 = vld [vmem:[%s0 + $0x60] sm:$0xf]
  %v55 = vld [vmem:[%s0 + $0x64] sm:$0xf]
  %v56 = vld [vmem:[%s0 + $0x68] sm:$0xf]
  %v57 = vld [vmem:[%s0 + $0x6c] sm:$0xf]
  %v58 = vld [vmem:[%s0 + $0x70] sm:$0xf]
  %v59 = vld [vmem:[%s0 + $0x74] sm:$0xf]
  %v60 = vld [vmem:[%s0 + $0x78] sm:$0xf]
  %v61 = vld [vmem:[%s0 + $0x7c] sm:$0xf]
  %v62 = vld [vmem:[%s0 + $0x80] sm:$0xf]
  %v63 = vld [vmem:[%s0 + $0x84] sm:$0xf]
  %v64 = vld [vmem:[%s0 + $0x88] sm:$0xf]
  %v65 = vld [vmem:[%s0 + $0x8c] sm:$0xf]
  %v66 = vld [vmem:[%s0 + $0x90] sm:$0xf]
  %v67 = vld [vmem:[%s0 + $0x94] sm:$0xf]
  %v68 = vld [vmem:[%s0 + $0x98] sm:$0xf]
  %v69 = vld [vmem:[%s0 + $0x9c] sm:$0xf]
  %v70 = vld [vmem:[%s0 + $0xa0] sm:$0xf]
  %v71 = vld [vmem:[%s0 + $0xa4] sm:$0xf]
  %v72 = vld [vmem:[%s0 + $0xa8] sm:$0xf]
  %v73 = vld [vmem:[%s0 + $0xac] sm:$0xf]
  %v74 = vld [vmem:[%s0 + $0xb0] sm:$0xf]
  %v75 = vld [vmem:[%s0 + $0xb4] sm:$0xf]
  %v76 = vld [vmem:[%s0 + $0xb8] sm:$0xf]
  %v77 = vld [vmem:[%s0 + $0xbc] sm:$0xf]
  %v78 = vld [vmem:[%s0 + $0xc0] sm:$0xf]
  %v79 = vld [vmem:[%s0 + $0xc4] sm:$0xf]
  %v80 = vld [vmem:[%s0 + $0xc8] sm:$0xf]
  %v81 = vld [vmem:[%s0 + $0xcc] sm:$0xf]
  %v82 = vld [vmem:[%s0 + $0xd0] sm:$0xf]
  %v83 = vld [vmem:[%s0 + $0xd4] sm:$0xf]
  %v84 = vld [vmem:[%s0 + $0xd8] sm:$0xf]
  %v85 = vld [vmem:[%s0 + $0xdc] sm:$0xf]
  %v86 = vld [vmem:[%s0 + $0xe0] sm:$0xf]
  %v87 = vld [vmem:[%s0 + $0xe4] sm:$0xf]
  %v88 = vld [vmem:[%s0 + $0xe8] sm:$0xf]
  %v89 = vld [vmem:[%s0 + $0xec] sm:$0xf]
  %v90 = vld [vmem:[%s0 + $0xf0] sm:$0xf]
  %v91 = vld [vmem:[%s0 + $0xf4] sm:$0xf]
  %v92 = vld [vmem:[%s0 + $0xf8] sm:$0xf]
  %v93 = vld [vmem:[%s0 + $0xfc] sm:$0xf]
  %v94 = vld [vmem:[%s1] sm:$0xf]
  %v95 = vld [vmem:[%s1 + $0x4] sm:$0xf]
  %v96 = vld [vmem:[%s1 + $0x8] sm:$0xf]
  %v97 = vld [vmem:[%s1 + $0xc] sm:$0xf]
  %v98 = vld [vmem:[%s2] sm:$0x1]
  %v100 = vperm.slane %v98, 0
  %v166 = vunpack.c.l.b16 %v30
  %v167 = vunpack.c.l.b16 %v31
  %v168 = vunpack.c.l.b16 %v32
  %v169 = vunpack.c.l.b16 %v33
  %v170 = vunpack.c.l.b16 %v34
  %v171 = vunpack.c.l.b16 %v35
  %v172 = vunpack.c.l.b16 %v36
  %v173 = vunpack.c.l.b16 %v37
  %v174 = vunpack.c.l.b16 %v38
  %v175 = vunpack.c.l.b16 %v39
  %v176 = vunpack.c.l.b16 %v40
  %v177 = vunpack.c.l.b16 %v41
  %v178 = vunpack.c.l.b16 %v42
  %v179 = vunpack.c.l.b16 %v43
  %v180 = vunpack.c.l.b16 %v44
  %v181 = vunpack.c.l.b16 %v45
  %v182 = vunpack.c.l.b16 %v46
  %v183 = vunpack.c.l.b16 %v47
  %v184 = vunpack.c.l.b16 %v48
  %v185 = vunpack.c.l.b16 %v49
  %v186 = vunpack.c.l.b16 %v50
  %v187 = vunpack.c.l.b16 %v51
  %v188 = vunpack.c.l.b16 %v52
  %v189 = vunpack.c.l.b16 %v53
  %v190 = vunpack.c.l.b16 %v54
  %v191 = vunpack.c.l.b16 %v55
  %v192 = vunpack.c.l.b16 %v56
  %v193 = vunpack.c.l.b16 %v57
  %v194 = vunpack.c.l.b16 %v58
  %v195 = vunpack.c.l.b16 %v59
  %v196 = vunpack.c.l.b16 %v60
  %v197 = vunpack.c.l.b16 %v61
  %v198 = vunpack.c.l.b16 %v62
  %v199 = vunpack.c.l.b16 %v63
  %v200 = vunpack.c.l.b16 %v64
  %v201 = vunpack.c.l.b16 %v65
  %v202 = vunpack.c.l.b16 %v66
  %v203 = vunpack.c.l.b16 %v67
  %v204 = vunpack.c.l.b16 %v68
  %v205 = vunpack.c.l.b16 %v69
  %v206 = vunpack.c.l.b16 %v70
  %v207 = vunpack.c.l.b16 %v71
  %v208 = vunpack.c.l.b16 %v72
  %v209 = vunpack.c.l.b16 %v73
  %v210 = vunpack.c.l.b16 %v74
  %v211 = vunpack.c.l.b16 %v75
  %v212 = vunpack.c.l.b16 %v76
  %v213 = vunpack.c.l.b16 %v77
  %v214 = vunpack.c.l.b16 %v78
  %v215 = vunpack.c.l.b16 %v79
  %v216 = vunpack.c.l.b16 %v80
  %v217 = vunpack.c.l.b16 %v81
  %v218 = vunpack.c.l.b16 %v82
  %v219 = vunpack.c.l.b16 %v83
  %v220 = vunpack.c.l.b16 %v84
  %v221 = vunpack.c.l.b16 %v85
  %v222 = vunpack.c.l.b16 %v86
  %v223 = vunpack.c.l.b16 %v87
  %v224 = vunpack.c.l.b16 %v88
  %v225 = vunpack.c.l.b16 %v89
  %v226 = vunpack.c.l.b16 %v90
  %v227 = vunpack.c.l.b16 %v91
  %v228 = vunpack.c.l.b16 %v92
  %v229 = vunpack.c.l.b16 %v93
  %v230 = vpack.c.b16 %v167, %v166
  %v231 = vpack.c.b16 %v169, %v168
  %v232 = vpack.c.b16 %v171, %v170
  %v233 = vpack.c.b16 %v173, %v172
  %v234 = vpack.c.b16 %v175, %v174
  %v235 = vpack.c.b16 %v177, %v176
  %v236 = vpack.c.b16 %v179, %v178
  %v237 = vpack.c.b16 %v181, %v180
  %v238 = vpack.c.b16 %v183, %v182
  %v239 = vpack.c.b16 %v185, %v184
  %v240 = vpack.c.b16 %v187, %v186
  %v241 = vpack.c.b16 %v189, %v188
  %v242 = vpack.c.b16 %v191, %v190
  %v243 = vpack.c.b16 %v193, %v192
  %v244 = vpack.c.b16 %v195, %v194
  %v245 = vpack.c.b16 %v197, %v196
  %v246 = vpack.c.b16 %v199, %v198
  %v247 = vpack.c.b16 %v201, %v200
  %v248 = vpack.c.b16 %v203, %v202
  %v249 = vpack.c.b16 %v205, %v204
  %v250 = vpack.c.b16 %v207, %v206
  %v251 = vpack.c.b16 %v209, %v208
  %v252 = vpack.c.b16 %v211, %v210
  %v253 = vpack.c.b16 %v213, %v212
  %v254 = vpack.c.b16 %v215, %v214
  %v255 = vpack.c.b16 %v217, %v216
  %v256 = vpack.c.b16 %v219, %v218
  %v257 = vpack.c.b16 %v221, %v220
  %v258 = vpack.c.b16 %v223, %v222
  %v259 = vpack.c.b16 %v225, %v224
  %v260 = vpack.c.b16 %v227, %v226
  %v261 = vpack.c.b16 %v229, %v228
  %v266 = vunpack.c.l.b16 %v94
  %v267 = vunpack.c.l.b16 %v95
  %v268 = vunpack.c.l.b16 %v96
  %v269 = vunpack.c.l.b16 %v97
  %v270 = vpack.c.b16 %v267, %v266
  %v271 = vpack.c.b16 %v269, %v268
  %vm274 = vcmask 261120
  %v276 = vsel %vm274, %v230, 0
  %v279 = vsel %vm274, %v231, 0
  %v282 = vsel %vm274, %v232, 0
  %v285 = vsel %vm274, %v233, 0
  %v288 = vsel %vm274, %v234, 0
  %v291 = vsel %vm274, %v235, 0
  %v294 = vsel %vm274, %v236, 0
  %v297 = vsel %vm274, %v237, 0
  %v300 = vsel %vm274, %v238, 0
  %v303 = vsel %vm274, %v239, 0
  %v306 = vsel %vm274, %v240, 0
  %v309 = vsel %vm274, %v241, 0
  %v312 = vsel %vm274, %v242, 0
  %v315 = vsel %vm274, %v243, 0
  %v318 = vsel %vm274, %v244, 0
  %v321 = vsel %vm274, %v245, 0
  %v324 = vsel %vm274, %v246, 0
  %v327 = vsel %vm274, %v247, 0
  %v330 = vsel %vm274, %v248, 0
  %v333 = vsel %vm274, %v249, 0
  %v336 = vsel %vm274, %v250, 0
  %v339 = vsel %vm274, %v251, 0
  %v342 = vsel %vm274, %v252, 0
  %v345 = vsel %vm274, %v253, 0
  %v348 = vsel %vm274, %v254, 0
  %v351 = vsel %vm274, %v255, 0
  %v354 = vsel %vm274, %v256, 0
  %v357 = vsel %vm274, %v257, 0
  %v360 = vsel %vm274, %v258, 0
  %v363 = vsel %vm274, %v259, 0
  %v366 = vsel %vm274, %v260, 0
  %v369 = vsel %vm274, %v261, 0
  %371 = vmatpush.bf16.msra.mxu0 0
  %372 = vmatpush.bf16.msra.mxu0 0
  %373 = vmatpush.bf16.msra.mxu0 0
  %374 = vmatpush.bf16.msra.mxu0 0
  %375 = vmatpush.bf16.msra.mxu0 0
  %376 = vmatpush.bf16.msra.mxu0 0
  %377 = vmatpush.bf16.msra.mxu0 %v271
  %378 = vmatpush.bf16.msra.mxu0 %v270
  %379 = vmatmul.bf16.gmra.mxu0 %v276
  %v380 = vpop.f32.mrf.mxu0
  %v381 = vadd.f32 %v100, %v380
  %v382 = vpop.f32.mrf.mxu0
  %v383 = vadd.f32 %v100, %v382
  %384 = vmatmul.bf16.gmra.mxu0 %v279
  %v385 = vpop.f32.mrf.mxu0
  %v386 = vadd.f32 %v100, %v385
  %v387 = vpop.f32.mrf.mxu0
  %v388 = vadd.f32 %v100, %v387
  %389 = vmatmul.bf16.gmra.mxu0 %v282
  %v390 = vpop.f32.mrf.mxu0
  %v391 = vadd.f32 %v100, %v390
  %v392 = vpop.f32.mrf.mxu0
  %v393 = vadd.f32 %v100, %v392
  %394 = vmatmul.bf16.gmra.mxu0 %v285
  %v395 = vpop.f32.mrf.mxu0
  %v396 = vadd.f32 %v100, %v395
  %v397 = vpop.f32.mrf.mxu0
  %v398 = vadd.f32 %v100, %v397
  %399 = vmatmul.bf16.gmra.mxu0 %v288
  %v400 = vpop.f32.mrf.mxu0
  %v401 = vadd.f32 %v100, %v400
  %v402 = vpop.f32.mrf.mxu0
  %v403 = vadd.f32 %v100, %v402
  %404 = vmatmul.bf16.gmra.mxu0 %v291
  %v405 = vpop.f32.mrf.mxu0
  %v406 = vadd.f32 %v100, %v405
  %v407 = vpop.f32.mrf.mxu0
  %v408 = vadd.f32 %v100, %v407
  %409 = vmatmul.bf16.gmra.mxu0 %v294
  %v410 = vpop.f32.mrf.mxu0
  %v411 = vadd.f32 %v100, %v410
  %v412 = vpop.f32.mrf.mxu0
  %v413 = vadd.f32 %v100, %v412
  %414 = vmatmul.bf16.gmra.mxu0 %v297
  %v415 = vpop.f32.mrf.mxu0
  %v416 = vadd.f32 %v100, %v415
  %v417 = vpop.f32.mrf.mxu0
  %v418 = vadd.f32 %v100, %v417
  %419 = vmatmul.bf16.gmra.mxu0 %v300
  %v420 = vpop.f32.mrf.mxu0
  %v421 = vadd.f32 %v100, %v420
  %v422 = vpop.f32.mrf.mxu0
  %v423 = vadd.f32 %v100, %v422
  %424 = vmatmul.bf16.gmra.mxu0 %v303
  %v425 = vpop.f32.mrf.mxu0
  %v426 = vadd.f32 %v100, %v425
  %v427 = vpop.f32.mrf.mxu0
  %v428 = vadd.f32 %v100, %v427
  %429 = vmatmul.bf16.gmra.mxu0 %v306
  %v430 = vpop.f32.mrf.mxu0
  %v431 = vadd.f32 %v100, %v430
  %v432 = vpop.f32.mrf.mxu0
  %v433 = vadd.f32 %v100, %v432
  %434 = vmatmul.bf16.gmra.mxu0 %v309
  %v435 = vpop.f32.mrf.mxu0
  %v436 = vadd.f32 %v100, %v435
  %v437 = vpop.f32.mrf.mxu0
  %v438 = vadd.f32 %v100, %v437
  %439 = vmatmul.bf16.gmra.mxu0 %v312
  %v440 = vpop.f32.mrf.mxu0
  %v441 = vadd.f32 %v100, %v440
  %v442 = vpop.f32.mrf.mxu0
  %v443 = vadd.f32 %v100, %v442
  %444 = vmatmul.bf16.gmra.mxu0 %v315
  %v445 = vpop.f32.mrf.mxu0
  %v446 = vadd.f32 %v100, %v445
  %v447 = vpop.f32.mrf.mxu0
  %v448 = vadd.f32 %v100, %v447
  %449 = vmatmul.bf16.gmra.mxu0 %v318
  %v450 = vpop.f32.mrf.mxu0
  %v451 = vadd.f32 %v100, %v450
  %v452 = vpop.f32.mrf.mxu0
  %v453 = vadd.f32 %v100, %v452
  %454 = vmatmul.bf16.gmra.mxu0 %v321
  %v455 = vpop.f32.mrf.mxu0
  %v456 = vadd.f32 %v100, %v455
  %v457 = vpop.f32.mrf.mxu0
  %v458 = vadd.f32 %v100, %v457
  %459 = vmatmul.bf16.gmra.mxu0 %v324
  %v460 = vpop.f32.mrf.mxu0
  %v461 = vadd.f32 %v100, %v460
  %v462 = vpop.f32.mrf.mxu0
  %v463 = vadd.f32 %v100, %v462
  %464 = vmatmul.bf16.gmra.mxu0 %v327
  %v465 = vpop.f32.mrf.mxu0
  %v466 = vadd.f32 %v100, %v465
  %v467 = vpop.f32.mrf.mxu0
  %v468 = vadd.f32 %v100, %v467
  %469 = vmatmul.bf16.gmra.mxu0 %v330
  %v470 = vpop.f32.mrf.mxu0
  %v471 = vadd.f32 %v100, %v470
  %v472 = vpop.f32.mrf.mxu0
  %v473 = vadd.f32 %v100, %v472
  %474 = vmatmul.bf16.gmra.mxu0 %v333
  %v475 = vpop.f32.mrf.mxu0
  %v476 = vadd.f32 %v100, %v475
  %v477 = vpop.f32.mrf.mxu0
  %v478 = vadd.f32 %v100, %v477
  %479 = vmatmul.bf16.gmra.mxu0 %v336
  %v480 = vpop.f32.mrf.mxu0
  %v481 = vadd.f32 %v100, %v480
  %v482 = vpop.f32.mrf.mxu0
  %v483 = vadd.f32 %v100, %v482
  %484 = vmatmul.bf16.gmra.mxu0 %v339
  %v485 = vpop.f32.mrf.mxu0
  %v486 = vadd.f32 %v100, %v485
  %v487 = vpop.f32.mrf.mxu0
  %v488 = vadd.f32 %v100, %v487
  %489 = vmatmul.bf16.gmra.mxu0 %v342
  %v490 = vpop.f32.mrf.mxu0
  %v491 = vadd.f32 %v100, %v490
  %v492 = vpop.f32.mrf.mxu0
  %v493 = vadd.f32 %v100, %v492
  %494 = vmatmul.bf16.gmra.mxu0 %v345
  %v495 = vpop.f32.mrf.mxu0
  %v496 = vadd.f32 %v100, %v495
  %v497 = vpop.f32.mrf.mxu0
  %v498 = vadd.f32 %v100, %v497
  %499 = vmatmul.bf16.gmra.mxu0 %v348
  %v500 = vpop.f32.mrf.mxu0
  %v501 = vadd.f32 %v100, %v500
  %v502 = vpop.f32.mrf.mxu0
  %v503 = vadd.f32 %v100, %v502
  %504 = vmatmul.bf16.gmra.mxu0 %v351
  %v505 = vpop.f32.mrf.mxu0
  %v506 = vadd.f32 %v100, %v505
  %v507 = vpop.f32.mrf.mxu0
  %v508 = vadd.f32 %v100, %v507
  %509 = vmatmul.bf16.gmra.mxu0 %v354
  %v510 = vpop.f32.mrf.mxu0
  %v511 = vadd.f32 %v100, %v510
  %v512 = vpop.f32.mrf.mxu0
  %v513 = vadd.f32 %v100, %v512
  %514 = vmatmul.bf16.gmra.mxu0 %v357
  %v515 = vpop.f32.mrf.mxu0
  %v516 = vadd.f32 %v100, %v515
  %v517 = vpop.f32.mrf.mxu0
  %v518 = vadd.f32 %v100, %v517
  %519 = vmatmul.bf16.gmra.mxu0 %v360
  %v520 = vpop.f32.mrf.mxu0
  %v521 = vadd.f32 %v100, %v520
  %v522 = vpop.f32.mrf.mxu0
  %v523 = vadd.f32 %v100, %v522
  %524 = vmatmul.bf16.gmra.mxu0 %v363
  %v525 = vpop.f32.mrf.mxu0
  %v526 = vadd.f32 %v100, %v525
  %v527 = vpop.f32.mrf.mxu0
  %v528 = vadd.f32 %v100, %v527
  %529 = vmatmul.bf16.gmra.mxu0 %v366
  %v530 = vpop.f32.mrf.mxu0
  %v531 = vadd.f32 %v100, %v530
  %v532 = vpop.f32.mrf.mxu0
  %v533 = vadd.f32 %v100, %v532
  %534 = vmatmul.bf16.gmra.mxu0 %v369
  %v535 = vpop.f32.mrf.mxu0
  %v536 = vadd.f32 %v100, %v535
  %v537 = vpop.f32.mrf.mxu0
  %v538 = vadd.f32 %v100, %v537
  %539 = vdwg.mxu0
  %vm540 = vcmp.ge.f32.partialorder %v381, 0.0
  %vm541 = vcmp.ge.f32.partialorder %v383, 0.0
  %vm542 = vcmp.ge.f32.partialorder %v386, 0.0
  %vm543 = vcmp.ge.f32.partialorder %v388, 0.0
  %vm544 = vcmp.ge.f32.partialorder %v391, 0.0
  %vm545 = vcmp.ge.f32.partialorder %v393, 0.0
  %vm546 = vcmp.ge.f32.partialorder %v396, 0.0
  %vm547 = vcmp.ge.f32.partialorder %v398, 0.0
  %vm548 = vcmp.ge.f32.partialorder %v401, 0.0
  %vm549 = vcmp.ge.f32.partialorder %v403, 0.0
  %vm550 = vcmp.ge.f32.partialorder %v406, 0.0
  %vm551 = vcmp.ge.f32.partialorder %v408, 0.0
  %vm552 = vcmp.ge.f32.partialorder %v411, 0.0
  %vm553 = vcmp.ge.f32.partialorder %v413, 0.0
  %vm554 = vcmp.ge.f32.partialorder %v416, 0.0
  %vm555 = vcmp.ge.f32.partialorder %v418, 0.0
  %vm556 = vcmp.ge.f32.partialorder %v421, 0.0
  %vm557 = vcmp.ge.f32.partialorder %v423, 0.0
  %vm558 = vcmp.ge.f32.partialorder %v426, 0.0
  %vm559 = vcmp.ge.f32.partialorder %v428, 0.0
  %vm560 = vcmp.ge.f32.partialorder %v431, 0.0
  %vm561 = vcmp.ge.f32.partialorder %v433, 0.0
  %vm562 = vcmp.ge.f32.partialorder %v436, 0.0
  %vm563 = vcmp.ge.f32.partialorder %v438, 0.0
  %vm564 = vcmp.ge.f32.partialorder %v441, 0.0
  %vm565 = vcmp.ge.f32.partialorder %v443, 0.0
  %vm566 = vcmp.ge.f32.partialorder %v446, 0.0
  %vm567 = vcmp.ge.f32.partialorder %v448, 0.0
  %vm568 = vcmp.ge.f32.partialorder %v451, 0.0
  %vm569 = vcmp.ge.f32.partialorder %v453, 0.0
  %vm570 = vcmp.ge.f32.partialorder %v456, 0.0
  %vm571 = vcmp.ge.f32.partialorder %v458, 0.0
  %vm572 = vcmp.ge.f32.partialorder %v461, 0.0
  %vm573 = vcmp.ge.f32.partialorder %v463, 0.0
  %vm574 = vcmp.ge.f32.partialorder %v466, 0.0
  %vm575 = vcmp.ge.f32.partialorder %v468, 0.0
  %vm576 = vcmp.ge.f32.partialorder %v471, 0.0
  %vm577 = vcmp.ge.f32.partialorder %v473, 0.0
  %vm578 = vcmp.ge.f32.partialorder %v476, 0.0
  %vm579 = vcmp.ge.f32.partialorder %v478, 0.0
  %vm580 = vcmp.ge.f32.partialorder %v481, 0.0
  %vm581 = vcmp.ge.f32.partialorder %v483, 0.0
  %vm582 = vcmp.ge.f32.partialorder %v486, 0.0
  %vm583 = vcmp.ge.f32.partialorder %v488, 0.0
  %vm584 = vcmp.ge.f32.partialorder %v491, 0.0
  %vm585 = vcmp.ge.f32.partialorder %v493, 0.0
  %vm586 = vcmp.ge.f32.partialorder %v496, 0.0
  %vm587 = vcmp.ge.f32.partialorder %v498, 0.0
  %vm588 = vcmp.ge.f32.partialorder %v501, 0.0
  %vm589 = vcmp.ge.f32.partialorder %v503, 0.0
  %vm590 = vcmp.ge.f32.partialorder %v506, 0.0
  %vm591 = vcmp.ge.f32.partialorder %v508, 0.0
  %vm592 = vcmp.ge.f32.partialorder %v511, 0.0
  %vm593 = vcmp.ge.f32.partialorder %v513, 0.0
  %vm594 = vcmp.ge.f32.partialorder %v516, 0.0
  %vm595 = vcmp.ge.f32.partialorder %v518, 0.0
  %vm596 = vcmp.ge.f32.partialorder %v521, 0.0
  %vm597 = vcmp.ge.f32.partialorder %v523, 0.0
  %vm598 = vcmp.ge.f32.partialorder %v526, 0.0
  %vm599 = vcmp.ge.f32.partialorder %v528, 0.0
  %vm600 = vcmp.ge.f32.partialorder %v531, 0.0
  %vm601 = vcmp.ge.f32.partialorder %v533, 0.0
  %vm602 = vcmp.ge.f32.partialorder %v536, 0.0
  %vm603 = vcmp.ge.f32.partialorder %v538, 0.0
  %v604 = vmul.f32 %v381, 0.1
  %v605 = vmul.f32 %v383, 0.1
  %v606 = vmul.f32 %v386, 0.1
  %v607 = vmul.f32 %v388, 0.1
  %v608 = vmul.f32 %v391, 0.1
  %v609 = vmul.f32 %v393, 0.1
  %v610 = vmul.f32 %v396, 0.1
  %v611 = vmul.f32 %v398, 0.1
  %v612 = vmul.f32 %v401, 0.1
  %v613 = vmul.f32 %v403, 0.1
  %v614 = vmul.f32 %v406, 0.1
  %v615 = vmul.f32 %v408, 0.1
  %v616 = vmul.f32 %v411, 0.1
  %v617 = vmul.f32 %v413, 0.1
  %v618 = vmul.f32 %v416, 0.1
  %v619 = vmul.f32 %v418, 0.1
  %v620 = vmul.f32 %v421, 0.1
  %v621 = vmul.f32 %v423, 0.1
  %v622 = vmul.f32 %v426, 0.1
  %v623 = vmul.f32 %v428, 0.1
  %v624 = vmul.f32 %v431, 0.1
  %v625 = vmul.f32 %v433, 0.1
  %v626 = vmul.f32 %v436, 0.1
  %v627 = vmul.f32 %v438, 0.1
  %v628 = vmul.f32 %v441, 0.1
  %v629 = vmul.f32 %v443, 0.1
  %v630 = vmul.f32 %v446, 0.1
  %v631 = vmul.f32 %v448, 0.1
  %v632 = vmul.f32 %v451, 0.1
  %v633 = vmul.f32 %v453, 0.1
  %v634 = vmul.f32 %v456, 0.1
  %v635 = vmul.f32 %v458, 0.1
  %v636 = vmul.f32 %v461, 0.1
  %v637 = vmul.f32 %v463, 0.1
  %v638 = vmul.f32 %v466, 0.1
  %v639 = vmul.f32 %v468, 0.1
  %v640 = vmul.f32 %v471, 0.1
  %v641 = vmul.f32 %v473, 0.1
  %v642 = vmul.f32 %v476, 0.1
  %v643 = vmul.f32 %v478, 0.1
  %v644 = vmul.f32 %v481, 0.1
  %v645 = vmul.f32 %v483, 0.1
  %v646 = vmul.f32 %v486, 0.1
  %v647 = vmul.f32 %v488, 0.1
  %v648 = vmul.f32 %v491, 0.1
  %v649 = vmul.f32 %v493, 0.1
  %v650 = vmul.f32 %v496, 0.1
  %v651 = vmul.f32 %v498, 0.1
  %v652 = vmul.f32 %v501, 0.1
  %v653 = vmul.f32 %v503, 0.1
  %v654 = vmul.f32 %v506, 0.1
  %v655 = vmul.f32 %v508, 0.1
  %v656 = vmul.f32 %v511, 0.1
  %v657 = vmul.f32 %v513, 0.1
  %v658 = vmul.f32 %v516, 0.1
  %v659 = vmul.f32 %v518, 0.1
  %v660 = vmul.f32 %v521, 0.1
  %v661 = vmul.f32 %v523, 0.1
  %v662 = vmul.f32 %v526, 0.1
  %v663 = vmul.f32 %v528, 0.1
  %v664 = vmul.f32 %v531, 0.1
  %v665 = vmul.f32 %v533, 0.1
  %v666 = vmul.f32 %v536, 0.1
  %v667 = vmul.f32 %v538, 0.1
  %v668 = vsel %vm540, %v381, %v604
  %v669 = vsel %vm541, %v383, %v605
  %v670 = vsel %vm542, %v386, %v606
  %v671 = vsel %vm543, %v388, %v607
  %v672 = vsel %vm544, %v391, %v608
  %v673 = vsel %vm545, %v393, %v609
  %v674 = vsel %vm546, %v396, %v610
  %v675 = vsel %vm547, %v398, %v611
  %v676 = vsel %vm548, %v401, %v612
  %v677 = vsel %vm549, %v403, %v613
  %v678 = vsel %vm550, %v406, %v614
  %v679 = vsel %vm551, %v408, %v615
  %v680 = vsel %vm552, %v411, %v616
  %v681 = vsel %vm553, %v413, %v617
  %v682 = vsel %vm554, %v416, %v618
  %v683 = vsel %vm555, %v418, %v619
  %v684 = vsel %vm556, %v421, %v620
  %v685 = vsel %vm557, %v423, %v621
  %v686 = vsel %vm558, %v426, %v622
  %v687 = vsel %vm559, %v428, %v623
  %v688 = vsel %vm560, %v431, %v624
  %v689 = vsel %vm561, %v433, %v625
  %v690 = vsel %vm562, %v436, %v626
  %v691 = vsel %vm563, %v438, %v627
  %v692 = vsel %vm564, %v441, %v628
  %v693 = vsel %vm565, %v443, %v629
  %v694 = vsel %vm566, %v446, %v630
  %v695 = vsel %vm567, %v448, %v631
  %v696 = vsel %vm568, %v451, %v632
  %v697 = vsel %vm569, %v453, %v633
  %v698 = vsel %vm570, %v456, %v634
  %v699 = vsel %vm571, %v458, %v635
  %v700 = vsel %vm572, %v461, %v636
  %v701 = vsel %vm573, %v463, %v637
  %v702 = vsel %vm574, %v466, %v638
  %v703 = vsel %vm575, %v468, %v639
  %v704 = vsel %vm576, %v471, %v640
  %v705 = vsel %vm577, %v473, %v641
  %v706 = vsel %vm578, %v476, %v642
  %v707 = vsel %vm579, %v478, %v643
  %v708 = vsel %vm580, %v481, %v644
  %v709 = vsel %vm581, %v483, %v645
  %v710 = vsel %vm582, %v486, %v646
  %v711 = vsel %vm583, %v488, %v647
  %v712 = vsel %vm584, %v491, %v648
  %v713 = vsel %vm585, %v493, %v649
  %v714 = vsel %vm586, %v496, %v650
  %v715 = vsel %vm587, %v498, %v651
  %v716 = vsel %vm588, %v501, %v652
  %v717 = vsel %vm589, %v503, %v653
  %v718 = vsel %vm590, %v506, %v654
  %v719 = vsel %vm591, %v508, %v655
  %v720 = vsel %vm592, %v511, %v656
  %v721 = vsel %vm593, %v513, %v657
  %v722 = vsel %vm594, %v516, %v658
  %v723 = vsel %vm595, %v518, %v659
  %v724 = vsel %vm596, %v521, %v660
  %v725 = vsel %vm597, %v523, %v661
  %v726 = vsel %vm598, %v526, %v662
  %v727 = vsel %vm599, %v528, %v663
  %v728 = vsel %vm600, %v531, %v664
  %v729 = vsel %vm601, %v533, %v665
  %v730 = vsel %vm602, %v536, %v666
  %v731 = vsel %vm603, %v538, %v667
  %v732 = vpack.c.bf16 %v669, %v668
  %v733 = vpack.c.bf16 %v671, %v670
  %v734 = vpack.c.bf16 %v673, %v672
  %v735 = vpack.c.bf16 %v675, %v674
  %v736 = vpack.c.bf16 %v677, %v676
  %v737 = vpack.c.bf16 %v679, %v678
  %v738 = vpack.c.bf16 %v681, %v680
  %v739 = vpack.c.bf16 %v683, %v682
  %v740 = vpack.c.bf16 %v685, %v684
  %v741 = vpack.c.bf16 %v687, %v686
  %v742 = vpack.c.bf16 %v689, %v688
  %v743 = vpack.c.bf16 %v691, %v690
  %v744 = vpack.c.bf16 %v693, %v692
  %v745 = vpack.c.bf16 %v695, %v694
  %v746 = vpack.c.bf16 %v697, %v696
  %v747 = vpack.c.bf16 %v699, %v698
  %v748 = vpack.c.bf16 %v701, %v700
  %v749 = vpack.c.bf16 %v703, %v702
  %v750 = vpack.c.bf16 %v705, %v704
  %v751 = vpack.c.bf16 %v707, %v706
  %v752 = vpack.c.bf16 %v709, %v708
  %v753 = vpack.c.bf16 %v711, %v710
  %v754 = vpack.c.bf16 %v713, %v712
  %v755 = vpack.c.bf16 %v715, %v714
  %v756 = vpack.c.bf16 %v717, %v716
  %v757 = vpack.c.bf16 %v719, %v718
  %v758 = vpack.c.bf16 %v721, %v720
  %v759 = vpack.c.bf16 %v723, %v722
  %v760 = vpack.c.bf16 %v725, %v724
  %v761 = vpack.c.bf16 %v727, %v726
  %v762 = vpack.c.bf16 %v729, %v728
  %v763 = vpack.c.bf16 %v731, %v730
  %v764 = vld [vmem:[%s5] sm:$0xf]
  %v765 = vld [vmem:[%s5 + $0x4] sm:$0xf]
  %v766 = vld [vmem:[%s5 + $0x8] sm:$0xf]
  %v767 = vld [vmem:[%s5 + $0xc] sm:$0xf]
  %v768 = vld [vmem:[%s6] sm:$0x1]
  %v770 = vperm.slane %v768, 0
  %v776 = vunpack.c.l.b16 %v764
  %v777 = vunpack.c.l.b16 %v765
  %v778 = vunpack.c.l.b16 %v766
  %v779 = vunpack.c.l.b16 %v767
  %v780 = vpack.c.b16 %v777, %v776
  %v781 = vpack.c.b16 %v779, %v778
  %v785 = vsel %vm274, %v732, 0
  %v788 = vsel %vm274, %v733, 0
  %v791 = vsel %vm274, %v734, 0
  %v794 = vsel %vm274, %v735, 0
  %v797 = vsel %vm274, %v736, 0
  %v800 = vsel %vm274, %v737, 0
  %v803 = vsel %vm274, %v738, 0
  %v806 = vsel %vm274, %v739, 0
  %v809 = vsel %vm274, %v740, 0
  %v812 = vsel %vm274, %v741, 0
  %v815 = vsel %vm274, %v742, 0
  %v818 = vsel %vm274, %v743, 0
  %v821 = vsel %vm274, %v744, 0
  %v824 = vsel %vm274, %v745, 0
  %v827 = vsel %vm274, %v746, 0
  %v830 = vsel %vm274, %v747, 0
  %v833 = vsel %vm274, %v748, 0
  %v836 = vsel %vm274, %v749, 0
  %v839 = vsel %vm274, %v750, 0
  %v842 = vsel %vm274, %v751, 0
  %v845 = vsel %vm274, %v752, 0
  %v848 = vsel %vm274, %v753, 0
  %v851 = vsel %vm274, %v754, 0
  %v854 = vsel %vm274, %v755, 0
  %v857 = vsel %vm274, %v756, 0
  %v860 = vsel %vm274, %v757, 0
  %v863 = vsel %vm274, %v758, 0
  %v866 = vsel %vm274, %v759, 0
  %v869 = vsel %vm274, %v760, 0
  %v872 = vsel %vm274, %v761, 0
  %v875 = vsel %vm274, %v762, 0
  %v878 = vsel %vm274, %v763, 0
  %880 = vmatpush.bf16.msra.mxu0 0
  %881 = vmatpush.bf16.msra.mxu0 0
  %882 = vmatpush.bf16.msra.mxu0 0
  %883 = vmatpush.bf16.msra.mxu0 0
  %884 = vmatpush.bf16.msra.mxu0 0
  %885 = vmatpush.bf16.msra.mxu0 0
  %886 = vmatpush.bf16.msra.mxu0 %v781
  %887 = vmatpush.bf16.msra.mxu0 %v780
  %888 = vmatmul.bf16.gmra.mxu0 %v785
  %v889 = vpop.f32.mrf.mxu0
  %v890 = vadd.f32 %v770, %v889
  %v891 = vpop.f32.mrf.mxu0
  %v892 = vadd.f32 %v770, %v891
  %893 = vmatmul.bf16.gmra.mxu0 %v788
  %v894 = vpop.f32.mrf.mxu0
  %v895 = vadd.f32 %v770, %v894
  %v896 = vpop.f32.mrf.mxu0
  %v897 = vadd.f32 %v770, %v896
  %898 = vmatmul.bf16.gmra.mxu0 %v791
  %v899 = vpop.f32.mrf.mxu0
  %v900 = vadd.f32 %v770, %v899
  %v901 = vpop.f32.mrf.mxu0
  %v902 = vadd.f32 %v770, %v901
  %903 = vmatmul.bf16.gmra.mxu0 %v794
  %v904 = vpop.f32.mrf.mxu0
  %v905 = vadd.f32 %v770, %v904
  %v906 = vpop.f32.mrf.mxu0
  %v907 = vadd.f32 %v770, %v906
  %908 = vmatmul.bf16.gmra.mxu0 %v797
  %v909 = vpop.f32.mrf.mxu0
  %v910 = vadd.f32 %v770, %v909
  %v911 = vpop.f32.mrf.mxu0
  %v912 = vadd.f32 %v770, %v911
  %913 = vmatmul.bf16.gmra.mxu0 %v800
  %v914 = vpop.f32.mrf.mxu0
  %v915 = vadd.f32 %v770, %v914
  %v916 = vpop.f32.mrf.mxu0
  %v917 = vadd.f32 %v770, %v916
  %918 = vmatmul.bf16.gmra.mxu0 %v803
  %v919 = vpop.f32.mrf.mxu0
  %v920 = vadd.f32 %v770, %v919
  %v921 = vpop.f32.mrf.mxu0
  %v922 = vadd.f32 %v770, %v921
  %923 = vmatmul.bf16.gmra.mxu0 %v806
  %v924 = vpop.f32.mrf.mxu0
  %v925 = vadd.f32 %v770, %v924
  %v926 = vpop.f32.mrf.mxu0
  %v927 = vadd.f32 %v770, %v926
  %928 = vmatmul.bf16.gmra.mxu0 %v809
  %v929 = vpop.f32.mrf.mxu0
  %v930 = vadd.f32 %v770, %v929
  %v931 = vpop.f32.mrf.mxu0
  %v932 = vadd.f32 %v770, %v931
  %933 = vmatmul.bf16.gmra.mxu0 %v812
  %v934 = vpop.f32.mrf.mxu0
  %v935 = vadd.f32 %v770, %v934
  %v936 = vpop.f32.mrf.mxu0
  %v937 = vadd.f32 %v770, %v936
  %938 = vmatmul.bf16.gmra.mxu0 %v815
  %v939 = vpop.f32.mrf.mxu0
  %v940 = vadd.f32 %v770, %v939
  %v941 = vpop.f32.mrf.mxu0
  %v942 = vadd.f32 %v770, %v941
  %943 = vmatmul.bf16.gmra.mxu0 %v818
  %v944 = vpop.f32.mrf.mxu0
  %v945 = vadd.f32 %v770, %v944
  %v946 = vpop.f32.mrf.mxu0
  %v947 = vadd.f32 %v770, %v946
  %948 = vmatmul.bf16.gmra.mxu0 %v821
  %v949 = vpop.f32.mrf.mxu0
  %v950 = vadd.f32 %v770, %v949
  %v951 = vpop.f32.mrf.mxu0
  %v952 = vadd.f32 %v770, %v951
  %953 = vmatmul.bf16.gmra.mxu0 %v824
  %v954 = vpop.f32.mrf.mxu0
  %v955 = vadd.f32 %v770, %v954
  %v956 = vpop.f32.mrf.mxu0
  %v957 = vadd.f32 %v770, %v956
  %958 = vmatmul.bf16.gmra.mxu0 %v827
  %v959 = vpop.f32.mrf.mxu0
  %v960 = vadd.f32 %v770, %v959
  %v961 = vpop.f32.mrf.mxu0
  %v962 = vadd.f32 %v770, %v961
  %963 = vmatmul.bf16.gmra.mxu0 %v830
  %v964 = vpop.f32.mrf.mxu0
  %v965 = vadd.f32 %v770, %v964
  %v966 = vpop.f32.mrf.mxu0
  %v967 = vadd.f32 %v770, %v966
  %968 = vmatmul.bf16.gmra.mxu0 %v833
  %v969 = vpop.f32.mrf.mxu0
  %v970 = vadd.f32 %v770, %v969
  %v971 = vpop.f32.mrf.mxu0
  %v972 = vadd.f32 %v770, %v971
  %973 = vmatmul.bf16.gmra.mxu0 %v836
  %v974 = vpop.f32.mrf.mxu0
  %v975 = vadd.f32 %v770, %v974
  %v976 = vpop.f32.mrf.mxu0
  %v977 = vadd.f32 %v770, %v976
  %978 = vmatmul.bf16.gmra.mxu0 %v839
  %v979 = vpop.f32.mrf.mxu0
  %v980 = vadd.f32 %v770, %v979
  %v981 = vpop.f32.mrf.mxu0
  %v982 = vadd.f32 %v770, %v981
  %983 = vmatmul.bf16.gmra.mxu0 %v842
  %v984 = vpop.f32.mrf.mxu0
  %v985 = vadd.f32 %v770, %v984
  %v986 = vpop.f32.mrf.mxu0
  %v987 = vadd.f32 %v770, %v986
  %988 = vmatmul.bf16.gmra.mxu0 %v845
  %v989 = vpop.f32.mrf.mxu0
  %v990 = vadd.f32 %v770, %v989
  %v991 = vpop.f32.mrf.mxu0
  %v992 = vadd.f32 %v770, %v991
  %993 = vmatmul.bf16.gmra.mxu0 %v848
  %v994 = vpop.f32.mrf.mxu0
  %v995 = vadd.f32 %v770, %v994
  %v996 = vpop.f32.mrf.mxu0
  %v997 = vadd.f32 %v770, %v996
  %998 = vmatmul.bf16.gmra.mxu0 %v851
  %v999 = vpop.f32.mrf.mxu0
  %v1000 = vadd.f32 %v770, %v999
  %v1001 = vpop.f32.mrf.mxu0
  %v1002 = vadd.f32 %v770, %v1001
  %1003 = vmatmul.bf16.gmra.mxu0 %v854
  %v1004 = vpop.f32.mrf.mxu0
  %v1005 = vadd.f32 %v770, %v1004
  %v1006 = vpop.f32.mrf.mxu0
  %v1007 = vadd.f32 %v770, %v1006
  %1008 = vmatmul.bf16.gmra.mxu0 %v857
  %v1009 = vpop.f32.mrf.mxu0
  %v1010 = vadd.f32 %v770, %v1009
  %v1011 = vpop.f32.mrf.mxu0
  %v1012 = vadd.f32 %v770, %v1011
  %1013 = vmatmul.bf16.gmra.mxu0 %v860
  %v1014 = vpop.f32.mrf.mxu0
  %v1015 = vadd.f32 %v770, %v1014
  %v1016 = vpop.f32.mrf.mxu0
  %v1017 = vadd.f32 %v770, %v1016
  %1018 = vmatmul.bf16.gmra.mxu0 %v863
  %v1019 = vpop.f32.mrf.mxu0
  %v1020 = vadd.f32 %v770, %v1019
  %v1021 = vpop.f32.mrf.mxu0
  %v1022 = vadd.f32 %v770, %v1021
  %1023 = vmatmul.bf16.gmra.mxu0 %v866
  %v1024 = vpop.f32.mrf.mxu0
  %v1025 = vadd.f32 %v770, %v1024
  %v1026 = vpop.f32.mrf.mxu0
  %v1027 = vadd.f32 %v770, %v1026
  %1028 = vmatmul.bf16.gmra.mxu0 %v869
  %v1029 = vpop.f32.mrf.mxu0
  %v1030 = vadd.f32 %v770, %v1029
  %v1031 = vpop.f32.mrf.mxu0
  %v1032 = vadd.f32 %v770, %v1031
  %1033 = vmatmul.bf16.gmra.mxu0 %v872
  %v1034 = vpop.f32.mrf.mxu0
  %v1035 = vadd.f32 %v770, %v1034
  %v1036 = vpop.f32.mrf.mxu0
  %v1037 = vadd.f32 %v770, %v1036
  %1038 = vmatmul.bf16.gmra.mxu0 %v875
  %v1039 = vpop.f32.mrf.mxu0
  %v1040 = vadd.f32 %v770, %v1039
  %v1041 = vpop.f32.mrf.mxu0
  %v1042 = vadd.f32 %v770, %v1041
  %1043 = vmatmul.bf16.gmra.mxu0 %v878
  %v1044 = vpop.f32.mrf.mxu0
  %v1045 = vadd.f32 %v770, %v1044
  %v1046 = vpop.f32.mrf.mxu0
  %v1047 = vadd.f32 %v770, %v1046
  %1048 = vdwg.mxu0
  %1049 = vst [vmem:[#allocation2] sm:$0xff] %v890
  %1050 = vst [vmem:[#allocation2 + $0x8] sm:$0xff] %v892
  %1051 = vst [vmem:[#allocation2 + $0x10] sm:$0xff] %v895
  %1052 = vst [vmem:[#allocation2 + $0x18] sm:$0xff] %v897
  %1053 = vst [vmem:[#allocation2 + $0x20] sm:$0xff] %v900
  %1054 = vst [vmem:[#allocation2 + $0x28] sm:$0xff] %v902
  %1055 = vst [vmem:[#allocation2 + $0x30] sm:$0xff] %v905
  %1056 = vst [vmem:[#allocation2 + $0x38] sm:$0xff] %v907
  %1057 = vst [vmem:[#allocation2 + $0x40] sm:$0xff] %v910
  %1058 = vst [vmem:[#allocation2 + $0x48] sm:$0xff] %v912
  %1059 = vst [vmem:[#allocation2 + $0x50] sm:$0xff] %v915
  %1060 = vst [vmem:[#allocation2 + $0x58] sm:$0xff] %v917
  %1061 = vst [vmem:[#allocation2 + $0x60] sm:$0xff] %v920
  %1062 = vst [vmem:[#allocation2 + $0x68] sm:$0xff] %v922
  %1063 = vst [vmem:[#allocation2 + $0x70] sm:$0xff] %v925
  %1064 = vst [vmem:[#allocation2 + $0x78] sm:$0xff] %v927
  %1065 = vst [vmem:[#allocation2 + $0x80] sm:$0xff] %v930
  %1066 = vst [vmem:[#allocation2 + $0x88] sm:$0xff] %v932
  %1067 = vst [vmem:[#allocation2 + $0x90] sm:$0xff] %v935
  %1068 = vst [vmem:[#allocation2 + $0x98] sm:$0xff] %v937
  %1069 = vst [vmem:[#allocation2 + $0xa0] sm:$0xff] %v940
  %1070 = vst [vmem:[#allocation2 + $0xa8] sm:$0xff] %v942
  %1071 = vst [vmem:[#allocation2 + $0xb0] sm:$0xff] %v945
  %1072 = vst [vmem:[#allocation2 + $0xb8] sm:$0xff] %v947
  %1073 = vst [vmem:[#allocation2 + $0xc0] sm:$0xff] %v950
  %1074 = vst [vmem:[#allocation2 + $0xc8] sm:$0xff] %v952
  %1075 = vst [vmem:[#allocation2 + $0xd0] sm:$0xff] %v955
  %1076 = vst [vmem:[#allocation2 + $0xd8] sm:$0xff] %v957
  %1077 = vst [vmem:[#allocation2 + $0xe0] sm:$0xff] %v960
  %1078 = vst [vmem:[#allocation2 + $0xe8] sm:$0xff] %v962
  %1079 = vst [vmem:[#allocation2 + $0xf0] sm:$0xff] %v965
  %1080 = vst [vmem:[#allocation2 + $0xf8] sm:$0xff] %v967
  %1081 = vst [vmem:[#allocation2 + $0x100] sm:$0xff] %v970
  %1082 = vst [vmem:[#allocation2 + $0x108] sm:$0xff] %v972
  %1083 = vst [vmem:[#allocation2 + $0x110] sm:$0xff] %v975
  %1084 = vst [vmem:[#allocation2 + $0x118] sm:$0xff] %v977
  %1085 = vst [vmem:[#allocation2 + $0x120] sm:$0xff] %v980
  %1086 = vst [vmem:[#allocation2 + $0x128] sm:$0xff] %v982
  %1087 = vst [vmem:[#allocation2 + $0x130] sm:$0xff] %v985
  %1088 = vst [vmem:[#allocation2 + $0x138] sm:$0xff] %v987
  %1089 = vst [vmem:[#allocation2 + $0x140] sm:$0xff] %v990
  %1090 = vst [vmem:[#allocation2 + $0x148] sm:$0xff] %v992
  %1091 = vst [vmem:[#allocation2 + $0x150] sm:$0xff] %v995
  %1092 = vst [vmem:[#allocation2 + $0x158] sm:$0xff] %v997
  %1093 = vst [vmem:[#allocation2 + $0x160] sm:$0xff] %v1000
  %1094 = vst [vmem:[#allocation2 + $0x168] sm:$0xff] %v1002
  %1095 = vst [vmem:[#allocation2 + $0x170] sm:$0xff] %v1005
  %1096 = vst [vmem:[#allocation2 + $0x178] sm:$0xff] %v1007
  %1097 = vst [vmem:[#allocation2 + $0x180] sm:$0xff] %v1010
  %1098 = vst [vmem:[#allocation2 + $0x188] sm:$0xff] %v1012
  %1099 = vst [vmem:[#allocation2 + $0x190] sm:$0xff] %v1015
  %1100 = vst [vmem:[#allocation2 + $0x198] sm:$0xff] %v1017
  %1101 = vst [vmem:[#allocation2 + $0x1a0] sm:$0xff] %v1020
  %1102 = vst [vmem:[#allocation2 + $0x1a8] sm:$0xff] %v1022
  %1103 = vst [vmem:[#allocation2 + $0x1b0] sm:$0xff] %v1025
  %1104 = vst [vmem:[#allocation2 + $0x1b8] sm:$0xff] %v1027
  %1105 = vst [vmem:[#allocation2 + $0x1c0] sm:$0xff] %v1030
  %1106 = vst [vmem:[#allocation2 + $0x1c8] sm:$0xff] %v1032
  %1107 = vst [vmem:[#allocation2 + $0x1d0] sm:$0xff] %v1035
  %1108 = vst [vmem:[#allocation2 + $0x1d8] sm:$0xff] %v1037
  %1109 = vst [vmem:[#allocation2 + $0x1e0] sm:$0xff] %v1040
  %1110 = vst [vmem:[#allocation2 + $0x1e8] sm:$0xff] %v1042
  %1111 = vst [vmem:[#allocation2 + $0x1f0] sm:$0xff] %v1045
  %1112 = vst [vmem:[#allocation2 + $0x1f8] sm:$0xff] %v1047
  %v1113 = vld [vmem:[%s3] sm:$0xf]
  %v1114 = vld [vmem:[%s3 + $0x4] sm:$0xf]
  %v1115 = vld [vmem:[%s3 + $0x8] sm:$0xf]
  %v1116 = vld [vmem:[%s3 + $0xc] sm:$0xf]
  %v1117 = vld [vmem:[%s4] sm:$0x1]
  %v1119 = vperm.slane %v1117, 0
  %v1125 = vunpack.c.l.b16 %v1113
  %v1126 = vunpack.c.l.b16 %v1114
  %v1127 = vunpack.c.l.b16 %v1115
  %v1128 = vunpack.c.l.b16 %v1116
  %v1129 = vpack.c.b16 %v1126, %v1125
  %v1130 = vpack.c.b16 %v1128, %v1127
  %1133 = vmatpush.bf16.msra.mxu0 0
  %1134 = vmatpush.bf16.msra.mxu0 0
  %1135 = vmatpush.bf16.msra.mxu0 0
  %1136 = vmatpush.bf16.msra.mxu0 0
  %1137 = vmatpush.bf16.msra.mxu0 0
  %1138 = vmatpush.bf16.msra.mxu0 0
  %1139 = vmatpush.bf16.msra.mxu0 %v1130
  %1140 = vmatpush.bf16.msra.mxu0 %v1129
  %1141 = vmatmul.bf16.gmra.mxu0 %v785
  %v1142 = vpop.f32.mrf.mxu0
  %v1143 = vadd.f32 %v1119, %v1142
  %v1144 = vpop.f32.mrf.mxu0
  %v1145 = vadd.f32 %v1119, %v1144
  %1146 = vmatmul.bf16.gmra.mxu0 %v788
  %v1147 = vpop.f32.mrf.mxu0
  %v1148 = vadd.f32 %v1119, %v1147
  %v1149 = vpop.f32.mrf.mxu0
  %v1150 = vadd.f32 %v1119, %v1149
  %1151 = vmatmul.bf16.gmra.mxu0 %v791
  %v1152 = vpop.f32.mrf.mxu0
  %v1153 = vadd.f32 %v1119, %v1152
  %v1154 = vpop.f32.mrf.mxu0
  %v1155 = vadd.f32 %v1119, %v1154
  %1156 = vmatmul.bf16.gmra.mxu0 %v794
  %v1157 = vpop.f32.mrf.mxu0
  %v1158 = vadd.f32 %v1119, %v1157
  %v1159 = vpop.f32.mrf.mxu0
  %v1160 = vadd.f32 %v1119, %v1159
  %1161 = vmatmul.bf16.gmra.mxu0 %v797
  %v1162 = vpop.f32.mrf.mxu0
  %v1163 = vadd.f32 %v1119, %v1162
  %v1164 = vpop.f32.mrf.mxu0
  %v1165 = vadd.f32 %v1119, %v1164
  %1166 = vmatmul.bf16.gmra.mxu0 %v800
  %v1167 = vpop.f32.mrf.mxu0
  %v1168 = vadd.f32 %v1119, %v1167
  %v1169 = vpop.f32.mrf.mxu0
  %v1170 = vadd.f32 %v1119, %v1169
  %1171 = vmatmul.bf16.gmra.mxu0 %v803
  %v1172 = vpop.f32.mrf.mxu0
  %v1173 = vadd.f32 %v1119, %v1172
  %v1174 = vpop.f32.mrf.mxu0
  %v1175 = vadd.f32 %v1119, %v1174
  %1176 = vmatmul.bf16.gmra.mxu0 %v806
  %v1177 = vpop.f32.mrf.mxu0
  %v1178 = vadd.f32 %v1119, %v1177
  %v1179 = vpop.f32.mrf.mxu0
  %v1180 = vadd.f32 %v1119, %v1179
  %1181 = vmatmul.bf16.gmra.mxu0 %v809
  %v1182 = vpop.f32.mrf.mxu0
  %v1183 = vadd.f32 %v1119, %v1182
  %v1184 = vpop.f32.mrf.mxu0
  %v1185 = vadd.f32 %v1119, %v1184
  %1186 = vmatmul.bf16.gmra.mxu0 %v812
  %v1187 = vpop.f32.mrf.mxu0
  %v1188 = vadd.f32 %v1119, %v1187
  %v1189 = vpop.f32.mrf.mxu0
  %v1190 = vadd.f32 %v1119, %v1189
  %1191 = vmatmul.bf16.gmra.mxu0 %v815
  %v1192 = vpop.f32.mrf.mxu0
  %v1193 = vadd.f32 %v1119, %v1192
  %v1194 = vpop.f32.mrf.mxu0
  %v1195 = vadd.f32 %v1119, %v1194
  %1196 = vmatmul.bf16.gmra.mxu0 %v818
  %v1197 = vpop.f32.mrf.mxu0
  %v1198 = vadd.f32 %v1119, %v1197
  %v1199 = vpop.f32.mrf.mxu0
  %v1200 = vadd.f32 %v1119, %v1199
  %1201 = vmatmul.bf16.gmra.mxu0 %v821
  %v1202 = vpop.f32.mrf.mxu0
  %v1203 = vadd.f32 %v1119, %v1202
  %v1204 = vpop.f32.mrf.mxu0
  %v1205 = vadd.f32 %v1119, %v1204
  %1206 = vmatmul.bf16.gmra.mxu0 %v824
  %v1207 = vpop.f32.mrf.mxu0
  %v1208 = vadd.f32 %v1119, %v1207
  %v1209 = vpop.f32.mrf.mxu0
  %v1210 = vadd.f32 %v1119, %v1209
  %1211 = vmatmul.bf16.gmra.mxu0 %v827
  %v1212 = vpop.f32.mrf.mxu0
  %v1213 = vadd.f32 %v1119, %v1212
  %v1214 = vpop.f32.mrf.mxu0
  %v1215 = vadd.f32 %v1119, %v1214
  %1216 = vmatmul.bf16.gmra.mxu0 %v830
  %v1217 = vpop.f32.mrf.mxu0
  %v1218 = vadd.f32 %v1119, %v1217
  %v1219 = vpop.f32.mrf.mxu0
  %v1220 = vadd.f32 %v1119, %v1219
  %1221 = vmatmul.bf16.gmra.mxu0 %v833
  %v1222 = vpop.f32.mrf.mxu0
  %v1223 = vadd.f32 %v1119, %v1222
  %v1224 = vpop.f32.mrf.mxu0
  %v1225 = vadd.f32 %v1119, %v1224
  %1226 = vmatmul.bf16.gmra.mxu0 %v836
  %v1227 = vpop.f32.mrf.mxu0
  %v1228 = vadd.f32 %v1119, %v1227
  %v1229 = vpop.f32.mrf.mxu0
  %v1230 = vadd.f32 %v1119, %v1229
  %1231 = vmatmul.bf16.gmra.mxu0 %v839
  %v1232 = vpop.f32.mrf.mxu0
  %v1233 = vadd.f32 %v1119, %v1232
  %v1234 = vpop.f32.mrf.mxu0
  %v1235 = vadd.f32 %v1119, %v1234
  %1236 = vmatmul.bf16.gmra.mxu0 %v842
  %v1237 = vpop.f32.mrf.mxu0
  %v1238 = vadd.f32 %v1119, %v1237
  %v1239 = vpop.f32.mrf.mxu0
  %v1240 = vadd.f32 %v1119, %v1239
  %1241 = vmatmul.bf16.gmra.mxu0 %v845
  %v1242 = vpop.f32.mrf.mxu0
  %v1243 = vadd.f32 %v1119, %v1242
  %v1244 = vpop.f32.mrf.mxu0
  %v1245 = vadd.f32 %v1119, %v1244
  %1246 = vmatmul.bf16.gmra.mxu0 %v848
  %v1247 = vpop.f32.mrf.mxu0
  %v1248 = vadd.f32 %v1119, %v1247
  %v1249 = vpop.f32.mrf.mxu0
  %v1250 = vadd.f32 %v1119, %v1249
  %1251 = vmatmul.bf16.gmra.mxu0 %v851
  %v1252 = vpop.f32.mrf.mxu0
  %v1253 = vadd.f32 %v1119, %v1252
  %v1254 = vpop.f32.mrf.mxu0
  %v1255 = vadd.f32 %v1119, %v1254
  %1256 = vmatmul.bf16.gmra.mxu0 %v854
  %v1257 = vpop.f32.mrf.mxu0
  %v1258 = vadd.f32 %v1119, %v1257
  %v1259 = vpop.f32.mrf.mxu0
  %v1260 = vadd.f32 %v1119, %v1259
  %1261 = vmatmul.bf16.gmra.mxu0 %v857
  %v1262 = vpop.f32.mrf.mxu0
  %v1263 = vadd.f32 %v1119, %v1262
  %v1264 = vpop.f32.mrf.mxu0
  %v1265 = vadd.f32 %v1119, %v1264
  %1266 = vmatmul.bf16.gmra.mxu0 %v860
  %v1267 = vpop.f32.mrf.mxu0
  %v1268 = vadd.f32 %v1119, %v1267
  %v1269 = vpop.f32.mrf.mxu0
  %v1270 = vadd.f32 %v1119, %v1269
  %1271 = vmatmul.bf16.gmra.mxu0 %v863
  %v1272 = vpop.f32.mrf.mxu0
  %v1273 = vadd.f32 %v1119, %v1272
  %v1274 = vpop.f32.mrf.mxu0
  %v1275 = vadd.f32 %v1119, %v1274
  %1276 = vmatmul.bf16.gmra.mxu0 %v866
  %v1277 = vpop.f32.mrf.mxu0
  %v1278 = vadd.f32 %v1119, %v1277
  %v1279 = vpop.f32.mrf.mxu0
  %v1280 = vadd.f32 %v1119, %v1279
  %1281 = vmatmul.bf16.gmra.mxu0 %v869
  %v1282 = vpop.f32.mrf.mxu0
  %v1283 = vadd.f32 %v1119, %v1282
  %v1284 = vpop.f32.mrf.mxu0
  %v1285 = vadd.f32 %v1119, %v1284
  %1286 = vmatmul.bf16.gmra.mxu0 %v872
  %v1287 = vpop.f32.mrf.mxu0
  %v1288 = vadd.f32 %v1119, %v1287
  %v1289 = vpop.f32.mrf.mxu0
  %v1290 = vadd.f32 %v1119, %v1289
  %1291 = vmatmul.bf16.gmra.mxu0 %v875
  %v1292 = vpop.f32.mrf.mxu0
  %v1293 = vadd.f32 %v1119, %v1292
  %v1294 = vpop.f32.mrf.mxu0
  %v1295 = vadd.f32 %v1119, %v1294
  %1296 = vmatmul.bf16.gmra.mxu0 %v878
  %v1297 = vpop.f32.mrf.mxu0
  %v1298 = vadd.f32 %v1119, %v1297
  %v1299 = vpop.f32.mrf.mxu0
  %v1300 = vadd.f32 %v1119, %v1299
  %1301 = vdwg.mxu0
  %vm1302 = vcmp.ge.f32.partialorder %v1143, 0.0
  %vm1303 = vcmp.ge.f32.partialorder %v1145, 0.0
  %vm1304 = vcmp.ge.f32.partialorder %v1148, 0.0
  %vm1305 = vcmp.ge.f32.partialorder %v1150, 0.0
  %vm1306 = vcmp.ge.f32.partialorder %v1153, 0.0
  %vm1307 = vcmp.ge.f32.partialorder %v1155, 0.0
  %vm1308 = vcmp.ge.f32.partialorder %v1158, 0.0
  %vm1309 = vcmp.ge.f32.partialorder %v1160, 0.0
  %vm1310 = vcmp.ge.f32.partialorder %v1163, 0.0
  %vm1311 = vcmp.ge.f32.partialorder %v1165, 0.0
  %vm1312 = vcmp.ge.f32.partialorder %v1168, 0.0
  %vm1313 = vcmp.ge.f32.partialorder %v1170, 0.0
  %vm1314 = vcmp.ge.f32.partialorder %v1173, 0.0
  %vm1315 = vcmp.ge.f32.partialorder %v1175, 0.0
  %vm1316 = vcmp.ge.f32.partialorder %v1178, 0.0
  %vm1317 = vcmp.ge.f32.partialorder %v1180, 0.0
  %vm1318 = vcmp.ge.f32.partialorder %v1183, 0.0
  %vm1319 = vcmp.ge.f32.partialorder %v1185, 0.0
  %vm1320 = vcmp.ge.f32.partialorder %v1188, 0.0
  %vm1321 = vcmp.ge.f32.partialorder %v1190, 0.0
  %vm1322 = vcmp.ge.f32.partialorder %v1193, 0.0
  %vm1323 = vcmp.ge.f32.partialorder %v1195, 0.0
  %vm1324 = vcmp.ge.f32.partialorder %v1198, 0.0
  %vm1325 = vcmp.ge.f32.partialorder %v1200, 0.0
  %vm1326 = vcmp.ge.f32.partialorder %v1203, 0.0
  %vm1327 = vcmp.ge.f32.partialorder %v1205, 0.0
  %vm1328 = vcmp.ge.f32.partialorder %v1208, 0.0
  %vm1329 = vcmp.ge.f32.partialorder %v1210, 0.0
  %vm1330 = vcmp.ge.f32.partialorder %v1213, 0.0
  %vm1331 = vcmp.ge.f32.partialorder %v1215, 0.0
  %vm1332 = vcmp.ge.f32.partialorder %v1218, 0.0
  %vm1333 = vcmp.ge.f32.partialorder %v1220, 0.0
  %vm1334 = vcmp.ge.f32.partialorder %v1223, 0.0
  %vm1335 = vcmp.ge.f32.partialorder %v1225, 0.0
  %vm1336 = vcmp.ge.f32.partialorder %v1228, 0.0
  %vm1337 = vcmp.ge.f32.partialorder %v1230, 0.0
  %vm1338 = vcmp.ge.f32.partialorder %v1233, 0.0
  %vm1339 = vcmp.ge.f32.partialorder %v1235, 0.0
  %vm1340 = vcmp.ge.f32.partialorder %v1238, 0.0
  %vm1341 = vcmp.ge.f32.partialorder %v1240, 0.0
  %vm1342 = vcmp.ge.f32.partialorder %v1243, 0.0
  %vm1343 = vcmp.ge.f32.partialorder %v1245, 0.0
  %vm1344 = vcmp.ge.f32.partialorder %v1248, 0.0
  %vm1345 = vcmp.ge.f32.partialorder %v1250, 0.0
  %vm1346 = vcmp.ge.f32.partialorder %v1253, 0.0
  %vm1347 = vcmp.ge.f32.partialorder %v1255, 0.0
  %vm1348 = vcmp.ge.f32.partialorder %v1258, 0.0
  %vm1349 = vcmp.ge.f32.partialorder %v1260, 0.0
  %vm1350 = vcmp.ge.f32.partialorder %v1263, 0.0
  %vm1351 = vcmp.ge.f32.partialorder %v1265, 0.0
  %vm1352 = vcmp.ge.f32.partialorder %v1268, 0.0
  %vm1353 = vcmp.ge.f32.partialorder %v1270, 0.0
  %vm1354 = vcmp.ge.f32.partialorder %v1273, 0.0
  %vm1355 = vcmp.ge.f32.partialorder %v1275, 0.0
  %vm1356 = vcmp.ge.f32.partialorder %v1278, 0.0
  %vm1357 = vcmp.ge.f32.partialorder %v1280, 0.0
  %vm1358 = vcmp.ge.f32.partialorder %v1283, 0.0
  %vm1359 = vcmp.ge.f32.partialorder %v1285, 0.0
  %vm1360 = vcmp.ge.f32.partialorder %v1288, 0.0
  %vm1361 = vcmp.ge.f32.partialorder %v1290, 0.0
  %vm1362 = vcmp.ge.f32.partialorder %v1293, 0.0
  %vm1363 = vcmp.ge.f32.partialorder %v1295, 0.0
  %vm1364 = vcmp.ge.f32.partialorder %v1298, 0.0
  %vm1365 = vcmp.ge.f32.partialorder %v1300, 0.0
  %v1366 = vmul.f32 %v1143, 0.1
  %v1367 = vmul.f32 %v1145, 0.1
  %v1368 = vmul.f32 %v1148, 0.1
  %v1369 = vmul.f32 %v1150, 0.1
  %v1370 = vmul.f32 %v1153, 0.1
  %v1371 = vmul.f32 %v1155, 0.1
  %v1372 = vmul.f32 %v1158, 0.1
  %v1373 = vmul.f32 %v1160, 0.1
  %v1374 = vmul.f32 %v1163, 0.1
  %v1375 = vmul.f32 %v1165, 0.1
  %v1376 = vmul.f32 %v1168, 0.1
  %v1377 = vmul.f32 %v1170, 0.1
  %v1378 = vmul.f32 %v1173, 0.1
  %v1379 = vmul.f32 %v1175, 0.1
  %v1380 = vmul.f32 %v1178, 0.1
  %v1381 = vmul.f32 %v1180, 0.1
  %v1382 = vmul.f32 %v1183, 0.1
  %v1383 = vmul.f32 %v1185, 0.1
  %v1384 = vmul.f32 %v1188, 0.1
  %v1385 = vmul.f32 %v1190, 0.1
  %v1386 = vmul.f32 %v1193, 0.1
  %v1387 = vmul.f32 %v1195, 0.1
  %v1388 = vmul.f32 %v1198, 0.1
  %v1389 = vmul.f32 %v1200, 0.1
  %v1390 = vmul.f32 %v1203, 0.1
  %v1391 = vmul.f32 %v1205, 0.1
  %v1392 = vmul.f32 %v1208, 0.1
  %v1393 = vmul.f32 %v1210, 0.1
  %v1394 = vmul.f32 %v1213, 0.1
  %v1395 = vmul.f32 %v1215, 0.1
  %v1396 = vmul.f32 %v1218, 0.1
  %v1397 = vmul.f32 %v1220, 0.1
  %v1398 = vmul.f32 %v1223, 0.1
  %v1399 = vmul.f32 %v1225, 0.1
  %v1400 = vmul.f32 %v1228, 0.1
  %v1401 = vmul.f32 %v1230, 0.1
  %v1402 = vmul.f32 %v1233, 0.1
  %v1403 = vmul.f32 %v1235, 0.1
  %v1404 = vmul.f32 %v1238, 0.1
  %v1405 = vmul.f32 %v1240, 0.1
  %v1406 = vmul.f32 %v1243, 0.1
  %v1407 = vmul.f32 %v1245, 0.1
  %v1408 = vmul.f32 %v1248, 0.1
  %v1409 = vmul.f32 %v1250, 0.1
  %v1410 = vmul.f32 %v1253, 0.1
  %v1411 = vmul.f32 %v1255, 0.1
  %v1412 = vmul.f32 %v1258, 0.1
  %v1413 = vmul.f32 %v1260, 0.1
  %v1414 = vmul.f32 %v1263, 0.1
  %v1415 = vmul.f32 %v1265, 0.1
  %v1416 = vmul.f32 %v1268, 0.1
  %v1417 = vmul.f32 %v1270, 0.1
  %v1418 = vmul.f32 %v1273, 0.1
  %v1419 = vmul.f32 %v1275, 0.1
  %v1420 = vmul.f32 %v1278, 0.1
  %v1421 = vmul.f32 %v1280, 0.1
  %v1422 = vmul.f32 %v1283, 0.1
  %v1423 = vmul.f32 %v1285, 0.1
  %v1424 = vmul.f32 %v1288, 0.1
  %v1425 = vmul.f32 %v1290, 0.1
  %v1426 = vmul.f32 %v1293, 0.1
  %v1427 = vmul.f32 %v1295, 0.1
  %v1428 = vmul.f32 %v1298, 0.1
  %v1429 = vmul.f32 %v1300, 0.1
  %v1430 = vsel %vm1302, %v1143, %v1366
  %v1431 = vsel %vm1303, %v1145, %v1367
  %v1432 = vsel %vm1304, %v1148, %v1368
  %v1433 = vsel %vm1305, %v1150, %v1369
  %v1434 = vsel %vm1306, %v1153, %v1370
  %v1435 = vsel %vm1307, %v1155, %v1371
  %v1436 = vsel %vm1308, %v1158, %v1372
  %v1437 = vsel %vm1309, %v1160, %v1373
  %v1438 = vsel %vm1310, %v1163, %v1374
  %v1439 = vsel %vm1311, %v1165, %v1375
  %v1440 = vsel %vm1312, %v1168, %v1376
  %v1441 = vsel %vm1313, %v1170, %v1377
  %v1442 = vsel %vm1314, %v1173, %v1378
  %v1443 = vsel %vm1315, %v1175, %v1379
  %v1444 = vsel %vm1316, %v1178, %v1380
  %v1445 = vsel %vm1317, %v1180, %v1381
  %v1446 = vsel %vm1318, %v1183, %v1382
  %v1447 = vsel %vm1319, %v1185, %v1383
  %v1448 = vsel %vm1320, %v1188, %v1384
  %v1449 = vsel %vm1321, %v1190, %v1385
  %v1450 = vsel %vm1322, %v1193, %v1386
  %v1451 = vsel %vm1323, %v1195, %v1387
  %v1452 = vsel %vm1324, %v1198, %v1388
  %v1453 = vsel %vm1325, %v1200, %v1389
  %v1454 = vsel %vm1326, %v1203, %v1390
  %v1455 = vsel %vm1327, %v1205, %v1391
  %v1456 = vsel %vm1328, %v1208, %v1392
  %v1457 = vsel %vm1329, %v1210, %v1393
  %v1458 = vsel %vm1330, %v1213, %v1394
  %v1459 = vsel %vm1331, %v1215, %v1395
  %v1460 = vsel %vm1332, %v1218, %v1396
  %v1461 = vsel %vm1333, %v1220, %v1397
  %v1462 = vsel %vm1334, %v1223, %v1398
  %v1463 = vsel %vm1335, %v1225, %v1399
  %v1464 = vsel %vm1336, %v1228, %v1400
  %v1465 = vsel %vm1337, %v1230, %v1401
  %v1466 = vsel %vm1338, %v1233, %v1402
  %v1467 = vsel %vm1339, %v1235, %v1403
  %v1468 = vsel %vm1340, %v1238, %v1404
  %v1469 = vsel %vm1341, %v1240, %v1405
  %v1470 = vsel %vm1342, %v1243, %v1406
  %v1471 = vsel %vm1343, %v1245, %v1407
  %v1472 = vsel %vm1344, %v1248, %v1408
  %v1473 = vsel %vm1345, %v1250, %v1409
  %v1474 = vsel %vm1346, %v1253, %v1410
  %v1475 = vsel %vm1347, %v1255, %v1411
  %v1476 = vsel %vm1348, %v1258, %v1412
  %v1477 = vsel %vm1349, %v1260, %v1413
  %v1478 = vsel %vm1350, %v1263, %v1414
  %v1479 = vsel %vm1351, %v1265, %v1415
  %v1480 = vsel %vm1352, %v1268, %v1416
  %v1481 = vsel %vm1353, %v1270, %v1417
  %v1482 = vsel %vm1354, %v1273, %v1418
  %v1483 = vsel %vm1355, %v1275, %v1419
  %v1484 = vsel %vm1356, %v1278, %v1420
  %v1485 = vsel %vm1357, %v1280, %v1421
  %v1486 = vsel %vm1358, %v1283, %v1422
  %v1487 = vsel %vm1359, %v1285, %v1423
  %v1488 = vsel %vm1360, %v1288, %v1424
  %v1489 = vsel %vm1361, %v1290, %v1425
  %v1490 = vsel %vm1362, %v1293, %v1426
  %v1491 = vsel %vm1363, %v1295, %v1427
  %v1492 = vsel %vm1364, %v1298, %v1428
  %v1493 = vsel %vm1365, %v1300, %v1429
  %v1494 = vadd.f32 %v668, %v1430
  %v1495 = vadd.f32 %v669, %v1431
  %v1496 = vadd.f32 %v670, %v1432
  %v1497 = vadd.f32 %v671, %v1433
  %v1498 = vadd.f32 %v672, %v1434
  %v1499 = vadd.f32 %v673, %v1435
  %v1500 = vadd.f32 %v674, %v1436
  %v1501 = vadd.f32 %v675, %v1437
  %v1502 = vadd.f32 %v676, %v1438
  %v1503 = vadd.f32 %v677, %v1439
  %v1504 = vadd.f32 %v678, %v1440
  %v1505 = vadd.f32 %v679, %v1441
  %v1506 = vadd.f32 %v680, %v1442
  %v1507 = vadd.f32 %v681, %v1443
  %v1508 = vadd.f32 %v682, %v1444
  %v1509 = vadd.f32 %v683, %v1445
  %v1510 = vadd.f32 %v684, %v1446
  %v1511 = vadd.f32 %v685, %v1447
  %v1512 = vadd.f32 %v686, %v1448
  %v1513 = vadd.f32 %v687, %v1449
  %v1514 = vadd.f32 %v688, %v1450
  %v1515 = vadd.f32 %v689, %v1451
  %v1516 = vadd.f32 %v690, %v1452
  %v1517 = vadd.f32 %v691, %v1453
  %v1518 = vadd.f32 %v692, %v1454
  %v1519 = vadd.f32 %v693, %v1455
  %v1520 = vadd.f32 %v694, %v1456
  %v1521 = vadd.f32 %v695, %v1457
  %v1522 = vadd.f32 %v696, %v1458
  %v1523 = vadd.f32 %v697, %v1459
  %v1524 = vadd.f32 %v698, %v1460
  %v1525 = vadd.f32 %v699, %v1461
  %v1526 = vadd.f32 %v700, %v1462
  %v1527 = vadd.f32 %v701, %v1463
  %v1528 = vadd.f32 %v702, %v1464
  %v1529 = vadd.f32 %v703, %v1465
  %v1530 = vadd.f32 %v704, %v1466
  %v1531 = vadd.f32 %v705, %v1467
  %v1532 = vadd.f32 %v706, %v1468
  %v1533 = vadd.f32 %v707, %v1469
  %v1534 = vadd.f32 %v708, %v1470
  %v1535 = vadd.f32 %v709, %v1471
  %v1536 = vadd.f32 %v710, %v1472
  %v1537 = vadd.f32 %v711, %v1473
  %v1538 = vadd.f32 %v712, %v1474
  %v1539 = vadd.f32 %v713, %v1475
  %v1540 = vadd.f32 %v714, %v1476
  %v1541 = vadd.f32 %v715, %v1477
  %v1542 = vadd.f32 %v716, %v1478
  %v1543 = vadd.f32 %v717, %v1479
  %v1544 = vadd.f32 %v718, %v1480
  %v1545 = vadd.f32 %v719, %v1481
  %v1546 = vadd.f32 %v720, %v1482
  %v1547 = vadd.f32 %v721, %v1483
  %v1548 = vadd.f32 %v722, %v1484
  %v1549 = vadd.f32 %v723, %v1485
  %v1550 = vadd.f32 %v724, %v1486
  %v1551 = vadd.f32 %v725, %v1487
  %v1552 = vadd.f32 %v726, %v1488
  %v1553 = vadd.f32 %v727, %v1489
  %v1554 = vadd.f32 %v728, %v1490
  %v1555 = vadd.f32 %v729, %v1491
  %v1556 = vadd.f32 %v730, %v1492
  %v1557 = vadd.f32 %v731, %v1493
  %v1558 = vld [vmem:[#allocation2] sm:$0xff]
  %v1559 = vld [vmem:[#allocation2 + $0x8] sm:$0xff]
  %v1560 = vld [vmem:[#allocation2 + $0x10] sm:$0xff]
  %v1561 = vld [vmem:[#allocation2 + $0x18] sm:$0xff]
  %v1562 = vld [vmem:[#allocation2 + $0x20] sm:$0xff]
  %v1563 = vld [vmem:[#allocation2 + $0x28] sm:$0xff]
  %v1564 = vld [vmem:[#allocation2 + $0x30] sm:$0xff]
  %v1565 = vld [vmem:[#allocation2 + $0x38] sm:$0xff]
  %v1566 = vld [vmem:[#allocation2 + $0x40] sm:$0xff]
  %v1567 = vld [vmem:[#allocation2 + $0x48] sm:$0xff]
  %v1568 = vld [vmem:[#allocation2 + $0x50] sm:$0xff]
  %v1569 = vld [vmem:[#allocation2 + $0x58] sm:$0xff]
  %v1570 = vld [vmem:[#allocation2 + $0x60] sm:$0xff]
  %v1571 = vld [vmem:[#allocation2 + $0x68] sm:$0xff]
  %v1572 = vld [vmem:[#allocation2 + $0x70] sm:$0xff]
  %v1573 = vld [vmem:[#allocation2 + $0x78] sm:$0xff]
  %v1574 = vld [vmem:[#allocation2 + $0x80] sm:$0xff]
  %v1575 = vld [vmem:[#allocation2 + $0x88] sm:$0xff]
  %v1576 = vld [vmem:[#allocation2 + $0x90] sm:$0xff]
  %v1577 = vld [vmem:[#allocation2 + $0x98] sm:$0xff]
  %v1578 = vld [vmem:[#allocation2 + $0xa0] sm:$0xff]
  %v1579 = vld [vmem:[#allocation2 + $0xa8] sm:$0xff]
  %v1580 = vld [vmem:[#allocation2 + $0xb0] sm:$0xff]
  %v1581 = vld [vmem:[#allocation2 + $0xb8] sm:$0xff]
  %v1582 = vld [vmem:[#allocation2 + $0xc0] sm:$0xff]
  %v1583 = vld [vmem:[#allocation2 + $0xc8] sm:$0xff]
  %v1584 = vld [vmem:[#allocation2 + $0xd0] sm:$0xff]
  %v1585 = vld [vmem:[#allocation2 + $0xd8] sm:$0xff]
  %v1586 = vld [vmem:[#allocation2 + $0xe0] sm:$0xff]
  %v1587 = vld [vmem:[#allocation2 + $0xe8] sm:$0xff]
  %v1588 = vld [vmem:[#allocation2 + $0xf0] sm:$0xff]
  %v1589 = vld [vmem:[#allocation2 + $0xf8] sm:$0xff]
  %v1590 = vld [vmem:[#allocation2 + $0x100] sm:$0xff]
  %v1591 = vld [vmem:[#allocation2 + $0x108] sm:$0xff]
  %v1592 = vld [vmem:[#allocation2 + $0x110] sm:$0xff]
  %v1593 = vld [vmem:[#allocation2 + $0x118] sm:$0xff]
  %v1594 = vld [vmem:[#allocation2 + $0x120] sm:$0xff]
  %v1595 = vld [vmem:[#allocation2 + $0x128] sm:$0xff]
  %v1596 = vld [vmem:[#allocation2 + $0x130] sm:$0xff]
  %v1597 = vld [vmem:[#allocation2 + $0x138] sm:$0xff]
  %v1598 = vld [vmem:[#allocation2 + $0x140] sm:$0xff]
  %v1599 = vld [vmem:[#allocation2 + $0x148] sm:$0xff]
  %v1600 = vld [vmem:[#allocation2 + $0x150] sm:$0xff]
  %v1601 = vld [vmem:[#allocation2 + $0x158] sm:$0xff]
  %v1602 = vld [vmem:[#allocation2 + $0x160] sm:$0xff]
  %v1603 = vld [vmem:[#allocation2 + $0x168] sm:$0xff]
  %v1604 = vld [vmem:[#allocation2 + $0x170] sm:$0xff]
  %v1605 = vld [vmem:[#allocation2 + $0x178] sm:$0xff]
  %v1606 = vld [vmem:[#allocation2 + $0x180] sm:$0xff]
  %v1607 = vld [vmem:[#allocation2 + $0x188] sm:$0xff]
  %v1608 = vld [vmem:[#allocation2 + $0x190] sm:$0xff]
  %v1609 = vld [vmem:[#allocation2 + $0x198] sm:$0xff]
  %v1610 = vld [vmem:[#allocation2 + $0x1a0] sm:$0xff]
  %v1611 = vld [vmem:[#allocation2 + $0x1a8] sm:$0xff]
  %v1612 = vld [vmem:[#allocation2 + $0x1b0] sm:$0xff]
  %v1613 = vld [vmem:[#allocation2 + $0x1b8] sm:$0xff]
  %v1614 = vld [vmem:[#allocation2 + $0x1c0] sm:$0xff]
  %v1615 = vld [vmem:[#allocation2 + $0x1c8] sm:$0xff]
  %v1616 = vld [vmem:[#allocation2 + $0x1d0] sm:$0xff]
  %v1617 = vld [vmem:[#allocation2 + $0x1d8] sm:$0xff]
  %v1618 = vld [vmem:[#allocation2 + $0x1e0] sm:$0xff]
  %v1619 = vld [vmem:[#allocation2 + $0x1e8] sm:$0xff]
  %v1620 = vld [vmem:[#allocation2 + $0x1f0] sm:$0xff]
  %v1621 = vld [vmem:[#allocation2 + $0x1f8] sm:$0xff]
  %v1622 = vpack.c.bf16 %v1495, %v1494
  %v1623 = vpack.c.bf16 %v1497, %v1496
  %v1624 = vpack.c.bf16 %v1499, %v1498
  %v1625 = vpack.c.bf16 %v1501, %v1500
  %v1626 = vpack.c.bf16 %v1503, %v1502
  %v1627 = vpack.c.bf16 %v1505, %v1504
  %v1628 = vpack.c.bf16 %v1507, %v1506
  %v1629 = vpack.c.bf16 %v1509, %v1508
  %v1630 = vpack.c.bf16 %v1511, %v1510
  %v1631 = vpack.c.bf16 %v1513, %v1512
  %v1632 = vpack.c.bf16 %v1515, %v1514
  %v1633 = vpack.c.bf16 %v1517, %v1516
  %v1634 = vpack.c.bf16 %v1519, %v1518
  %v1635 = vpack.c.bf16 %v1521, %v1520
  %v1636 = vpack.c.bf16 %v1523, %v1522
  %v1637 = vpack.c.bf16 %v1525, %v1524
  %v1638 = vpack.c.bf16 %v1527, %v1526
  %v1639 = vpack.c.bf16 %v1529, %v1528
  %v1640 = vpack.c.bf16 %v1531, %v1530
  %v1641 = vpack.c.bf16 %v1533, %v1532
  %v1642 = vpack.c.bf16 %v1535, %v1534
  %v1643 = vpack.c.bf16 %v1537, %v1536
  %v1644 = vpack.c.bf16 %v1539, %v1538
  %v1645 = vpack.c.bf16 %v1541, %v1540
  %v1646 = vpack.c.bf16 %v1543, %v1542
  %v1647 = vpack.c.bf16 %v1545, %v1544
  %v1648 = vpack.c.bf16 %v1547, %v1546
  %v1649 = vpack.c.bf16 %v1549, %v1548
  %v1650 = vpack.c.bf16 %v1551, %v1550
  %v1651 = vpack.c.bf16 %v1553, %v1552
  %v1652 = vpack.c.bf16 %v1555, %v1554
  %v1653 = vpack.c.bf16 %v1557, %v1556
  %v1654 = vld [vmem:[%s7] sm:$0xf]
  %v1655 = vld [vmem:[%s7 + $0x4] sm:$0xf]
  %v1656 = vld [vmem:[%s7 + $0x8] sm:$0xf]
  %v1657 = vld [vmem:[%s7 + $0xc] sm:$0xf]
  %v1662 = vunpack.c.l.b16 %v1654
  %v1663 = vunpack.c.l.b16 %v1655
  %v1664 = vunpack.c.l.b16 %v1656
  %v1665 = vunpack.c.l.b16 %v1657
  %v1666 = vpack.c.b16 %v1663, %v1662
  %v1667 = vpack.c.b16 %v1665, %v1664
  %v1671 = vsel %vm274, %v1622, 0
  %v1674 = vsel %vm274, %v1623, 0
  %v1677 = vsel %vm274, %v1624, 0
  %v1680 = vsel %vm274, %v1625, 0
  %v1683 = vsel %vm274, %v1626, 0
  %v1686 = vsel %vm274, %v1627, 0
  %v1689 = vsel %vm274, %v1628, 0
  %v1692 = vsel %vm274, %v1629, 0
  %v1695 = vsel %vm274, %v1630, 0
  %v1698 = vsel %vm274, %v1631, 0
  %v1701 = vsel %vm274, %v1632, 0
  %v1704 = vsel %vm274, %v1633, 0
  %v1707 = vsel %vm274, %v1634, 0
  %v1710 = vsel %vm274, %v1635, 0
  %v1713 = vsel %vm274, %v1636, 0
  %v1716 = vsel %vm274, %v1637, 0
  %v1719 = vsel %vm274, %v1638, 0
  %v1722 = vsel %vm274, %v1639, 0
  %v1725 = vsel %vm274, %v1640, 0
  %v1728 = vsel %vm274, %v1641, 0
  %v1731 = vsel %vm274, %v1642, 0
  %v1734 = vsel %vm274, %v1643, 0
  %v1737 = vsel %vm274, %v1644, 0
  %v1740 = vsel %vm274, %v1645, 0
  %v1743 = vsel %vm274, %v1646, 0
  %v1746 = vsel %vm274, %v1647, 0
  %v1749 = vsel %vm274, %v1648, 0
  %v1752 = vsel %vm274, %v1649, 0
  %v1755 = vsel %vm274, %v1650, 0
  %v1758 = vsel %vm274, %v1651, 0
  %v1761 = vsel %vm274, %v1652, 0
  %v1764 = vsel %vm274, %v1653, 0
  %1766 = vmatpush.bf16.msra.mxu0 0
  %1767 = vmatpush.bf16.msra.mxu0 0
  %1768 = vmatpush.bf16.msra.mxu0 0
  %1769 = vmatpush.bf16.msra.mxu0 0
  %1770 = vmatpush.bf16.msra.mxu0 0
  %1771 = vmatpush.bf16.msra.mxu0 0
  %1772 = vmatpush.bf16.msra.mxu0 %v1667
  %1773 = vmatpush.bf16.msra.mxu0 %v1666
  %1774 = vmatmul.bf16.gmra.mxu0 %v1671
  %v1775 = vpop.f32.mrf.mxu0
  %v1776 = vadd.f32 0.0, %v1775
  %v1777 = vpop.f32.mrf.mxu0
  %v1778 = vadd.f32 0.0, %v1777
  %1779 = vmatmul.bf16.gmra.mxu0 %v1674
  %v1780 = vpop.f32.mrf.mxu0
  %v1781 = vadd.f32 0.0, %v1780
  %v1782 = vpop.f32.mrf.mxu0
  %v1783 = vadd.f32 0.0, %v1782
  %1784 = vmatmul.bf16.gmra.mxu0 %v1677
  %v1785 = vpop.f32.mrf.mxu0
  %v1786 = vadd.f32 0.0, %v1785
  %v1787 = vpop.f32.mrf.mxu0
  %v1788 = vadd.f32 0.0, %v1787
  %1789 = vmatmul.bf16.gmra.mxu0 %v1680
  %v1790 = vpop.f32.mrf.mxu0
  %v1791 = vadd.f32 0.0, %v1790
  %v1792 = vpop.f32.mrf.mxu0
  %v1793 = vadd.f32 0.0, %v1792
  %1794 = vmatmul.bf16.gmra.mxu0 %v1683
  %v1795 = vpop.f32.mrf.mxu0
  %v1796 = vadd.f32 0.0, %v1795
  %v1797 = vpop.f32.mrf.mxu0
  %v1798 = vadd.f32 0.0, %v1797
  %1799 = vmatmul.bf16.gmra.mxu0 %v1686
  %v1800 = vpop.f32.mrf.mxu0
  %v1801 = vadd.f32 0.0, %v1800
  %v1802 = vpop.f32.mrf.mxu0
  %v1803 = vadd.f32 0.0, %v1802
  %1804 = vmatmul.bf16.gmra.mxu0 %v1689
  %v1805 = vpop.f32.mrf.mxu0
  %v1806 = vadd.f32 0.0, %v1805
  %v1807 = vpop.f32.mrf.mxu0
  %v1808 = vadd.f32 0.0, %v1807
  %1809 = vmatmul.bf16.gmra.mxu0 %v1692
  %v1810 = vpop.f32.mrf.mxu0
  %v1811 = vadd.f32 0.0, %v1810
  %v1812 = vpop.f32.mrf.mxu0
  %v1813 = vadd.f32 0.0, %v1812
  %1814 = vmatmul.bf16.gmra.mxu0 %v1695
  %v1815 = vpop.f32.mrf.mxu0
  %v1816 = vadd.f32 0.0, %v1815
  %v1817 = vpop.f32.mrf.mxu0
  %v1818 = vadd.f32 0.0, %v1817
  %1819 = vmatmul.bf16.gmra.mxu0 %v1698
  %v1820 = vpop.f32.mrf.mxu0
  %v1821 = vadd.f32 0.0, %v1820
  %v1822 = vpop.f32.mrf.mxu0
  %v1823 = vadd.f32 0.0, %v1822
  %1824 = vmatmul.bf16.gmra.mxu0 %v1701
  %v1825 = vpop.f32.mrf.mxu0
  %v1826 = vadd.f32 0.0, %v1825
  %v1827 = vpop.f32.mrf.mxu0
  %v1828 = vadd.f32 0.0, %v1827
  %1829 = vmatmul.bf16.gmra.mxu0 %v1704
  %v1830 = vpop.f32.mrf.mxu0
  %v1831 = vadd.f32 0.0, %v1830
  %v1832 = vpop.f32.mrf.mxu0
  %v1833 = vadd.f32 0.0, %v1832
  %1834 = vmatmul.bf16.gmra.mxu0 %v1707
  %v1835 = vpop.f32.mrf.mxu0
  %v1836 = vadd.f32 0.0, %v1835
  %v1837 = vpop.f32.mrf.mxu0
  %v1838 = vadd.f32 0.0, %v1837
  %1839 = vmatmul.bf16.gmra.mxu0 %v1710
  %v1840 = vpop.f32.mrf.mxu0
  %v1841 = vadd.f32 0.0, %v1840
  %v1842 = vpop.f32.mrf.mxu0
  %v1843 = vadd.f32 0.0, %v1842
  %1844 = vmatmul.bf16.gmra.mxu0 %v1713
  %v1845 = vpop.f32.mrf.mxu0
  %v1846 = vadd.f32 0.0, %v1845
  %v1847 = vpop.f32.mrf.mxu0
  %v1848 = vadd.f32 0.0, %v1847
  %1849 = vmatmul.bf16.gmra.mxu0 %v1716
  %v1850 = vpop.f32.mrf.mxu0
  %v1851 = vadd.f32 0.0, %v1850
  %v1852 = vpop.f32.mrf.mxu0
  %v1853 = vadd.f32 0.0, %v1852
  %1854 = vmatmul.bf16.gmra.mxu0 %v1719
  %v1855 = vpop.f32.mrf.mxu0
  %v1856 = vadd.f32 0.0, %v1855
  %v1857 = vpop.f32.mrf.mxu0
  %v1858 = vadd.f32 0.0, %v1857
  %1859 = vmatmul.bf16.gmra.mxu0 %v1722
  %v1860 = vpop.f32.mrf.mxu0
  %v1861 = vadd.f32 0.0, %v1860
  %v1862 = vpop.f32.mrf.mxu0
  %v1863 = vadd.f32 0.0, %v1862
  %1864 = vmatmul.bf16.gmra.mxu0 %v1725
  %v1865 = vpop.f32.mrf.mxu0
  %v1866 = vadd.f32 0.0, %v1865
  %v1867 = vpop.f32.mrf.mxu0
  %v1868 = vadd.f32 0.0, %v1867
  %1869 = vmatmul.bf16.gmra.mxu0 %v1728
  %v1870 = vpop.f32.mrf.mxu0
  %v1871 = vadd.f32 0.0, %v1870
  %v1872 = vpop.f32.mrf.mxu0
  %v1873 = vadd.f32 0.0, %v1872
  %1874 = vmatmul.bf16.gmra.mxu0 %v1731
  %v1875 = vpop.f32.mrf.mxu0
  %v1876 = vadd.f32 0.0, %v1875
  %v1877 = vpop.f32.mrf.mxu0
  %v1878 = vadd.f32 0.0, %v1877
  %1879 = vmatmul.bf16.gmra.mxu0 %v1734
  %v1880 = vpop.f32.mrf.mxu0
  %v1881 = vadd.f32 0.0, %v1880
  %v1882 = vpop.f32.mrf.mxu0
  %v1883 = vadd.f32 0.0, %v1882
  %1884 = vmatmul.bf16.gmra.mxu0 %v1737
  %v1885 = vpop.f32.mrf.mxu0
  %v1886 = vadd.f32 0.0, %v1885
  %v1887 = vpop.f32.mrf.mxu0
  %v1888 = vadd.f32 0.0, %v1887
  %1889 = vmatmul.bf16.gmra.mxu0 %v1740
  %v1890 = vpop.f32.mrf.mxu0
  %v1891 = vadd.f32 0.0, %v1890
  %v1892 = vpop.f32.mrf.mxu0
  %v1893 = vadd.f32 0.0, %v1892
  %1894 = vmatmul.bf16.gmra.mxu0 %v1743
  %v1895 = vpop.f32.mrf.mxu0
  %v1896 = vadd.f32 0.0, %v1895
  %v1897 = vpop.f32.mrf.mxu0
  %v1898 = vadd.f32 0.0, %v1897
  %1899 = vmatmul.bf16.gmra.mxu0 %v1746
  %v1900 = vpop.f32.mrf.mxu0
  %v1901 = vadd.f32 0.0, %v1900
  %v1902 = vpop.f32.mrf.mxu0
  %v1903 = vadd.f32 0.0, %v1902
  %1904 = vmatmul.bf16.gmra.mxu0 %v1749
  %v1905 = vpop.f32.mrf.mxu0
  %v1906 = vadd.f32 0.0, %v1905
  %v1907 = vpop.f32.mrf.mxu0
  %v1908 = vadd.f32 0.0, %v1907
  %1909 = vmatmul.bf16.gmra.mxu0 %v1752
  %v1910 = vpop.f32.mrf.mxu0
  %v1911 = vadd.f32 0.0, %v1910
  %v1912 = vpop.f32.mrf.mxu0
  %v1913 = vadd.f32 0.0, %v1912
  %1914 = vmatmul.bf16.gmra.mxu0 %v1755
  %v1915 = vpop.f32.mrf.mxu0
  %v1916 = vadd.f32 0.0, %v1915
  %v1917 = vpop.f32.mrf.mxu0
  %v1918 = vadd.f32 0.0, %v1917
  %1919 = vmatmul.bf16.gmra.mxu0 %v1758
  %v1920 = vpop.f32.mrf.mxu0
  %v1921 = vadd.f32 0.0, %v1920
  %v1922 = vpop.f32.mrf.mxu0
  %v1923 = vadd.f32 0.0, %v1922
  %1924 = vmatmul.bf16.gmra.mxu0 %v1761
  %v1925 = vpop.f32.mrf.mxu0
  %v1926 = vadd.f32 0.0, %v1925
  %v1927 = vpop.f32.mrf.mxu0
  %v1928 = vadd.f32 0.0, %v1927
  %1929 = vmatmul.bf16.gmra.mxu0 %v1764
  %v1930 = vpop.f32.mrf.mxu0
  %v1931 = vadd.f32 0.0, %v1930
  %v1932 = vpop.f32.mrf.mxu0
  %v1933 = vadd.f32 0.0, %v1932
  %1934 = vdwg.mxu0
  %v1935 = vadd.f32 %v1558, %v1776
  %v1936 = vadd.f32 %v1559, %v1778
  %v1937 = vadd.f32 %v1560, %v1781
  %v1938 = vadd.f32 %v1561, %v1783
  %v1939 = vadd.f32 %v1562, %v1786
  %v1940 = vadd.f32 %v1563, %v1788
  %v1941 = vadd.f32 %v1564, %v1791
  %v1942 = vadd.f32 %v1565, %v1793
  %v1943 = vadd.f32 %v1566, %v1796
  %v1944 = vadd.f32 %v1567, %v1798
  %v1945 = vadd.f32 %v1568, %v1801
  %v1946 = vadd.f32 %v1569, %v1803
  %v1947 = vadd.f32 %v1570, %v1806
  %v1948 = vadd.f32 %v1571, %v1808
  %v1949 = vadd.f32 %v1572, %v1811
  %v1950 = vadd.f32 %v1573, %v1813
  %v1951 = vadd.f32 %v1574, %v1816
  %v1952 = vadd.f32 %v1575, %v1818
  %v1953 = vadd.f32 %v1576, %v1821
  %v1954 = vadd.f32 %v1577, %v1823
  %v1955 = vadd.f32 %v1578, %v1826
  %v1956 = vadd.f32 %v1579, %v1828
  %v1957 = vadd.f32 %v1580, %v1831
  %v1958 = vadd.f32 %v1581, %v1833
  %v1959 = vadd.f32 %v1582, %v1836
  %v1960 = vadd.f32 %v1583, %v1838
  %v1961 = vadd.f32 %v1584, %v1841
  %v1962 = vadd.f32 %v1585, %v1843
  %v1963 = vadd.f32 %v1586, %v1846
  %v1964 = vadd.f32 %v1587, %v1848
  %v1965 = vadd.f32 %v1588, %v1851
  %v1966 = vadd.f32 %v1589, %v1853
  %v1967 = vadd.f32 %v1590, %v1856
  %v1968 = vadd.f32 %v1591, %v1858
  %v1969 = vadd.f32 %v1592, %v1861
  %v1970 = vadd.f32 %v1593, %v1863
  %v1971 = vadd.f32 %v1594, %v1866
  %v1972 = vadd.f32 %v1595, %v1868
  %v1973 = vadd.f32 %v1596, %v1871
  %v1974 = vadd.f32 %v1597, %v1873
  %v1975 = vadd.f32 %v1598, %v1876
  %v1976 = vadd.f32 %v1599, %v1878
  %v1977 = vadd.f32 %v1600, %v1881
  %v1978 = vadd.f32 %v1601, %v1883
  %v1979 = vadd.f32 %v1602, %v1886
  %v1980 = vadd.f32 %v1603, %v1888
  %v1981 = vadd.f32 %v1604, %v1891
  %v1982 = vadd.f32 %v1605, %v1893
  %v1983 = vadd.f32 %v1606, %v1896
  %v1984 = vadd.f32 %v1607, %v1898
  %v1985 = vadd.f32 %v1608, %v1901
  %v1986 = vadd.f32 %v1609, %v1903
  %v1987 = vadd.f32 %v1610, %v1906
  %v1988 = vadd.f32 %v1611, %v1908
  %v1989 = vadd.f32 %v1612, %v1911
  %v1990 = vadd.f32 %v1613, %v1913
  %v1991 = vadd.f32 %v1614, %v1916
  %v1992 = vadd.f32 %v1615, %v1918
  %v1993 = vadd.f32 %v1616, %v1921
  %v1994 = vadd.f32 %v1617, %v1923
  %v1995 = vadd.f32 %v1618, %v1926
  %v1996 = vadd.f32 %v1619, %v1928
  %v1997 = vadd.f32 %v1620, %v1931
  %v1998 = vadd.f32 %v1621, %v1933
  %1999 = vst [vmem:[#allocation2] sm:$0xff] %v1935
  %2000 = vst [vmem:[#allocation2 + $0x8] sm:$0xff] %v1936
  %2001 = vst [vmem:[#allocation2 + $0x10] sm:$0xff] %v1937
  %2002 = vst [vmem:[#allocation2 + $0x18] sm:$0xff] %v1938
  %2003 = vst [vmem:[#allocation2 + $0x20] sm:$0xff] %v1939
  %2004 = vst [vmem:[#allocation2 + $0x28] sm:$0xff] %v1940
  %2005 = vst [vmem:[#allocation2 + $0x30] sm:$0xff] %v1941
  %2006 = vst [vmem:[#allocation2 + $0x38] sm:$0xff] %v1942
  %2007 = vst [vmem:[#allocation2 + $0x40] sm:$0xff] %v1943
  %2008 = vst [vmem:[#allocation2 + $0x48] sm:$0xff] %v1944
  %2009 = vst [vmem:[#allocation2 + $0x50] sm:$0xff] %v1945
  %2010 = vst [vmem:[#allocation2 + $0x58] sm:$0xff] %v1946
  %2011 = vst [vmem:[#allocation2 + $0x60] sm:$0xff] %v1947
  %2012 = vst [vmem:[#allocation2 + $0x68] sm:$0xff] %v1948
  %2013 = vst [vmem:[#allocation2 + $0x70] sm:$0xff] %v1949
  %2014 = vst [vmem:[#allocation2 + $0x78] sm:$0xff] %v1950
  %2015 = vst [vmem:[#allocation2 + $0x80] sm:$0xff] %v1951
  %2016 = vst [vmem:[#allocation2 + $0x88] sm:$0xff] %v1952
  %2017 = vst [vmem:[#allocation2 + $0x90] sm:$0xff] %v1953
  %2018 = vst [vmem:[#allocation2 + $0x98] sm:$0xff] %v1954
  %2019 = vst [vmem:[#allocation2 + $0xa0] sm:$0xff] %v1955
  %2020 = vst [vmem:[#allocation2 + $0xa8] sm:$0xff] %v1956
  %2021 = vst [vmem:[#allocation2 + $0xb0] sm:$0xff] %v1957
  %2022 = vst [vmem:[#allocation2 + $0xb8] sm:$0xff] %v1958
  %2023 = vst [vmem:[#allocation2 + $0xc0] sm:$0xff] %v1959
  %2024 = vst [vmem:[#allocation2 + $0xc8] sm:$0xff] %v1960
  %2025 = vst [vmem:[#allocation2 + $0xd0] sm:$0xff] %v1961
  %2026 = vst [vmem:[#allocation2 + $0xd8] sm:$0xff] %v1962
  %2027 = vst [vmem:[#allocation2 + $0xe0] sm:$0xff] %v1963
  %2028 = vst [vmem:[#allocation2 + $0xe8] sm:$0xff] %v1964
  %2029 = vst [vmem:[#allocation2 + $0xf0] sm:$0xff] %v1965
  %2030 = vst [vmem:[#allocation2 + $0xf8] sm:$0xff] %v1966
  %2031 = vst [vmem:[#allocation2 + $0x100] sm:$0xff] %v1967
  %2032 = vst [vmem:[#allocation2 + $0x108] sm:$0xff] %v1968
  %2033 = vst [vmem:[#allocation2 + $0x110] sm:$0xff] %v1969
  %2034 = vst [vmem:[#allocation2 + $0x118] sm:$0xff] %v1970
  %2035 = vst [vmem:[#allocation2 + $0x120] sm:$0xff] %v1971
  %2036 = vst [vmem:[#allocation2 + $0x128] sm:$0xff] %v1972
  %2037 = vst [vmem:[#allocation2 + $0x130] sm:$0xff] %v1973
  %2038 = vst [vmem:[#allocation2 + $0x138] sm:$0xff] %v1974
  %2039 = vst [vmem:[#allocation2 + $0x140] sm:$0xff] %v1975
  %2040 = vst [vmem:[#allocation2 + $0x148] sm:$0xff] %v1976
  %2041 = vst [vmem:[#allocation2 + $0x150] sm:$0xff] %v1977
  %2042 = vst [vmem:[#allocation2 + $0x158] sm:$0xff] %v1978
  %2043 = vst [vmem:[#allocation2 + $0x160] sm:$0xff] %v1979
  %2044 = vst [vmem:[#allocation2 + $0x168] sm:$0xff] %v1980
  %2045 = vst [vmem:[#allocation2 + $0x170] sm:$0xff] %v1981
  %2046 = vst [vmem:[#allocation2 + $0x178] sm:$0xff] %v1982
  %2047 = vst [vmem:[#allocation2 + $0x180] sm:$0xff] %v1983
  %2048 = vst [vmem:[#allocation2 + $0x188] sm:$0xff] %v1984
  %2049 = vst [vmem:[#allocation2 + $0x190] sm:$0xff] %v1985
  %2050 = vst [vmem:[#allocation2 + $0x198] sm:$0xff] %v1986
  %2051 = vst [vmem:[#allocation2 + $0x1a0] sm:$0xff] %v1987
  %2052 = vst [vmem:[#allocation2 + $0x1a8] sm:$0xff] %v1988
  %2053 = vst [vmem:[#allocation2 + $0x1b0] sm:$0xff] %v1989
  %2054 = vst [vmem:[#allocation2 + $0x1b8] sm:$0xff] %v1990
  %2055 = vst [vmem:[#allocation2 + $0x1c0] sm:$0xff] %v1991
  %2056 = vst [vmem:[#allocation2 + $0x1c8] sm:$0xff] %v1992
  %2057 = vst [vmem:[#allocation2 + $0x1d0] sm:$0xff] %v1993
  %2058 = vst [vmem:[#allocation2 + $0x1d8] sm:$0xff] %v1994
  %2059 = vst [vmem:[#allocation2 + $0x1e0] sm:$0xff] %v1995
  %2060 = vst [vmem:[#allocation2 + $0x1e8] sm:$0xff] %v1996
  %2061 = vst [vmem:[#allocation2 + $0x1f0] sm:$0xff] %v1997
  %2062 = vst [vmem:[#allocation2 + $0x1f8] sm:$0xff] %v1998
  %2063 = vmatpush.bf16.msra.mxu0 0
  %2064 = vmatpush.bf16.msra.mxu0 0
  %2065 = vmatpush.bf16.msra.mxu0 0
  %2066 = vmatpush.bf16.msra.mxu0 0
  %2067 = vmatpush.bf16.msra.mxu0 0
  %2068 = vmatpush.bf16.msra.mxu0 0
  %2069 = vmatpush.bf16.msra.mxu0 %v1130
  %2070 = vmatpush.bf16.msra.mxu0 %v1129
  %2071 = vmatmul.bf16.gmra.mxu0 %v1671
  %v2072 = vpop.f32.mrf.mxu0
  %v2073 = vadd.f32 %v1119, %v2072
  %v2074 = vpop.f32.mrf.mxu0
  %v2075 = vadd.f32 %v1119, %v2074
  %2076 = vmatmul.bf16.gmra.mxu0 %v1674
  %v2077 = vpop.f32.mrf.mxu0
  %v2078 = vadd.f32 %v1119, %v2077
  %v2079 = vpop.f32.mrf.mxu0
  %v2080 = vadd.f32 %v1119, %v2079
  %2081 = vmatmul.bf16.gmra.mxu0 %v1677
  %v2082 = vpop.f32.mrf.mxu0
  %v2083 = vadd.f32 %v1119, %v2082
  %v2084 = vpop.f32.mrf.mxu0
  %v2085 = vadd.f32 %v1119, %v2084
  %2086 = vmatmul.bf16.gmra.mxu0 %v1680
  %v2087 = vpop.f32.mrf.mxu0
  %v2088 = vadd.f32 %v1119, %v2087
  %v2089 = vpop.f32.mrf.mxu0
  %v2090 = vadd.f32 %v1119, %v2089
  %2091 = vmatmul.bf16.gmra.mxu0 %v1683
  %v2092 = vpop.f32.mrf.mxu0
  %v2093 = vadd.f32 %v1119, %v2092
  %v2094 = vpop.f32.mrf.mxu0
  %v2095 = vadd.f32 %v1119, %v2094
  %2096 = vmatmul.bf16.gmra.mxu0 %v1686
  %v2097 = vpop.f32.mrf.mxu0
  %v2098 = vadd.f32 %v1119, %v2097
  %v2099 = vpop.f32.mrf.mxu0
  %v2100 = vadd.f32 %v1119, %v2099
  %2101 = vmatmul.bf16.gmra.mxu0 %v1689
  %v2102 = vpop.f32.mrf.mxu0
  %v2103 = vadd.f32 %v1119, %v2102
  %v2104 = vpop.f32.mrf.mxu0
  %v2105 = vadd.f32 %v1119, %v2104
  %2106 = vmatmul.bf16.gmra.mxu0 %v1692
  %v2107 = vpop.f32.mrf.mxu0
  %v2108 = vadd.f32 %v1119, %v2107
  %v2109 = vpop.f32.mrf.mxu0
  %v2110 = vadd.f32 %v1119, %v2109
  %2111 = vmatmul.bf16.gmra.mxu0 %v1695
  %v2112 = vpop.f32.mrf.mxu0
  %v2113 = vadd.f32 %v1119, %v2112
  %v2114 = vpop.f32.mrf.mxu0
  %v2115 = vadd.f32 %v1119, %v2114
  %2116 = vmatmul.bf16.gmra.mxu0 %v1698
  %v2117 = vpop.f32.mrf.mxu0
  %v2118 = vadd.f32 %v1119, %v2117
  %v2119 = vpop.f32.mrf.mxu0
  %v2120 = vadd.f32 %v1119, %v2119
  %2121 = vmatmul.bf16.gmra.mxu0 %v1701
  %v2122 = vpop.f32.mrf.mxu0
  %v2123 = vadd.f32 %v1119, %v2122
  %v2124 = vpop.f32.mrf.mxu0
  %v2125 = vadd.f32 %v1119, %v2124
  %2126 = vmatmul.bf16.gmra.mxu0 %v1704
  %v2127 = vpop.f32.mrf.mxu0
  %v2128 = vadd.f32 %v1119, %v2127
  %v2129 = vpop.f32.mrf.mxu0
  %v2130 = vadd.f32 %v1119, %v2129
  %2131 = vmatmul.bf16.gmra.mxu0 %v1707
  %v2132 = vpop.f32.mrf.mxu0
  %v2133 = vadd.f32 %v1119, %v2132
  %v2134 = vpop.f32.mrf.mxu0
  %v2135 = vadd.f32 %v1119, %v2134
  %2136 = vmatmul.bf16.gmra.mxu0 %v1710
  %v2137 = vpop.f32.mrf.mxu0
  %v2138 = vadd.f32 %v1119, %v2137
  %v2139 = vpop.f32.mrf.mxu0
  %v2140 = vadd.f32 %v1119, %v2139
  %2141 = vmatmul.bf16.gmra.mxu0 %v1713
  %v2142 = vpop.f32.mrf.mxu0
  %v2143 = vadd.f32 %v1119, %v2142
  %v2144 = vpop.f32.mrf.mxu0
  %v2145 = vadd.f32 %v1119, %v2144
  %2146 = vmatmul.bf16.gmra.mxu0 %v1716
  %v2147 = vpop.f32.mrf.mxu0
  %v2148 = vadd.f32 %v1119, %v2147
  %v2149 = vpop.f32.mrf.mxu0
  %v2150 = vadd.f32 %v1119, %v2149
  %2151 = vmatmul.bf16.gmra.mxu0 %v1719
  %v2152 = vpop.f32.mrf.mxu0
  %v2153 = vadd.f32 %v1119, %v2152
  %v2154 = vpop.f32.mrf.mxu0
  %v2155 = vadd.f32 %v1119, %v2154
  %2156 = vmatmul.bf16.gmra.mxu0 %v1722
  %v2157 = vpop.f32.mrf.mxu0
  %v2158 = vadd.f32 %v1119, %v2157
  %v2159 = vpop.f32.mrf.mxu0
  %v2160 = vadd.f32 %v1119, %v2159
  %2161 = vmatmul.bf16.gmra.mxu0 %v1725
  %v2162 = vpop.f32.mrf.mxu0
  %v2163 = vadd.f32 %v1119, %v2162
  %v2164 = vpop.f32.mrf.mxu0
  %v2165 = vadd.f32 %v1119, %v2164
  %2166 = vmatmul.bf16.gmra.mxu0 %v1728
  %v2167 = vpop.f32.mrf.mxu0
  %v2168 = vadd.f32 %v1119, %v2167
  %v2169 = vpop.f32.mrf.mxu0
  %v2170 = vadd.f32 %v1119, %v2169
  %2171 = vmatmul.bf16.gmra.mxu0 %v1731
  %v2172 = vpop.f32.mrf.mxu0
  %v2173 = vadd.f32 %v1119, %v2172
  %v2174 = vpop.f32.mrf.mxu0
  %v2175 = vadd.f32 %v1119, %v2174
  %2176 = vmatmul.bf16.gmra.mxu0 %v1734
  %v2177 = vpop.f32.mrf.mxu0
  %v2178 = vadd.f32 %v1119, %v2177
  %v2179 = vpop.f32.mrf.mxu0
  %v2180 = vadd.f32 %v1119, %v2179
  %2181 = vmatmul.bf16.gmra.mxu0 %v1737
  %v2182 = vpop.f32.mrf.mxu0
  %v2183 = vadd.f32 %v1119, %v2182
  %v2184 = vpop.f32.mrf.mxu0
  %v2185 = vadd.f32 %v1119, %v2184
  %2186 = vmatmul.bf16.gmra.mxu0 %v1740
  %v2187 = vpop.f32.mrf.mxu0
  %v2188 = vadd.f32 %v1119, %v2187
  %v2189 = vpop.f32.mrf.mxu0
  %v2190 = vadd.f32 %v1119, %v2189
  %2191 = vmatmul.bf16.gmra.mxu0 %v1743
  %v2192 = vpop.f32.mrf.mxu0
  %v2193 = vadd.f32 %v1119, %v2192
  %v2194 = vpop.f32.mrf.mxu0
  %v2195 = vadd.f32 %v1119, %v2194
  %2196 = vmatmul.bf16.gmra.mxu0 %v1746
  %v2197 = vpop.f32.mrf.mxu0
  %v2198 = vadd.f32 %v1119, %v2197
  %v2199 = vpop.f32.mrf.mxu0
  %v2200 = vadd.f32 %v1119, %v2199
  %2201 = vmatmul.bf16.gmra.mxu0 %v1749
  %v2202 = vpop.f32.mrf.mxu0
  %v2203 = vadd.f32 %v1119, %v2202
  %v2204 = vpop.f32.mrf.mxu0
  %v2205 = vadd.f32 %v1119, %v2204
  %2206 = vmatmul.bf16.gmra.mxu0 %v1752
  %v2207 = vpop.f32.mrf.mxu0
  %v2208 = vadd.f32 %v1119, %v2207
  %v2209 = vpop.f32.mrf.mxu0
  %v2210 = vadd.f32 %v1119, %v2209
  %2211 = vmatmul.bf16.gmra.mxu0 %v1755
  %v2212 = vpop.f32.mrf.mxu0
  %v2213 = vadd.f32 %v1119, %v2212
  %v2214 = vpop.f32.mrf.mxu0
  %v2215 = vadd.f32 %v1119, %v2214
  %2216 = vmatmul.bf16.gmra.mxu0 %v1758
  %v2217 = vpop.f32.mrf.mxu0
  %v2218 = vadd.f32 %v1119, %v2217
  %v2219 = vpop.f32.mrf.mxu0
  %v2220 = vadd.f32 %v1119, %v2219
  %2221 = vmatmul.bf16.gmra.mxu0 %v1761
  %v2222 = vpop.f32.mrf.mxu0
  %v2223 = vadd.f32 %v1119, %v2222
  %v2224 = vpop.f32.mrf.mxu0
  %v2225 = vadd.f32 %v1119, %v2224
  %2226 = vmatmul.bf16.gmra.mxu0 %v1764
  %v2227 = vpop.f32.mrf.mxu0
  %v2228 = vadd.f32 %v1119, %v2227
  %v2229 = vpop.f32.mrf.mxu0
  %v2230 = vadd.f32 %v1119, %v2229
  %2231 = vdwg.mxu0
  %vm2232 = vcmp.ge.f32.partialorder %v2073, 0.0
  %vm2233 = vcmp.ge.f32.partialorder %v2075, 0.0
  %vm2234 = vcmp.ge.f32.partialorder %v2078, 0.0
  %vm2235 = vcmp.ge.f32.partialorder %v2080, 0.0
  %vm2236 = vcmp.ge.f32.partialorder %v2083, 0.0
  %vm2237 = vcmp.ge.f32.partialorder %v2085, 0.0
  %vm2238 = vcmp.ge.f32.partialorder %v2088, 0.0
  %vm2239 = vcmp.ge.f32.partialorder %v2090, 0.0
  %vm2240 = vcmp.ge.f32.partialorder %v2093, 0.0
  %vm2241 = vcmp.ge.f32.partialorder %v2095, 0.0
  %vm2242 = vcmp.ge.f32.partialorder %v2098, 0.0
  %vm2243 = vcmp.ge.f32.partialorder %v2100, 0.0
  %vm2244 = vcmp.ge.f32.partialorder %v2103, 0.0
  %vm2245 = vcmp.ge.f32.partialorder %v2105, 0.0
  %vm2246 = vcmp.ge.f32.partialorder %v2108, 0.0
  %vm2247 = vcmp.ge.f32.partialorder %v2110, 0.0
  %vm2248 = vcmp.ge.f32.partialorder %v2113, 0.0
  %vm2249 = vcmp.ge.f32.partialorder %v2115, 0.0
  %vm2250 = vcmp.ge.f32.partialorder %v2118, 0.0
  %vm2251 = vcmp.ge.f32.partialorder %v2120, 0.0
  %vm2252 = vcmp.ge.f32.partialorder %v2123, 0.0
  %vm2253 = vcmp.ge.f32.partialorder %v2125, 0.0
  %vm2254 = vcmp.ge.f32.partialorder %v2128, 0.0
  %vm2255 = vcmp.ge.f32.partialorder %v2130, 0.0
  %vm2256 = vcmp.ge.f32.partialorder %v2133, 0.0
  %vm2257 = vcmp.ge.f32.partialorder %v2135, 0.0
  %vm2258 = vcmp.ge.f32.partialorder %v2138, 0.0
  %vm2259 = vcmp.ge.f32.partialorder %v2140, 0.0
  %vm2260 = vcmp.ge.f32.partialorder %v2143, 0.0
  %vm2261 = vcmp.ge.f32.partialorder %v2145, 0.0
  %vm2262 = vcmp.ge.f32.partialorder %v2148, 0.0
  %vm2263 = vcmp.ge.f32.partialorder %v2150, 0.0
  %vm2264 = vcmp.ge.f32.partialorder %v2153, 0.0
  %vm2265 = vcmp.ge.f32.partialorder %v2155, 0.0
  %vm2266 = vcmp.ge.f32.partialorder %v2158, 0.0
  %vm2267 = vcmp.ge.f32.partialorder %v2160, 0.0
  %vm2268 = vcmp.ge.f32.partialorder %v2163, 0.0
  %vm2269 = vcmp.ge.f32.partialorder %v2165, 0.0
  %vm2270 = vcmp.ge.f32.partialorder %v2168, 0.0
  %vm2271 = vcmp.ge.f32.partialorder %v2170, 0.0
  %vm2272 = vcmp.ge.f32.partialorder %v2173, 0.0
  %vm2273 = vcmp.ge.f32.partialorder %v2175, 0.0
  %vm2274 = vcmp.ge.f32.partialorder %v2178, 0.0
  %vm2275 = vcmp.ge.f32.partialorder %v2180, 0.0
  %vm2276 = vcmp.ge.f32.partialorder %v2183, 0.0
  %vm2277 = vcmp.ge.f32.partialorder %v2185, 0.0
  %vm2278 = vcmp.ge.f32.partialorder %v2188, 0.0
  %vm2279 = vcmp.ge.f32.partialorder %v2190, 0.0
  %vm2280 = vcmp.ge.f32.partialorder %v2193, 0.0
  %vm2281 = vcmp.ge.f32.partialorder %v2195, 0.0
  %vm2282 = vcmp.ge.f32.partialorder %v2198, 0.0
  %vm2283 = vcmp.ge.f32.partialorder %v2200, 0.0
  %vm2284 = vcmp.ge.f32.partialorder %v2203, 0.0
  %vm2285 = vcmp.ge.f32.partialorder %v2205, 0.0
  %vm2286 = vcmp.ge.f32.partialorder %v2208, 0.0
  %vm2287 = vcmp.ge.f32.partialorder %v2210, 0.0
  %vm2288 = vcmp.ge.f32.partialorder %v2213, 0.0
  %vm2289 = vcmp.ge.f32.partialorder %v2215, 0.0
  %vm2290 = vcmp.ge.f32.partialorder %v2218, 0.0
  %vm2291 = vcmp.ge.f32.partialorder %v2220, 0.0
  %vm2292 = vcmp.ge.f32.partialorder %v2223, 0.0
  %vm2293 = vcmp.ge.f32.partialorder %v2225, 0.0
  %vm2294 = vcmp.ge.f32.partialorder %v2228, 0.0
  %vm2295 = vcmp.ge.f32.partialorder %v2230, 0.0
  %v2296 = vmul.f32 %v2073, 0.1
  %v2297 = vmul.f32 %v2075, 0.1
  %v2298 = vmul.f32 %v2078, 0.1
  %v2299 = vmul.f32 %v2080, 0.1
  %v2300 = vmul.f32 %v2083, 0.1
  %v2301 = vmul.f32 %v2085, 0.1
  %v2302 = vmul.f32 %v2088, 0.1
  %v2303 = vmul.f32 %v2090, 0.1
  %v2304 = vmul.f32 %v2093, 0.1
  %v2305 = vmul.f32 %v2095, 0.1
  %v2306 = vmul.f32 %v2098, 0.1
  %v2307 = vmul.f32 %v2100, 0.1
  %v2308 = vmul.f32 %v2103, 0.1
  %v2309 = vmul.f32 %v2105, 0.1
  %v2310 = vmul.f32 %v2108, 0.1
  %v2311 = vmul.f32 %v2110, 0.1
  %v2312 = vmul.f32 %v2113, 0.1
  %v2313 = vmul.f32 %v2115, 0.1
  %v2314 = vmul.f32 %v2118, 0.1
  %v2315 = vmul.f32 %v2120, 0.1
  %v2316 = vmul.f32 %v2123, 0.1
  %v2317 = vmul.f32 %v2125, 0.1
  %v2318 = vmul.f32 %v2128, 0.1
  %v2319 = vmul.f32 %v2130, 0.1
  %v2320 = vmul.f32 %v2133, 0.1
  %v2321 = vmul.f32 %v2135, 0.1
  %v2322 = vmul.f32 %v2138, 0.1
  %v2323 = vmul.f32 %v2140, 0.1
  %v2324 = vmul.f32 %v2143, 0.1
  %v2325 = vmul.f32 %v2145, 0.1
  %v2326 = vmul.f32 %v2148, 0.1
  %v2327 = vmul.f32 %v2150, 0.1
  %v2328 = vmul.f32 %v2153, 0.1
  %v2329 = vmul.f32 %v2155, 0.1
  %v2330 = vmul.f32 %v2158, 0.1
  %v2331 = vmul.f32 %v2160, 0.1
  %v2332 = vmul.f32 %v2163, 0.1
  %v2333 = vmul.f32 %v2165, 0.1
  %v2334 = vmul.f32 %v2168, 0.1
  %v2335 = vmul.f32 %v2170, 0.1
  %v2336 = vmul.f32 %v2173, 0.1
  %v2337 = vmul.f32 %v2175, 0.1
  %v2338 = vmul.f32 %v2178, 0.1
  %v2339 = vmul.f32 %v2180, 0.1
  %v2340 = vmul.f32 %v2183, 0.1
  %v2341 = vmul.f32 %v2185, 0.1
  %v2342 = vmul.f32 %v2188, 0.1
  %v2343 = vmul.f32 %v2190, 0.1
  %v2344 = vmul.f32 %v2193, 0.1
  %v2345 = vmul.f32 %v2195, 0.1
  %v2346 = vmul.f32 %v2198, 0.1
  %v2347 = vmul.f32 %v2200, 0.1
  %v2348 = vmul.f32 %v2203, 0.1
  %v2349 = vmul.f32 %v2205, 0.1
  %v2350 = vmul.f32 %v2208, 0.1
  %v2351 = vmul.f32 %v2210, 0.1
  %v2352 = vmul.f32 %v2213, 0.1
  %v2353 = vmul.f32 %v2215, 0.1
  %v2354 = vmul.f32 %v2218, 0.1
  %v2355 = vmul.f32 %v2220, 0.1
  %v2356 = vmul.f32 %v2223, 0.1
  %v2357 = vmul.f32 %v2225, 0.1
  %v2358 = vmul.f32 %v2228, 0.1
  %v2359 = vmul.f32 %v2230, 0.1
  %v2360 = vsel %vm2232, %v2073, %v2296
  %v2361 = vsel %vm2233, %v2075, %v2297
  %v2362 = vsel %vm2234, %v2078, %v2298
  %v2363 = vsel %vm2235, %v2080, %v2299
  %v2364 = vsel %vm2236, %v2083, %v2300
  %v2365 = vsel %vm2237, %v2085, %v2301
  %v2366 = vsel %vm2238, %v2088, %v2302
  %v2367 = vsel %vm2239, %v2090, %v2303
  %v2368 = vsel %vm2240, %v2093, %v2304
  %v2369 = vsel %vm2241, %v2095, %v2305
  %v2370 = vsel %vm2242, %v2098, %v2306
  %v2371 = vsel %vm2243, %v2100, %v2307
  %v2372 = vsel %vm2244, %v2103, %v2308
  %v2373 = vsel %vm2245, %v2105, %v2309
  %v2374 = vsel %vm2246, %v2108, %v2310
  %v2375 = vsel %vm2247, %v2110, %v2311
  %v2376 = vsel %vm2248, %v2113, %v2312
  %v2377 = vsel %vm2249, %v2115, %v2313
  %v2378 = vsel %vm2250, %v2118, %v2314
  %v2379 = vsel %vm2251, %v2120, %v2315
  %v2380 = vsel %vm2252, %v2123, %v2316
  %v2381 = vsel %vm2253, %v2125, %v2317
  %v2382 = vsel %vm2254, %v2128, %v2318
  %v2383 = vsel %vm2255, %v2130, %v2319
  %v2384 = vsel %vm2256, %v2133, %v2320
  %v2385 = vsel %vm2257, %v2135, %v2321
  %v2386 = vsel %vm2258, %v2138, %v2322
  %v2387 = vsel %vm2259, %v2140, %v2323
  %v2388 = vsel %vm2260, %v2143, %v2324
  %v2389 = vsel %vm2261, %v2145, %v2325
  %v2390 = vsel %vm2262, %v2148, %v2326
  %v2391 = vsel %vm2263, %v2150, %v2327
  %v2392 = vsel %vm2264, %v2153, %v2328
  %v2393 = vsel %vm2265, %v2155, %v2329
  %v2394 = vsel %vm2266, %v2158, %v2330
  %v2395 = vsel %vm2267, %v2160, %v2331
  %v2396 = vsel %vm2268, %v2163, %v2332
  %v2397 = vsel %vm2269, %v2165, %v2333
  %v2398 = vsel %vm2270, %v2168, %v2334
  %v2399 = vsel %vm2271, %v2170, %v2335
  %v2400 = vsel %vm2272, %v2173, %v2336
  %v2401 = vsel %vm2273, %v2175, %v2337
  %v2402 = vsel %vm2274, %v2178, %v2338
  %v2403 = vsel %vm2275, %v2180, %v2339
  %v2404 = vsel %vm2276, %v2183, %v2340
  %v2405 = vsel %vm2277, %v2185, %v2341
  %v2406 = vsel %vm2278, %v2188, %v2342
  %v2407 = vsel %vm2279, %v2190, %v2343
  %v2408 = vsel %vm2280, %v2193, %v2344
  %v2409 = vsel %vm2281, %v2195, %v2345
  %v2410 = vsel %vm2282, %v2198, %v2346
  %v2411 = vsel %vm2283, %v2200, %v2347
  %v2412 = vsel %vm2284, %v2203, %v2348
  %v2413 = vsel %vm2285, %v2205, %v2349
  %v2414 = vsel %vm2286, %v2208, %v2350
  %v2415 = vsel %vm2287, %v2210, %v2351
  %v2416 = vsel %vm2288, %v2213, %v2352
  %v2417 = vsel %vm2289, %v2215, %v2353
  %v2418 = vsel %vm2290, %v2218, %v2354
  %v2419 = vsel %vm2291, %v2220, %v2355
  %v2420 = vsel %vm2292, %v2223, %v2356
  %v2421 = vsel %vm2293, %v2225, %v2357
  %v2422 = vsel %vm2294, %v2228, %v2358
  %v2423 = vsel %vm2295, %v2230, %v2359
  %v2424 = vadd.f32 %v1494, %v2360
  %v2425 = vadd.f32 %v1495, %v2361
  %v2426 = vadd.f32 %v1496, %v2362
  %v2427 = vadd.f32 %v1497, %v2363
  %v2428 = vadd.f32 %v1498, %v2364
  %v2429 = vadd.f32 %v1499, %v2365
  %v2430 = vadd.f32 %v1500, %v2366
  %v2431 = vadd.f32 %v1501, %v2367
  %v2432 = vadd.f32 %v1502, %v2368
  %v2433 = vadd.f32 %v1503, %v2369
  %v2434 = vadd.f32 %v1504, %v2370
  %v2435 = vadd.f32 %v1505, %v2371
  %v2436 = vadd.f32 %v1506, %v2372
  %v2437 = vadd.f32 %v1507, %v2373
  %v2438 = vadd.f32 %v1508, %v2374
  %v2439 = vadd.f32 %v1509, %v2375
  %v2440 = vadd.f32 %v1510, %v2376
  %v2441 = vadd.f32 %v1511, %v2377
  %v2442 = vadd.f32 %v1512, %v2378
  %v2443 = vadd.f32 %v1513, %v2379
  %v2444 = vadd.f32 %v1514, %v2380
  %v2445 = vadd.f32 %v1515, %v2381
  %v2446 = vadd.f32 %v1516, %v2382
  %v2447 = vadd.f32 %v1517, %v2383
  %v2448 = vadd.f32 %v1518, %v2384
  %v2449 = vadd.f32 %v1519, %v2385
  %v2450 = vadd.f32 %v1520, %v2386
  %v2451 = vadd.f32 %v1521, %v2387
  %v2452 = vadd.f32 %v1522, %v2388
  %v2453 = vadd.f32 %v1523, %v2389
  %v2454 = vadd.f32 %v1524, %v2390
  %v2455 = vadd.f32 %v1525, %v2391
  %v2456 = vadd.f32 %v1526, %v2392
  %v2457 = vadd.f32 %v1527, %v2393
  %v2458 = vadd.f32 %v1528, %v2394
  %v2459 = vadd.f32 %v1529, %v2395
  %v2460 = vadd.f32 %v1530, %v2396
  %v2461 = vadd.f32 %v1531, %v2397
  %v2462 = vadd.f32 %v1532, %v2398
  %v2463 = vadd.f32 %v1533, %v2399
  %v2464 = vadd.f32 %v1534, %v2400
  %v2465 = vadd.f32 %v1535, %v2401
  %v2466 = vadd.f32 %v1536, %v2402
  %v2467 = vadd.f32 %v1537, %v2403
  %v2468 = vadd.f32 %v1538, %v2404
  %v2469 = vadd.f32 %v1539, %v2405
  %v2470 = vadd.f32 %v1540, %v2406
  %v2471 = vadd.f32 %v1541, %v2407
  %v2472 = vadd.f32 %v1542, %v2408
  %v2473 = vadd.f32 %v1543, %v2409
  %v2474 = vadd.f32 %v1544, %v2410
  %v2475 = vadd.f32 %v1545, %v2411
  %v2476 = vadd.f32 %v1546, %v2412
  %v2477 = vadd.f32 %v1547, %v2413
  %v2478 = vadd.f32 %v1548, %v2414
  %v2479 = vadd.f32 %v1549, %v2415
  %v2480 = vadd.f32 %v1550, %v2416
  %v2481 = vadd.f32 %v1551, %v2417
  %v2482 = vadd.f32 %v1552, %v2418
  %v2483 = vadd.f32 %v1553, %v2419
  %v2484 = vadd.f32 %v1554, %v2420
  %v2485 = vadd.f32 %v1555, %v2421
  %v2486 = vadd.f32 %v1556, %v2422
  %v2487 = vadd.f32 %v1557, %v2423
  %v2488 = vld [vmem:[#allocation2] sm:$0xff]
  %v2489 = vld [vmem:[#allocation2 + $0x8] sm:$0xff]
  %v2490 = vld [vmem:[#allocation2 + $0x10] sm:$0xff]
  %v2491 = vld [vmem:[#allocation2 + $0x18] sm:$0xff]
  %v2492 = vld [vmem:[#allocation2 + $0x20] sm:$0xff]
  %v2493 = vld [vmem:[#allocation2 + $0x28] sm:$0xff]
  %v2494 = vld [vmem:[#allocation2 + $0x30] sm:$0xff]
  %v2495 = vld [vmem:[#allocation2 + $0x38] sm:$0xff]
  %v2496 = vld [vmem:[#allocation2 + $0x40] sm:$0xff]
  %v2497 = vld [vmem:[#allocation2 + $0x48] sm:$0xff]
  %v2498 = vld [vmem:[#allocation2 + $0x50] sm:$0xff]
  %v2499 = vld [vmem:[#allocation2 + $0x58] sm:$0xff]
  %v2500 = vld [vmem:[#allocation2 + $0x60] sm:$0xff]
  %v2501 = vld [vmem:[#allocation2 + $0x68] sm:$0xff]
  %v2502 = vld [vmem:[#allocation2 + $0x70] sm:$0xff]
  %v2503 = vld [vmem:[#allocation2 + $0x78] sm:$0xff]
  %v2504 = vld [vmem:[#allocation2 + $0x80] sm:$0xff]
  %v2505 = vld [vmem:[#allocation2 + $0x88] sm:$0xff]
  %v2506 = vld [vmem:[#allocation2 + $0x90] sm:$0xff]
  %v2507 = vld [vmem:[#allocation2 + $0x98] sm:$0xff]
  %v2508 = vld [vmem:[#allocation2 + $0xa0] sm:$0xff]
  %v2509 = vld [vmem:[#allocation2 + $0xa8] sm:$0xff]
  %v2510 = vld [vmem:[#allocation2 + $0xb0] sm:$0xff]
  %v2511 = vld [vmem:[#allocation2 + $0xb8] sm:$0xff]
  %v2512 = vld [vmem:[#allocation2 + $0xc0] sm:$0xff]
  %v2513 = vld [vmem:[#allocation2 + $0xc8] sm:$0xff]
  %v2514 = vld [vmem:[#allocation2 + $0xd0] sm:$0xff]
  %v2515 = vld [vmem:[#allocation2 + $0xd8] sm:$0xff]
  %v2516 = vld [vmem:[#allocation2 + $0xe0] sm:$0xff]
  %v2517 = vld [vmem:[#allocation2 + $0xe8] sm:$0xff]
  %v2518 = vld [vmem:[#allocation2 + $0xf0] sm:$0xff]
  %v2519 = vld [vmem:[#allocation2 + $0xf8] sm:$0xff]
  %v2520 = vld [vmem:[#allocation2 + $0x100] sm:$0xff]
  %v2521 = vld [vmem:[#allocation2 + $0x108] sm:$0xff]
  %v2522 = vld [vmem:[#allocation2 + $0x110] sm:$0xff]
  %v2523 = vld [vmem:[#allocation2 + $0x118] sm:$0xff]
  %v2524 = vld [vmem:[#allocation2 + $0x120] sm:$0xff]
  %v2525 = vld [vmem:[#allocation2 + $0x128] sm:$0xff]
  %v2526 = vld [vmem:[#allocation2 + $0x130] sm:$0xff]
  %v2527 = vld [vmem:[#allocation2 + $0x138] sm:$0xff]
  %v2528 = vld [vmem:[#allocation2 + $0x140] sm:$0xff]
  %v2529 = vld [vmem:[#allocation2 + $0x148] sm:$0xff]
  %v2530 = vld [vmem:[#allocation2 + $0x150] sm:$0xff]
  %v2531 = vld [vmem:[#allocation2 + $0x158] sm:$0xff]
  %v2532 = vld [vmem:[#allocation2 + $0x160] sm:$0xff]
  %v2533 = vld [vmem:[#allocation2 + $0x168] sm:$0xff]
  %v2534 = vld [vmem:[#allocation2 + $0x170] sm:$0xff]
  %v2535 = vld [vmem:[#allocation2 + $0x178] sm:$0xff]
  %v2536 = vld [vmem:[#allocation2 + $0x180] sm:$0xff]
  %v2537 = vld [vmem:[#allocation2 + $0x188] sm:$0xff]
  %v2538 = vld [vmem:[#allocation2 + $0x190] sm:$0xff]
  %v2539 = vld [vmem:[#allocation2 + $0x198] sm:$0xff]
  %v2540 = vld [vmem:[#allocation2 + $0x1a0] sm:$0xff]
  %v2541 = vld [vmem:[#allocation2 + $0x1a8] sm:$0xff]
  %v2542 = vld [vmem:[#allocation2 + $0x1b0] sm:$0xff]
  %v2543 = vld [vmem:[#allocation2 + $0x1b8] sm:$0xff]
  %v2544 = vld [vmem:[#allocation2 + $0x1c0] sm:$0xff]
  %v2545 = vld [vmem:[#allocation2 + $0x1c8] sm:$0xff]
  %v2546 = vld [vmem:[#allocation2 + $0x1d0] sm:$0xff]
  %v2547 = vld [vmem:[#allocation2 + $0x1d8] sm:$0xff]
  %v2548 = vld [vmem:[#allocation2 + $0x1e0] sm:$0xff]
  %v2549 = vld [vmem:[#allocation2 + $0x1e8] sm:$0xff]
  %v2550 = vld [vmem:[#allocation2 + $0x1f0] sm:$0xff]
  %v2551 = vld [vmem:[#allocation2 + $0x1f8] sm:$0xff]
  %v2552 = vpack.c.bf16 %v2425, %v2424
  %v2553 = vpack.c.bf16 %v2427, %v2426
  %v2554 = vpack.c.bf16 %v2429, %v2428
  %v2555 = vpack.c.bf16 %v2431, %v2430
  %v2556 = vpack.c.bf16 %v2433, %v2432
  %v2557 = vpack.c.bf16 %v2435, %v2434
  %v2558 = vpack.c.bf16 %v2437, %v2436
  %v2559 = vpack.c.bf16 %v2439, %v2438
  %v2560 = vpack.c.bf16 %v2441, %v2440
  %v2561 = vpack.c.bf16 %v2443, %v2442
  %v2562 = vpack.c.bf16 %v2445, %v2444
  %v2563 = vpack.c.bf16 %v2447, %v2446
  %v2564 = vpack.c.bf16 %v2449, %v2448
  %v2565 = vpack.c.bf16 %v2451, %v2450
  %v2566 = vpack.c.bf16 %v2453, %v2452
  %v2567 = vpack.c.bf16 %v2455, %v2454
  %v2568 = vpack.c.bf16 %v2457, %v2456
  %v2569 = vpack.c.bf16 %v2459, %v2458
  %v2570 = vpack.c.bf16 %v2461, %v2460
  %v2571 = vpack.c.bf16 %v2463, %v2462
  %v2572 = vpack.c.bf16 %v2465, %v2464
  %v2573 = vpack.c.bf16 %v2467, %v2466
  %v2574 = vpack.c.bf16 %v2469, %v2468
  %v2575 = vpack.c.bf16 %v2471, %v2470
  %v2576 = vpack.c.bf16 %v2473, %v2472
  %v2577 = vpack.c.bf16 %v2475, %v2474
  %v2578 = vpack.c.bf16 %v2477, %v2476
  %v2579 = vpack.c.bf16 %v2479, %v2478
  %v2580 = vpack.c.bf16 %v2481, %v2480
  %v2581 = vpack.c.bf16 %v2483, %v2482
  %v2582 = vpack.c.bf16 %v2485, %v2484
  %v2583 = vpack.c.bf16 %v2487, %v2486
  %s2584 = scalar_lea.vmem %s7, 16
  %v2585 = vld [vmem:[%s2584] sm:$0xf]
  %v2586 = vld [vmem:[%s2584 + $0x4] sm:$0xf]
  %v2587 = vld [vmem:[%s2584 + $0x8] sm:$0xf]
  %v2588 = vld [vmem:[%s2584 + $0xc] sm:$0xf]
  %v2593 = vunpack.c.l.b16 %v2585
  %v2594 = vunpack.c.l.b16 %v2586
  %v2595 = vunpack.c.l.b16 %v2587
  %v2596 = vunpack.c.l.b16 %v2588
  %v2597 = vpack.c.b16 %v2594, %v2593
  %v2598 = vpack.c.b16 %v2596, %v2595
  %v2602 = vsel %vm274, %v2552, 0
  %v2605 = vsel %vm274, %v2553, 0
  %v2608 = vsel %vm274, %v2554, 0
  %v2611 = vsel %vm274, %v2555, 0
  %v2614 = vsel %vm274, %v2556, 0
  %v2617 = vsel %vm274, %v2557, 0
  %v2620 = vsel %vm274, %v2558, 0
  %v2623 = vsel %vm274, %v2559, 0
  %v2626 = vsel %vm274, %v2560, 0
  %v2629 = vsel %vm274, %v2561, 0
  %v2632 = vsel %vm274, %v2562, 0
  %v2635 = vsel %vm274, %v2563, 0
  %v2638 = vsel %vm274, %v2564, 0
  %v2641 = vsel %vm274, %v2565, 0
  %v2644 = vsel %vm274, %v2566, 0
  %v2647 = vsel %vm274, %v2567, 0
  %v2650 = vsel %vm274, %v2568, 0
  %v2653 = vsel %vm274, %v2569, 0
  %v2656 = vsel %vm274, %v2570, 0
  %v2659 = vsel %vm274, %v2571, 0
  %v2662 = vsel %vm274, %v2572, 0
  %v2665 = vsel %vm274, %v2573, 0
  %v2668 = vsel %vm274, %v2574, 0
  %v2671 = vsel %vm274, %v2575, 0
  %v2674 = vsel %vm274, %v2576, 0
  %v2677 = vsel %vm274, %v2577, 0
  %v2680 = vsel %vm274, %v2578, 0
  %v2683 = vsel %vm274, %v2579, 0
  %v2686 = vsel %vm274, %v2580, 0
  %v2689 = vsel %vm274, %v2581, 0
  %v2692 = vsel %vm274, %v2582, 0
  %v2695 = vsel %vm274, %v2583, 0
  %2697 = vmatpush.bf16.msra.mxu0 0
  %2698 = vmatpush.bf16.msra.mxu0 0
  %2699 = vmatpush.bf16.msra.mxu0 0
  %2700 = vmatpush.bf16.msra.mxu0 0
  %2701 = vmatpush.bf16.msra.mxu0 0
  %2702 = vmatpush.bf16.msra.mxu0 0
  %2703 = vmatpush.bf16.msra.mxu0 %v2598
  %2704 = vmatpush.bf16.msra.mxu0 %v2597
  %2705 = vmatmul.bf16.gmra.mxu0 %v2602
  %v2706 = vpop.f32.mrf.mxu0
  %v2707 = vadd.f32 0.0, %v2706
  %v2708 = vpop.f32.mrf.mxu0
  %v2709 = vadd.f32 0.0, %v2708
  %2710 = vmatmul.bf16.gmra.mxu0 %v2605
  %v2711 = vpop.f32.mrf.mxu0
  %v2712 = vadd.f32 0.0, %v2711
  %v2713 = vpop.f32.mrf.mxu0
  %v2714 = vadd.f32 0.0, %v2713
  %2715 = vmatmul.bf16.gmra.mxu0 %v2608
  %v2716 = vpop.f32.mrf.mxu0
  %v2717 = vadd.f32 0.0, %v2716
  %v2718 = vpop.f32.mrf.mxu0
  %v2719 = vadd.f32 0.0, %v2718
  %2720 = vmatmul.bf16.gmra.mxu0 %v2611
  %v2721 = vpop.f32.mrf.mxu0
  %v2722 = vadd.f32 0.0, %v2721
  %v2723 = vpop.f32.mrf.mxu0
  %v2724 = vadd.f32 0.0, %v2723
  %2725 = vmatmul.bf16.gmra.mxu0 %v2614
  %v2726 = vpop.f32.mrf.mxu0
  %v2727 = vadd.f32 0.0, %v2726
  %v2728 = vpop.f32.mrf.mxu0
  %v2729 = vadd.f32 0.0, %v2728
  %2730 = vmatmul.bf16.gmra.mxu0 %v2617
  %v2731 = vpop.f32.mrf.mxu0
  %v2732 = vadd.f32 0.0, %v2731
  %v2733 = vpop.f32.mrf.mxu0
  %v2734 = vadd.f32 0.0, %v2733
  %2735 = vmatmul.bf16.gmra.mxu0 %v2620
  %v2736 = vpop.f32.mrf.mxu0
  %v2737 = vadd.f32 0.0, %v2736
  %v2738 = vpop.f32.mrf.mxu0
  %v2739 = vadd.f32 0.0, %v2738
  %2740 = vmatmul.bf16.gmra.mxu0 %v2623
  %v2741 = vpop.f32.mrf.mxu0
  %v2742 = vadd.f32 0.0, %v2741
  %v2743 = vpop.f32.mrf.mxu0
  %v2744 = vadd.f32 0.0, %v2743
  %2745 = vmatmul.bf16.gmra.mxu0 %v2626
  %v2746 = vpop.f32.mrf.mxu0
  %v2747 = vadd.f32 0.0, %v2746
  %v2748 = vpop.f32.mrf.mxu0
  %v2749 = vadd.f32 0.0, %v2748
  %2750 = vmatmul.bf16.gmra.mxu0 %v2629
  %v2751 = vpop.f32.mrf.mxu0
  %v2752 = vadd.f32 0.0, %v2751
  %v2753 = vpop.f32.mrf.mxu0
  %v2754 = vadd.f32 0.0, %v2753
  %2755 = vmatmul.bf16.gmra.mxu0 %v2632
  %v2756 = vpop.f32.mrf.mxu0
  %v2757 = vadd.f32 0.0, %v2756
  %v2758 = vpop.f32.mrf.mxu0
  %v2759 = vadd.f32 0.0, %v2758
  %2760 = vmatmul.bf16.gmra.mxu0 %v2635
  %v2761 = vpop.f32.mrf.mxu0
  %v2762 = vadd.f32 0.0, %v2761
  %v2763 = vpop.f32.mrf.mxu0
  %v2764 = vadd.f32 0.0, %v2763
  %2765 = vmatmul.bf16.gmra.mxu0 %v2638
  %v2766 = vpop.f32.mrf.mxu0
  %v2767 = vadd.f32 0.0, %v2766
  %v2768 = vpop.f32.mrf.mxu0
  %v2769 = vadd.f32 0.0, %v2768
  %2770 = vmatmul.bf16.gmra.mxu0 %v2641
  %v2771 = vpop.f32.mrf.mxu0
  %v2772 = vadd.f32 0.0, %v2771
  %v2773 = vpop.f32.mrf.mxu0
  %v2774 = vadd.f32 0.0, %v2773
  %2775 = vmatmul.bf16.gmra.mxu0 %v2644
  %v2776 = vpop.f32.mrf.mxu0
  %v2777 = vadd.f32 0.0, %v2776
  %v2778 = vpop.f32.mrf.mxu0
  %v2779 = vadd.f32 0.0, %v2778
  %2780 = vmatmul.bf16.gmra.mxu0 %v2647
  %v2781 = vpop.f32.mrf.mxu0
  %v2782 = vadd.f32 0.0, %v2781
  %v2783 = vpop.f32.mrf.mxu0
  %v2784 = vadd.f32 0.0, %v2783
  %2785 = vmatmul.bf16.gmra.mxu0 %v2650
  %v2786 = vpop.f32.mrf.mxu0
  %v2787 = vadd.f32 0.0, %v2786
  %v2788 = vpop.f32.mrf.mxu0
  %v2789 = vadd.f32 0.0, %v2788
  %2790 = vmatmul.bf16.gmra.mxu0 %v2653
  %v2791 = vpop.f32.mrf.mxu0
  %v2792 = vadd.f32 0.0, %v2791
  %v2793 = vpop.f32.mrf.mxu0
  %v2794 = vadd.f32 0.0, %v2793
  %2795 = vmatmul.bf16.gmra.mxu0 %v2656
  %v2796 = vpop.f32.mrf.mxu0
  %v2797 = vadd.f32 0.0, %v2796
  %v2798 = vpop.f32.mrf.mxu0
  %v2799 = vadd.f32 0.0, %v2798
  %2800 = vmatmul.bf16.gmra.mxu0 %v2659
  %v2801 = vpop.f32.mrf.mxu0
  %v2802 = vadd.f32 0.0, %v2801
  %v2803 = vpop.f32.mrf.mxu0
  %v2804 = vadd.f32 0.0, %v2803
  %2805 = vmatmul.bf16.gmra.mxu0 %v2662
  %v2806 = vpop.f32.mrf.mxu0
  %v2807 = vadd.f32 0.0, %v2806
  %v2808 = vpop.f32.mrf.mxu0
  %v2809 = vadd.f32 0.0, %v2808
  %2810 = vmatmul.bf16.gmra.mxu0 %v2665
  %v2811 = vpop.f32.mrf.mxu0
  %v2812 = vadd.f32 0.0, %v2811
  %v2813 = vpop.f32.mrf.mxu0
  %v2814 = vadd.f32 0.0, %v2813
  %2815 = vmatmul.bf16.gmra.mxu0 %v2668
  %v2816 = vpop.f32.mrf.mxu0
  %v2817 = vadd.f32 0.0, %v2816
  %v2818 = vpop.f32.mrf.mxu0
  %v2819 = vadd.f32 0.0, %v2818
  %2820 = vmatmul.bf16.gmra.mxu0 %v2671
  %v2821 = vpop.f32.mrf.mxu0
  %v2822 = vadd.f32 0.0, %v2821
  %v2823 = vpop.f32.mrf.mxu0
  %v2824 = vadd.f32 0.0, %v2823
  %2825 = vmatmul.bf16.gmra.mxu0 %v2674
  %v2826 = vpop.f32.mrf.mxu0
  %v2827 = vadd.f32 0.0, %v2826
  %v2828 = vpop.f32.mrf.mxu0
  %v2829 = vadd.f32 0.0, %v2828
  %2830 = vmatmul.bf16.gmra.mxu0 %v2677
  %v2831 = vpop.f32.mrf.mxu0
  %v2832 = vadd.f32 0.0, %v2831
  %v2833 = vpop.f32.mrf.mxu0
  %v2834 = vadd.f32 0.0, %v2833
  %2835 = vmatmul.bf16.gmra.mxu0 %v2680
  %v2836 = vpop.f32.mrf.mxu0
  %v2837 = vadd.f32 0.0, %v2836
  %v2838 = vpop.f32.mrf.mxu0
  %v2839 = vadd.f32 0.0, %v2838
  %2840 = vmatmul.bf16.gmra.mxu0 %v2683
  %v2841 = vpop.f32.mrf.mxu0
  %v2842 = vadd.f32 0.0, %v2841
  %v2843 = vpop.f32.mrf.mxu0
  %v2844 = vadd.f32 0.0, %v2843
  %2845 = vmatmul.bf16.gmra.mxu0 %v2686
  %v2846 = vpop.f32.mrf.mxu0
  %v2847 = vadd.f32 0.0, %v2846
  %v2848 = vpop.f32.mrf.mxu0
  %v2849 = vadd.f32 0.0, %v2848
  %2850 = vmatmul.bf16.gmra.mxu0 %v2689
  %v2851 = vpop.f32.mrf.mxu0
  %v2852 = vadd.f32 0.0, %v2851
  %v2853 = vpop.f32.mrf.mxu0
  %v2854 = vadd.f32 0.0, %v2853
  %2855 = vmatmul.bf16.gmra.mxu0 %v2692
  %v2856 = vpop.f32.mrf.mxu0
  %v2857 = vadd.f32 0.0, %v2856
  %v2858 = vpop.f32.mrf.mxu0
  %v2859 = vadd.f32 0.0, %v2858
  %2860 = vmatmul.bf16.gmra.mxu0 %v2695
  %v2861 = vpop.f32.mrf.mxu0
  %v2862 = vadd.f32 0.0, %v2861
  %v2863 = vpop.f32.mrf.mxu0
  %v2864 = vadd.f32 0.0, %v2863
  %2865 = vdwg.mxu0
  %v2866 = vadd.f32 %v2488, %v2707
  %v2867 = vadd.f32 %v2489, %v2709
  %v2868 = vadd.f32 %v2490, %v2712
  %v2869 = vadd.f32 %v2491, %v2714
  %v2870 = vadd.f32 %v2492, %v2717
  %v2871 = vadd.f32 %v2493, %v2719
  %v2872 = vadd.f32 %v2494, %v2722
  %v2873 = vadd.f32 %v2495, %v2724
  %v2874 = vadd.f32 %v2496, %v2727
  %v2875 = vadd.f32 %v2497, %v2729
  %v2876 = vadd.f32 %v2498, %v2732
  %v2877 = vadd.f32 %v2499, %v2734
  %v2878 = vadd.f32 %v2500, %v2737
  %v2879 = vadd.f32 %v2501, %v2739
  %v2880 = vadd.f32 %v2502, %v2742
  %v2881 = vadd.f32 %v2503, %v2744
  %v2882 = vadd.f32 %v2504, %v2747
  %v2883 = vadd.f32 %v2505, %v2749
  %v2884 = vadd.f32 %v2506, %v2752
  %v2885 = vadd.f32 %v2507, %v2754
  %v2886 = vadd.f32 %v2508, %v2757
  %v2887 = vadd.f32 %v2509, %v2759
  %v2888 = vadd.f32 %v2510, %v2762
  %v2889 = vadd.f32 %v2511, %v2764
  %v2890 = vadd.f32 %v2512, %v2767
  %v2891 = vadd.f32 %v2513, %v2769
  %v2892 = vadd.f32 %v2514, %v2772
  %v2893 = vadd.f32 %v2515, %v2774
  %v2894 = vadd.f32 %v2516, %v2777
  %v2895 = vadd.f32 %v2517, %v2779
  %v2896 = vadd.f32 %v2518, %v2782
  %v2897 = vadd.f32 %v2519, %v2784
  %v2898 = vadd.f32 %v2520, %v2787
  %v2899 = vadd.f32 %v2521, %v2789
  %v2900 = vadd.f32 %v2522, %v2792
  %v2901 = vadd.f32 %v2523, %v2794
  %v2902 = vadd.f32 %v2524, %v2797
  %v2903 = vadd.f32 %v2525, %v2799
  %v2904 = vadd.f32 %v2526, %v2802
  %v2905 = vadd.f32 %v2527, %v2804
  %v2906 = vadd.f32 %v2528, %v2807
  %v2907 = vadd.f32 %v2529, %v2809
  %v2908 = vadd.f32 %v2530, %v2812
  %v2909 = vadd.f32 %v2531, %v2814
  %v2910 = vadd.f32 %v2532, %v2817
  %v2911 = vadd.f32 %v2533, %v2819
  %v2912 = vadd.f32 %v2534, %v2822
  %v2913 = vadd.f32 %v2535, %v2824
  %v2914 = vadd.f32 %v2536, %v2827
  %v2915 = vadd.f32 %v2537, %v2829
  %v2916 = vadd.f32 %v2538, %v2832
  %v2917 = vadd.f32 %v2539, %v2834
  %v2918 = vadd.f32 %v2540, %v2837
  %v2919 = vadd.f32 %v2541, %v2839
  %v2920 = vadd.f32 %v2542, %v2842
  %v2921 = vadd.f32 %v2543, %v2844
  %v2922 = vadd.f32 %v2544, %v2847
  %v2923 = vadd.f32 %v2545, %v2849
  %v2924 = vadd.f32 %v2546, %v2852
  %v2925 = vadd.f32 %v2547, %v2854
  %v2926 = vadd.f32 %v2548, %v2857
  %v2927 = vadd.f32 %v2549, %v2859
  %v2928 = vadd.f32 %v2550, %v2862
  %v2929 = vadd.f32 %v2551, %v2864
  %2930 = vst [vmem:[#allocation2] sm:$0xff] %v2866
  %2931 = vst [vmem:[#allocation2 + $0x8] sm:$0xff] %v2867
  %2932 = vst [vmem:[#allocation2 + $0x10] sm:$0xff] %v2868
  %2933 = vst [vmem:[#allocation2 + $0x18] sm:$0xff] %v2869
  %2934 = vst [vmem:[#allocation2 + $0x20] sm:$0xff] %v2870
  %2935 = vst [vmem:[#allocation2 + $0x28] sm:$0xff] %v2871
  %2936 = vst [vmem:[#allocation2 + $0x30] sm:$0xff] %v2872
  %2937 = vst [vmem:[#allocation2 + $0x38] sm:$0xff] %v2873
  %2938 = vst [vmem:[#allocation2 + $0x40] sm:$0xff] %v2874
  %2939 = vst [vmem:[#allocation2 + $0x48] sm:$0xff] %v2875
  %2940 = vst [vmem:[#allocation2 + $0x50] sm:$0xff] %v2876
  %2941 = vst [vmem:[#allocation2 + $0x58] sm:$0xff] %v2877
  %2942 = vst [vmem:[#allocation2 + $0x60] sm:$0xff] %v2878
  %2943 = vst [vmem:[#allocation2 + $0x68] sm:$0xff] %v2879
  %2944 = vst [vmem:[#allocation2 + $0x70] sm:$0xff] %v2880
  %2945 = vst [vmem:[#allocation2 + $0x78] sm:$0xff] %v2881
  %2946 = vst [vmem:[#allocation2 + $0x80] sm:$0xff] %v2882
  %2947 = vst [vmem:[#allocation2 + $0x88] sm:$0xff] %v2883
  %2948 = vst [vmem:[#allocation2 + $0x90] sm:$0xff] %v2884
  %2949 = vst [vmem:[#allocation2 + $0x98] sm:$0xff] %v2885
  %2950 = vst [vmem:[#allocation2 + $0xa0] sm:$0xff] %v2886
  %2951 = vst [vmem:[#allocation2 + $0xa8] sm:$0xff] %v2887
  %2952 = vst [vmem:[#allocation2 + $0xb0] sm:$0xff] %v2888
  %2953 = vst [vmem:[#allocation2 + $0xb8] sm:$0xff] %v2889
  %2954 = vst [vmem:[#allocation2 + $0xc0] sm:$0xff] %v2890
  %2955 = vst [vmem:[#allocation2 + $0xc8] sm:$0xff] %v2891
  %2956 = vst [vmem:[#allocation2 + $0xd0] sm:$0xff] %v2892
  %2957 = vst [vmem:[#allocation2 + $0xd8] sm:$0xff] %v2893
  %2958 = vst [vmem:[#allocation2 + $0xe0] sm:$0xff] %v2894
  %2959 = vst [vmem:[#allocation2 + $0xe8] sm:$0xff] %v2895
  %2960 = vst [vmem:[#allocation2 + $0xf0] sm:$0xff] %v2896
  %2961 = vst [vmem:[#allocation2 + $0xf8] sm:$0xff] %v2897
  %2962 = vst [vmem:[#allocation2 + $0x100] sm:$0xff] %v2898
  %2963 = vst [vmem:[#allocation2 + $0x108] sm:$0xff] %v2899
  %2964 = vst [vmem:[#allocation2 + $0x110] sm:$0xff] %v2900
  %2965 = vst [vmem:[#allocation2 + $0x118] sm:$0xff] %v2901
  %2966 = vst [vmem:[#allocation2 + $0x120] sm:$0xff] %v2902
  %2967 = vst [vmem:[#allocation2 + $0x128] sm:$0xff] %v2903
  %2968 = vst [vmem:[#allocation2 + $0x130] sm:$0xff] %v2904
  %2969 = vst [vmem:[#allocation2 + $0x138] sm:$0xff] %v2905
  %2970 = vst [vmem:[#allocation2 + $0x140] sm:$0xff] %v2906
  %2971 = vst [vmem:[#allocation2 + $0x148] sm:$0xff] %v2907
  %2972 = vst [vmem:[#allocation2 + $0x150] sm:$0xff] %v2908
  %2973 = vst [vmem:[#allocation2 + $0x158] sm:$0xff] %v2909
  %2974 = vst [vmem:[#allocation2 + $0x160] sm:$0xff] %v2910
  %2975 = vst [vmem:[#allocation2 + $0x168] sm:$0xff] %v2911
  %2976 = vst [vmem:[#allocation2 + $0x170] sm:$0xff] %v2912
  %2977 = vst [vmem:[#allocation2 + $0x178] sm:$0xff] %v2913
  %2978 = vst [vmem:[#allocation2 + $0x180] sm:$0xff] %v2914
  %2979 = vst [vmem:[#allocation2 + $0x188] sm:$0xff] %v2915
  %2980 = vst [vmem:[#allocation2 + $0x190] sm:$0xff] %v2916
  %2981 = vst [vmem:[#allocation2 + $0x198] sm:$0xff] %v2917
  %2982 = vst [vmem:[#allocation2 + $0x1a0] sm:$0xff] %v2918
  %2983 = vst [vmem:[#allocation2 + $0x1a8] sm:$0xff] %v2919
  %2984 = vst [vmem:[#allocation2 + $0x1b0] sm:$0xff] %v2920
  %2985 = vst [vmem:[#allocation2 + $0x1b8] sm:$0xff] %v2921
  %2986 = vst [vmem:[#allocation2 + $0x1c0] sm:$0xff] %v2922
  %2987 = vst [vmem:[#allocation2 + $0x1c8] sm:$0xff] %v2923
  %2988 = vst [vmem:[#allocation2 + $0x1d0] sm:$0xff] %v2924
  %2989 = vst [vmem:[#allocation2 + $0x1d8] sm:$0xff] %v2925
  %2990 = vst [vmem:[#allocation2 + $0x1e0] sm:$0xff] %v2926
  %2991 = vst [vmem:[#allocation2 + $0x1e8] sm:$0xff] %v2927
  %2992 = vst [vmem:[#allocation2 + $0x1f0] sm:$0xff] %v2928
  %2993 = vst [vmem:[#allocation2 + $0x1f8] sm:$0xff] %v2929
  %2994 = vmatpush.bf16.msra.mxu0 0
  %2995 = vmatpush.bf16.msra.mxu0 0
  %2996 = vmatpush.bf16.msra.mxu0 0
  %2997 = vmatpush.bf16.msra.mxu0 0
  %2998 = vmatpush.bf16.msra.mxu0 0
  %2999 = vmatpush.bf16.msra.mxu0 0
  %3000 = vmatpush.bf16.msra.mxu0 %v1130
  %3001 = vmatpush.bf16.msra.mxu0 %v1129
  %3002 = vmatmul.bf16.gmra.mxu0 %v2602
  %v3003 = vpop.f32.mrf.mxu0
  %v3004 = vadd.f32 %v1119, %v3003
  %v3005 = vpop.f32.mrf.mxu0
  %v3006 = vadd.f32 %v1119, %v3005
  %3007 = vmatmul.bf16.gmra.mxu0 %v2605
  %v3008 = vpop.f32.mrf.mxu0
  %v3009 = vadd.f32 %v1119, %v3008
  %v3010 = vpop.f32.mrf.mxu0
  %v3011 = vadd.f32 %v1119, %v3010
  %3012 = vmatmul.bf16.gmra.mxu0 %v2608
  %v3013 = vpop.f32.mrf.mxu0
  %v3014 = vadd.f32 %v1119, %v3013
  %v3015 = vpop.f32.mrf.mxu0
  %v3016 = vadd.f32 %v1119, %v3015
  %3017 = vmatmul.bf16.gmra.mxu0 %v2611
  %v3018 = vpop.f32.mrf.mxu0
  %v3019 = vadd.f32 %v1119, %v3018
  %v3020 = vpop.f32.mrf.mxu0
  %v3021 = vadd.f32 %v1119, %v3020
  %3022 = vmatmul.bf16.gmra.mxu0 %v2614
  %v3023 = vpop.f32.mrf.mxu0
  %v3024 = vadd.f32 %v1119, %v3023
  %v3025 = vpop.f32.mrf.mxu0
  %v3026 = vadd.f32 %v1119, %v3025
  %3027 = vmatmul.bf16.gmra.mxu0 %v2617
  %v3028 = vpop.f32.mrf.mxu0
  %v3029 = vadd.f32 %v1119, %v3028
  %v3030 = vpop.f32.mrf.mxu0
  %v3031 = vadd.f32 %v1119, %v3030
  %3032 = vmatmul.bf16.gmra.mxu0 %v2620
  %v3033 = vpop.f32.mrf.mxu0
  %v3034 = vadd.f32 %v1119, %v3033
  %v3035 = vpop.f32.mrf.mxu0
  %v3036 = vadd.f32 %v1119, %v3035
  %3037 = vmatmul.bf16.gmra.mxu0 %v2623
  %v3038 = vpop.f32.mrf.mxu0
  %v3039 = vadd.f32 %v1119, %v3038
  %v3040 = vpop.f32.mrf.mxu0
  %v3041 = vadd.f32 %v1119, %v3040
  %3042 = vmatmul.bf16.gmra.mxu0 %v2626
  %v3043 = vpop.f32.mrf.mxu0
  %v3044 = vadd.f32 %v1119, %v3043
  %v3045 = vpop.f32.mrf.mxu0
  %v3046 = vadd.f32 %v1119, %v3045
  %3047 = vmatmul.bf16.gmra.mxu0 %v2629
  %v3048 = vpop.f32.mrf.mxu0
  %v3049 = vadd.f32 %v1119, %v3048
  %v3050 = vpop.f32.mrf.mxu0
  %v3051 = vadd.f32 %v1119, %v3050
  %3052 = vmatmul.bf16.gmra.mxu0 %v2632
  %v3053 = vpop.f32.mrf.mxu0
  %v3054 = vadd.f32 %v1119, %v3053
  %v3055 = vpop.f32.mrf.mxu0
  %v3056 = vadd.f32 %v1119, %v3055
  %3057 = vmatmul.bf16.gmra.mxu0 %v2635
  %v3058 = vpop.f32.mrf.mxu0
  %v3059 = vadd.f32 %v1119, %v3058
  %v3060 = vpop.f32.mrf.mxu0
  %v3061 = vadd.f32 %v1119, %v3060
  %3062 = vmatmul.bf16.gmra.mxu0 %v2638
  %v3063 = vpop.f32.mrf.mxu0
  %v3064 = vadd.f32 %v1119, %v3063
  %v3065 = vpop.f32.mrf.mxu0
  %v3066 = vadd.f32 %v1119, %v3065
  %3067 = vmatmul.bf16.gmra.mxu0 %v2641
  %v3068 = vpop.f32.mrf.mxu0
  %v3069 = vadd.f32 %v1119, %v3068
  %v3070 = vpop.f32.mrf.mxu0
  %v3071 = vadd.f32 %v1119, %v3070
  %3072 = vmatmul.bf16.gmra.mxu0 %v2644
  %v3073 = vpop.f32.mrf.mxu0
  %v3074 = vadd.f32 %v1119, %v3073
  %v3075 = vpop.f32.mrf.mxu0
  %v3076 = vadd.f32 %v1119, %v3075
  %3077 = vmatmul.bf16.gmra.mxu0 %v2647
  %v3078 = vpop.f32.mrf.mxu0
  %v3079 = vadd.f32 %v1119, %v3078
  %v3080 = vpop.f32.mrf.mxu0
  %v3081 = vadd.f32 %v1119, %v3080
  %3082 = vmatmul.bf16.gmra.mxu0 %v2650
  %v3083 = vpop.f32.mrf.mxu0
  %v3084 = vadd.f32 %v1119, %v3083
  %v3085 = vpop.f32.mrf.mxu0
  %v3086 = vadd.f32 %v1119, %v3085
  %3087 = vmatmul.bf16.gmra.mxu0 %v2653
  %v3088 = vpop.f32.mrf.mxu0
  %v3089 = vadd.f32 %v1119, %v3088
  %v3090 = vpop.f32.mrf.mxu0
  %v3091 = vadd.f32 %v1119, %v3090
  %3092 = vmatmul.bf16.gmra.mxu0 %v2656
  %v3093 = vpop.f32.mrf.mxu0
  %v3094 = vadd.f32 %v1119, %v3093
  %v3095 = vpop.f32.mrf.mxu0
  %v3096 = vadd.f32 %v1119, %v3095
  %3097 = vmatmul.bf16.gmra.mxu0 %v2659
  %v3098 = vpop.f32.mrf.mxu0
  %v3099 = vadd.f32 %v1119, %v3098
  %v3100 = vpop.f32.mrf.mxu0
  %v3101 = vadd.f32 %v1119, %v3100
  %3102 = vmatmul.bf16.gmra.mxu0 %v2662
  %v3103 = vpop.f32.mrf.mxu0
  %v3104 = vadd.f32 %v1119, %v3103
  %v3105 = vpop.f32.mrf.mxu0
  %v3106 = vadd.f32 %v1119, %v3105
  %3107 = vmatmul.bf16.gmra.mxu0 %v2665
  %v3108 = vpop.f32.mrf.mxu0
  %v3109 = vadd.f32 %v1119, %v3108
  %v3110 = vpop.f32.mrf.mxu0
  %v3111 = vadd.f32 %v1119, %v3110
  %3112 = vmatmul.bf16.gmra.mxu0 %v2668
  %v3113 = vpop.f32.mrf.mxu0
  %v3114 = vadd.f32 %v1119, %v3113
  %v3115 = vpop.f32.mrf.mxu0
  %v3116 = vadd.f32 %v1119, %v3115
  %3117 = vmatmul.bf16.gmra.mxu0 %v2671
  %v3118 = vpop.f32.mrf.mxu0
  %v3119 = vadd.f32 %v1119, %v3118
  %v3120 = vpop.f32.mrf.mxu0
  %v3121 = vadd.f32 %v1119, %v3120
  %3122 = vmatmul.bf16.gmra.mxu0 %v2674
  %v3123 = vpop.f32.mrf.mxu0
  %v3124 = vadd.f32 %v1119, %v3123
  %v3125 = vpop.f32.mrf.mxu0
  %v3126 = vadd.f32 %v1119, %v3125
  %3127 = vmatmul.bf16.gmra.mxu0 %v2677
  %v3128 = vpop.f32.mrf.mxu0
  %v3129 = vadd.f32 %v1119, %v3128
  %v3130 = vpop.f32.mrf.mxu0
  %v3131 = vadd.f32 %v1119, %v3130
  %3132 = vmatmul.bf16.gmra.mxu0 %v2680
  %v3133 = vpop.f32.mrf.mxu0
  %v3134 = vadd.f32 %v1119, %v3133
  %v3135 = vpop.f32.mrf.mxu0
  %v3136 = vadd.f32 %v1119, %v3135
  %3137 = vmatmul.bf16.gmra.mxu0 %v2683
  %v3138 = vpop.f32.mrf.mxu0
  %v3139 = vadd.f32 %v1119, %v3138
  %v3140 = vpop.f32.mrf.mxu0
  %v3141 = vadd.f32 %v1119, %v3140
  %3142 = vmatmul.bf16.gmra.mxu0 %v2686
  %v3143 = vpop.f32.mrf.mxu0
  %v3144 = vadd.f32 %v1119, %v3143
  %v3145 = vpop.f32.mrf.mxu0
  %v3146 = vadd.f32 %v1119, %v3145
  %3147 = vmatmul.bf16.gmra.mxu0 %v2689
  %v3148 = vpop.f32.mrf.mxu0
  %v3149 = vadd.f32 %v1119, %v3148
  %v3150 = vpop.f32.mrf.mxu0
  %v3151 = vadd.f32 %v1119, %v3150
  %3152 = vmatmul.bf16.gmra.mxu0 %v2692
  %v3153 = vpop.f32.mrf.mxu0
  %v3154 = vadd.f32 %v1119, %v3153
  %v3155 = vpop.f32.mrf.mxu0
  %v3156 = vadd.f32 %v1119, %v3155
  %3157 = vmatmul.bf16.gmra.mxu0 %v2695
  %v3158 = vpop.f32.mrf.mxu0
  %v3159 = vadd.f32 %v1119, %v3158
  %v3160 = vpop.f32.mrf.mxu0
  %v3161 = vadd.f32 %v1119, %v3160
  %3162 = vdwg.mxu0
  %vm3163 = vcmp.ge.f32.partialorder %v3004, 0.0
  %vm3164 = vcmp.ge.f32.partialorder %v3006, 0.0
  %vm3165 = vcmp.ge.f32.partialorder %v3009, 0.0
  %vm3166 = vcmp.ge.f32.partialorder %v3011, 0.0
  %vm3167 = vcmp.ge.f32.partialorder %v3014, 0.0
  %vm3168 = vcmp.ge.f32.partialorder %v3016, 0.0
  %vm3169 = vcmp.ge.f32.partialorder %v3019, 0.0
  %vm3170 = vcmp.ge.f32.partialorder %v3021, 0.0
  %vm3171 = vcmp.ge.f32.partialorder %v3024, 0.0
  %vm3172 = vcmp.ge.f32.partialorder %v3026, 0.0
  %vm3173 = vcmp.ge.f32.partialorder %v3029, 0.0
  %vm3174 = vcmp.ge.f32.partialorder %v3031, 0.0
  %vm3175 = vcmp.ge.f32.partialorder %v3034, 0.0
  %vm3176 = vcmp.ge.f32.partialorder %v3036, 0.0
  %vm3177 = vcmp.ge.f32.partialorder %v3039, 0.0
  %vm3178 = vcmp.ge.f32.partialorder %v3041, 0.0
  %vm3179 = vcmp.ge.f32.partialorder %v3044, 0.0
  %vm3180 = vcmp.ge.f32.partialorder %v3046, 0.0
  %vm3181 = vcmp.ge.f32.partialorder %v3049, 0.0
  %vm3182 = vcmp.ge.f32.partialorder %v3051, 0.0
  %vm3183 = vcmp.ge.f32.partialorder %v3054, 0.0
  %vm3184 = vcmp.ge.f32.partialorder %v3056, 0.0
  %vm3185 = vcmp.ge.f32.partialorder %v3059, 0.0
  %vm3186 = vcmp.ge.f32.partialorder %v3061, 0.0
  %vm3187 = vcmp.ge.f32.partialorder %v3064, 0.0
  %vm3188 = vcmp.ge.f32.partialorder %v3066, 0.0
  %vm3189 = vcmp.ge.f32.partialorder %v3069, 0.0
  %vm3190 = vcmp.ge.f32.partialorder %v3071, 0.0
  %vm3191 = vcmp.ge.f32.partialorder %v3074, 0.0
  %vm3192 = vcmp.ge.f32.partialorder %v3076, 0.0
  %vm3193 = vcmp.ge.f32.partialorder %v3079, 0.0
  %vm3194 = vcmp.ge.f32.partialorder %v3081, 0.0
  %vm3195 = vcmp.ge.f32.partialorder %v3084, 0.0
  %vm3196 = vcmp.ge.f32.partialorder %v3086, 0.0
  %vm3197 = vcmp.ge.f32.partialorder %v3089, 0.0
  %vm3198 = vcmp.ge.f32.partialorder %v3091, 0.0
  %vm3199 = vcmp.ge.f32.partialorder %v3094, 0.0
  %vm3200 = vcmp.ge.f32.partialorder %v3096, 0.0
  %vm3201 = vcmp.ge.f32.partialorder %v3099, 0.0
  %vm3202 = vcmp.ge.f32.partialorder %v3101, 0.0
  %vm3203 = vcmp.ge.f32.partialorder %v3104, 0.0
  %vm3204 = vcmp.ge.f32.partialorder %v3106, 0.0
  %vm3205 = vcmp.ge.f32.partialorder %v3109, 0.0
  %vm3206 = vcmp.ge.f32.partialorder %v3111, 0.0
  %vm3207 = vcmp.ge.f32.partialorder %v3114, 0.0
  %vm3208 = vcmp.ge.f32.partialorder %v3116, 0.0
  %vm3209 = vcmp.ge.f32.partialorder %v3119, 0.0
  %vm3210 = vcmp.ge.f32.partialorder %v3121, 0.0
  %vm3211 = vcmp.ge.f32.partialorder %v3124, 0.0
  %vm3212 = vcmp.ge.f32.partialorder %v3126, 0.0
  %vm3213 = vcmp.ge.f32.partialorder %v3129, 0.0
  %vm3214 = vcmp.ge.f32.partialorder %v3131, 0.0
  %vm3215 = vcmp.ge.f32.partialorder %v3134, 0.0
  %vm3216 = vcmp.ge.f32.partialorder %v3136, 0.0
  %vm3217 = vcmp.ge.f32.partialorder %v3139, 0.0
  %vm3218 = vcmp.ge.f32.partialorder %v3141, 0.0
  %vm3219 = vcmp.ge.f32.partialorder %v3144, 0.0
  %vm3220 = vcmp.ge.f32.partialorder %v3146, 0.0
  %vm3221 = vcmp.ge.f32.partialorder %v3149, 0.0
  %vm3222 = vcmp.ge.f32.partialorder %v3151, 0.0
  %vm3223 = vcmp.ge.f32.partialorder %v3154, 0.0
  %vm3224 = vcmp.ge.f32.partialorder %v3156, 0.0
  %vm3225 = vcmp.ge.f32.partialorder %v3159, 0.0
  %vm3226 = vcmp.ge.f32.partialorder %v3161, 0.0
  %v3227 = vmul.f32 %v3004, 0.1
  %v3228 = vmul.f32 %v3006, 0.1
  %v3229 = vmul.f32 %v3009, 0.1
  %v3230 = vmul.f32 %v3011, 0.1
  %v3231 = vmul.f32 %v3014, 0.1
  %v3232 = vmul.f32 %v3016, 0.1
  %v3233 = vmul.f32 %v3019, 0.1
  %v3234 = vmul.f32 %v3021, 0.1
  %v3235 = vmul.f32 %v3024, 0.1
  %v3236 = vmul.f32 %v3026, 0.1
  %v3237 = vmul.f32 %v3029, 0.1
  %v3238 = vmul.f32 %v3031, 0.1
  %v3239 = vmul.f32 %v3034, 0.1
  %v3240 = vmul.f32 %v3036, 0.1
  %v3241 = vmul.f32 %v3039, 0.1
  %v3242 = vmul.f32 %v3041, 0.1
  %v3243 = vmul.f32 %v3044, 0.1
  %v3244 = vmul.f32 %v3046, 0.1
  %v3245 = vmul.f32 %v3049, 0.1
  %v3246 = vmul.f32 %v3051, 0.1
  %v3247 = vmul.f32 %v3054, 0.1
  %v3248 = vmul.f32 %v3056, 0.1
  %v3249 = vmul.f32 %v3059, 0.1
  %v3250 = vmul.f32 %v3061, 0.1
  %v3251 = vmul.f32 %v3064, 0.1
  %v3252 = vmul.f32 %v3066, 0.1
  %v3253 = vmul.f32 %v3069, 0.1
  %v3254 = vmul.f32 %v3071, 0.1
  %v3255 = vmul.f32 %v3074, 0.1
  %v3256 = vmul.f32 %v3076, 0.1
  %v3257 = vmul.f32 %v3079, 0.1
  %v3258 = vmul.f32 %v3081, 0.1
  %v3259 = vmul.f32 %v3084, 0.1
  %v3260 = vmul.f32 %v3086, 0.1
  %v3261 = vmul.f32 %v3089, 0.1
  %v3262 = vmul.f32 %v3091, 0.1
  %v3263 = vmul.f32 %v3094, 0.1
  %v3264 = vmul.f32 %v3096, 0.1
  %v3265 = vmul.f32 %v3099, 0.1
  %v3266 = vmul.f32 %v3101, 0.1
  %v3267 = vmul.f32 %v3104, 0.1
  %v3268 = vmul.f32 %v3106, 0.1
  %v3269 = vmul.f32 %v3109, 0.1
  %v3270 = vmul.f32 %v3111, 0.1
  %v3271 = vmul.f32 %v3114, 0.1
  %v3272 = vmul.f32 %v3116, 0.1
  %v3273 = vmul.f32 %v3119, 0.1
  %v3274 = vmul.f32 %v3121, 0.1
  %v3275 = vmul.f32 %v3124, 0.1
  %v3276 = vmul.f32 %v3126, 0.1
  %v3277 = vmul.f32 %v3129, 0.1
  %v3278 = vmul.f32 %v3131, 0.1
  %v3279 = vmul.f32 %v3134, 0.1
  %v3280 = vmul.f32 %v3136, 0.1
  %v3281 = vmul.f32 %v3139, 0.1
  %v3282 = vmul.f32 %v3141, 0.1
  %v3283 = vmul.f32 %v3144, 0.1
  %v3284 = vmul.f32 %v3146, 0.1
  %v3285 = vmul.f32 %v3149, 0.1
  %v3286 = vmul.f32 %v3151, 0.1
  %v3287 = vmul.f32 %v3154, 0.1
  %v3288 = vmul.f32 %v3156, 0.1
  %v3289 = vmul.f32 %v3159, 0.1
  %v3290 = vmul.f32 %v3161, 0.1
  %v3291 = vsel %vm3163, %v3004, %v3227
  %v3292 = vsel %vm3164, %v3006, %v3228
  %v3293 = vsel %vm3165, %v3009, %v3229
  %v3294 = vsel %vm3166, %v3011, %v3230
  %v3295 = vsel %vm3167, %v3014, %v3231
  %v3296 = vsel %vm3168, %v3016, %v3232
  %v3297 = vsel %vm3169, %v3019, %v3233
  %v3298 = vsel %vm3170, %v3021, %v3234
  %v3299 = vsel %vm3171, %v3024, %v3235
  %v3300 = vsel %vm3172, %v3026, %v3236
  %v3301 = vsel %vm3173, %v3029, %v3237
  %v3302 = vsel %vm3174, %v3031, %v3238
  %v3303 = vsel %vm3175, %v3034, %v3239
  %v3304 = vsel %vm3176, %v3036, %v3240
  %v3305 = vsel %vm3177, %v3039, %v3241
  %v3306 = vsel %vm3178, %v3041, %v3242
  %v3307 = vsel %vm3179, %v3044, %v3243
  %v3308 = vsel %vm3180, %v3046, %v3244
  %v3309 = vsel %vm3181, %v3049, %v3245
  %v3310 = vsel %vm3182, %v3051, %v3246
  %v3311 = vsel %vm3183, %v3054, %v3247
  %v3312 = vsel %vm3184, %v3056, %v3248
  %v3313 = vsel %vm3185, %v3059, %v3249
  %v3314 = vsel %vm3186, %v3061, %v3250
  %v3315 = vsel %vm3187, %v3064, %v3251
  %v3316 = vsel %vm3188, %v3066, %v3252
  %v3317 = vsel %vm3189, %v3069, %v3253
  %v3318 = vsel %vm3190, %v3071, %v3254
  %v3319 = vsel %vm3191, %v3074, %v3255
  %v3320 = vsel %vm3192, %v3076, %v3256
  %v3321 = vsel %vm3193, %v3079, %v3257
  %v3322 = vsel %vm3194, %v3081, %v3258
  %v3323 = vsel %vm3195, %v3084, %v3259
  %v3324 = vsel %vm3196, %v3086, %v3260
  %v3325 = vsel %vm3197, %v3089, %v3261
  %v3326 = vsel %vm3198, %v3091, %v3262
  %v3327 = vsel %vm3199, %v3094, %v3263
  %v3328 = vsel %vm3200, %v3096, %v3264
  %v3329 = vsel %vm3201, %v3099, %v3265
  %v3330 = vsel %vm3202, %v3101, %v3266
  %v3331 = vsel %vm3203, %v3104, %v3267
  %v3332 = vsel %vm3204, %v3106, %v3268
  %v3333 = vsel %vm3205, %v3109, %v3269
  %v3334 = vsel %vm3206, %v3111, %v3270
  %v3335 = vsel %vm3207, %v3114, %v3271
  %v3336 = vsel %vm3208, %v3116, %v3272
  %v3337 = vsel %vm3209, %v3119, %v3273
  %v3338 = vsel %vm3210, %v3121, %v3274
  %v3339 = vsel %vm3211, %v3124, %v3275
  %v3340 = vsel %vm3212, %v3126, %v3276
  %v3341 = vsel %vm3213, %v3129, %v3277
  %v3342 = vsel %vm3214, %v3131, %v3278
  %v3343 = vsel %vm3215, %v3134, %v3279
  %v3344 = vsel %vm3216, %v3136, %v3280
  %v3345 = vsel %vm3217, %v3139, %v3281
  %v3346 = vsel %vm3218, %v3141, %v3282
  %v3347 = vsel %vm3219, %v3144, %v3283
  %v3348 = vsel %vm3220, %v3146, %v3284
  %v3349 = vsel %vm3221, %v3149, %v3285
  %v3350 = vsel %vm3222, %v3151, %v3286
  %v3351 = vsel %vm3223, %v3154, %v3287
  %v3352 = vsel %vm3224, %v3156, %v3288
  %v3353 = vsel %vm3225, %v3159, %v3289
  %v3354 = vsel %vm3226, %v3161, %v3290
  %v3355 = vadd.f32 %v2424, %v3291
  %v3356 = vadd.f32 %v2425, %v3292
  %v3357 = vadd.f32 %v2426, %v3293
  %v3358 = vadd.f32 %v2427, %v3294
  %v3359 = vadd.f32 %v2428, %v3295
  %v3360 = vadd.f32 %v2429, %v3296
  %v3361 = vadd.f32 %v2430, %v3297
  %v3362 = vadd.f32 %v2431, %v3298
  %v3363 = vadd.f32 %v2432, %v3299
  %v3364 = vadd.f32 %v2433, %v3300
  %v3365 = vadd.f32 %v2434, %v3301
  %v3366 = vadd.f32 %v2435, %v3302
  %v3367 = vadd.f32 %v2436, %v3303
  %v3368 = vadd.f32 %v2437, %v3304
  %v3369 = vadd.f32 %v2438, %v3305
  %v3370 = vadd.f32 %v2439, %v3306
  %v3371 = vadd.f32 %v2440, %v3307
  %v3372 = vadd.f32 %v2441, %v3308
  %v3373 = vadd.f32 %v2442, %v3309
  %v3374 = vadd.f32 %v2443, %v3310
  %v3375 = vadd.f32 %v2444, %v3311
  %v3376 = vadd.f32 %v2445, %v3312
  %v3377 = vadd.f32 %v2446, %v3313
  %v3378 = vadd.f32 %v2447, %v3314
  %v3379 = vadd.f32 %v2448, %v3315
  %v3380 = vadd.f32 %v2449, %v3316
  %v3381 = vadd.f32 %v2450, %v3317
  %v3382 = vadd.f32 %v2451, %v3318
  %v3383 = vadd.f32 %v2452, %v3319
  %v3384 = vadd.f32 %v2453, %v3320
  %v3385 = vadd.f32 %v2454, %v3321
  %v3386 = vadd.f32 %v2455, %v3322
  %v3387 = vadd.f32 %v2456, %v3323
  %v3388 = vadd.f32 %v2457, %v3324
  %v3389 = vadd.f32 %v2458, %v3325
  %v3390 = vadd.f32 %v2459, %v3326
  %v3391 = vadd.f32 %v2460, %v3327
  %v3392 = vadd.f32 %v2461, %v3328
  %v3393 = vadd.f32 %v2462, %v3329
  %v3394 = vadd.f32 %v2463, %v3330
  %v3395 = vadd.f32 %v2464, %v3331
  %v3396 = vadd.f32 %v2465, %v3332
  %v3397 = vadd.f32 %v2466, %v3333
  %v3398 = vadd.f32 %v2467, %v3334
  %v3399 = vadd.f32 %v2468, %v3335
  %v3400 = vadd.f32 %v2469, %v3336
  %v3401 = vadd.f32 %v2470, %v3337
  %v3402 = vadd.f32 %v2471, %v3338
  %v3403 = vadd.f32 %v2472, %v3339
  %v3404 = vadd.f32 %v2473, %v3340
  %v3405 = vadd.f32 %v2474, %v3341
  %v3406 = vadd.f32 %v2475, %v3342
  %v3407 = vadd.f32 %v2476, %v3343
  %v3408 = vadd.f32 %v2477, %v3344
  %v3409 = vadd.f32 %v2478, %v3345
  %v3410 = vadd.f32 %v2479, %v3346
  %v3411 = vadd.f32 %v2480, %v3347
  %v3412 = vadd.f32 %v2481, %v3348
  %v3413 = vadd.f32 %v2482, %v3349
  %v3414 = vadd.f32 %v2483, %v3350
  %v3415 = vadd.f32 %v2484, %v3351
  %v3416 = vadd.f32 %v2485, %v3352
  %v3417 = vadd.f32 %v2486, %v3353
  %v3418 = vadd.f32 %v2487, %v3354
  %v3419 = vld [vmem:[#allocation2] sm:$0xff]
  %v3420 = vld [vmem:[#allocation2 + $0x8] sm:$0xff]
  %v3421 = vld [vmem:[#allocation2 + $0x10] sm:$0xff]
  %v3422 = vld [vmem:[#allocation2 + $0x18] sm:$0xff]
  %v3423 = vld [vmem:[#allocation2 + $0x20] sm:$0xff]
  %v3424 = vld [vmem:[#allocation2 + $0x28] sm:$0xff]
  %v3425 = vld [vmem:[#allocation2 + $0x30] sm:$0xff]
  %v3426 = vld [vmem:[#allocation2 + $0x38] sm:$0xff]
  %v3427 = vld [vmem:[#allocation2 + $0x40] sm:$0xff]
  %v3428 = vld [vmem:[#allocation2 + $0x48] sm:$0xff]
  %v3429 = vld [vmem:[#allocation2 + $0x50] sm:$0xff]
  %v3430 = vld [vmem:[#allocation2 + $0x58] sm:$0xff]
  %v3431 = vld [vmem:[#allocation2 + $0x60] sm:$0xff]
  %v3432 = vld [vmem:[#allocation2 + $0x68] sm:$0xff]
  %v3433 = vld [vmem:[#allocation2 + $0x70] sm:$0xff]
  %v3434 = vld [vmem:[#allocation2 + $0x78] sm:$0xff]
  %v3435 = vld [vmem:[#allocation2 + $0x80] sm:$0xff]
  %v3436 = vld [vmem:[#allocation2 + $0x88] sm:$0xff]
  %v3437 = vld [vmem:[#allocation2 + $0x90] sm:$0xff]
  %v3438 = vld [vmem:[#allocation2 + $0x98] sm:$0xff]
  %v3439 = vld [vmem:[#allocation2 + $0xa0] sm:$0xff]
  %v3440 = vld [vmem:[#allocation2 + $0xa8] sm:$0xff]
  %v3441 = vld [vmem:[#allocation2 + $0xb0] sm:$0xff]
  %v3442 = vld [vmem:[#allocation2 + $0xb8] sm:$0xff]
  %v3443 = vld [vmem:[#allocation2 + $0xc0] sm:$0xff]
  %v3444 = vld [vmem:[#allocation2 + $0xc8] sm:$0xff]
  %v3445 = vld [vmem:[#allocation2 + $0xd0] sm:$0xff]
  %v3446 = vld [vmem:[#allocation2 + $0xd8] sm:$0xff]
  %v3447 = vld [vmem:[#allocation2 + $0xe0] sm:$0xff]
  %v3448 = vld [vmem:[#allocation2 + $0xe8] sm:$0xff]
  %v3449 = vld [vmem:[#allocation2 + $0xf0] sm:$0xff]
  %v3450 = vld [vmem:[#allocation2 + $0xf8] sm:$0xff]
  %v3451 = vld [vmem:[#allocation2 + $0x100] sm:$0xff]
  %v3452 = vld [vmem:[#allocation2 + $0x108] sm:$0xff]
  %v3453 = vld [vmem:[#allocation2 + $0x110] sm:$0xff]
  %v3454 = vld [vmem:[#allocation2 + $0x118] sm:$0xff]
  %v3455 = vld [vmem:[#allocation2 + $0x120] sm:$0xff]
  %v3456 = vld [vmem:[#allocation2 + $0x128] sm:$0xff]
  %v3457 = vld [vmem:[#allocation2 + $0x130] sm:$0xff]
  %v3458 = vld [vmem:[#allocation2 + $0x138] sm:$0xff]
  %v3459 = vld [vmem:[#allocation2 + $0x140] sm:$0xff]
  %v3460 = vld [vmem:[#allocation2 + $0x148] sm:$0xff]
  %v3461 = vld [vmem:[#allocation2 + $0x150] sm:$0xff]
  %v3462 = vld [vmem:[#allocation2 + $0x158] sm:$0xff]
  %v3463 = vld [vmem:[#allocation2 + $0x160] sm:$0xff]
  %v3464 = vld [vmem:[#allocation2 + $0x168] sm:$0xff]
  %v3465 = vld [vmem:[#allocation2 + $0x170] sm:$0xff]
  %v3466 = vld [vmem:[#allocation2 + $0x178] sm:$0xff]
  %v3467 = vld [vmem:[#allocation2 + $0x180] sm:$0xff]
  %v3468 = vld [vmem:[#allocation2 + $0x188] sm:$0xff]
  %v3469 = vld [vmem:[#allocation2 + $0x190] sm:$0xff]
  %v3470 = vld [vmem:[#allocation2 + $0x198] sm:$0xff]
  %v3471 = vld [vmem:[#allocation2 + $0x1a0] sm:$0xff]
  %v3472 = vld [vmem:[#allocation2 + $0x1a8] sm:$0xff]
  %v3473 = vld [vmem:[#allocation2 + $0x1b0] sm:$0xff]
  %v3474 = vld [vmem:[#allocation2 + $0x1b8] sm:$0xff]
  %v3475 = vld [vmem:[#allocation2 + $0x1c0] sm:$0xff]
  %v3476 = vld [vmem:[#allocation2 + $0x1c8] sm:$0xff]
  %v3477 = vld [vmem:[#allocation2 + $0x1d0] sm:$0xff]
  %v3478 = vld [vmem:[#allocation2 + $0x1d8] sm:$0xff]
  %v3479 = vld [vmem:[#allocation2 + $0x1e0] sm:$0xff]
  %v3480 = vld [vmem:[#allocation2 + $0x1e8] sm:$0xff]
  %v3481 = vld [vmem:[#allocation2 + $0x1f0] sm:$0xff]
  %v3482 = vld [vmem:[#allocation2 + $0x1f8] sm:$0xff]
  %v3483 = vpack.c.bf16 %v3356, %v3355
  %v3484 = vpack.c.bf16 %v3358, %v3357
  %v3485 = vpack.c.bf16 %v3360, %v3359
  %v3486 = vpack.c.bf16 %v3362, %v3361
  %v3487 = vpack.c.bf16 %v3364, %v3363
  %v3488 = vpack.c.bf16 %v3366, %v3365
  %v3489 = vpack.c.bf16 %v3368, %v3367
  %v3490 = vpack.c.bf16 %v3370, %v3369
  %v3491 = vpack.c.bf16 %v3372, %v3371
  %v3492 = vpack.c.bf16 %v3374, %v3373
  %v3493 = vpack.c.bf16 %v3376, %v3375
  %v3494 = vpack.c.bf16 %v3378, %v3377
  %v3495 = vpack.c.bf16 %v3380, %v3379
  %v3496 = vpack.c.bf16 %v3382, %v3381
  %v3497 = vpack.c.bf16 %v3384, %v3383
  %v3498 = vpack.c.bf16 %v3386, %v3385
  %v3499 = vpack.c.bf16 %v3388, %v3387
  %v3500 = vpack.c.bf16 %v3390, %v3389
  %v3501 = vpack.c.bf16 %v3392, %v3391
  %v3502 = vpack.c.bf16 %v3394, %v3393
  %v3503 = vpack.c.bf16 %v3396, %v3395
  %v3504 = vpack.c.bf16 %v3398, %v3397
  %v3505 = vpack.c.bf16 %v3400, %v3399
  %v3506 = vpack.c.bf16 %v3402, %v3401
  %v3507 = vpack.c.bf16 %v3404, %v3403
  %v3508 = vpack.c.bf16 %v3406, %v3405
  %v3509 = vpack.c.bf16 %v3408, %v3407
  %v3510 = vpack.c.bf16 %v3410, %v3409
  %v3511 = vpack.c.bf16 %v3412, %v3411
  %v3512 = vpack.c.bf16 %v3414, %v3413
  %v3513 = vpack.c.bf16 %v3416, %v3415
  %v3514 = vpack.c.bf16 %v3418, %v3417
  %s3515 = scalar_lea.vmem %s7, 32
  %v3516 = vld [vmem:[%s3515] sm:$0xf]
  %v3517 = vld [vmem:[%s3515 + $0x4] sm:$0xf]
  %v3518 = vld [vmem:[%s3515 + $0x8] sm:$0xf]
  %v3519 = vld [vmem:[%s3515 + $0xc] sm:$0xf]
  %v3524 = vunpack.c.l.b16 %v3516
  %v3525 = vunpack.c.l.b16 %v3517
  %v3526 = vunpack.c.l.b16 %v3518
  %v3527 = vunpack.c.l.b16 %v3519
  %v3528 = vpack.c.b16 %v3525, %v3524
  %v3529 = vpack.c.b16 %v3527, %v3526
  %v3533 = vsel %vm274, %v3483, 0
  %v3536 = vsel %vm274, %v3484, 0
  %v3539 = vsel %vm274, %v3485, 0
  %v3542 = vsel %vm274, %v3486, 0
  %v3545 = vsel %vm274, %v3487, 0
  %v3548 = vsel %vm274, %v3488, 0
  %v3551 = vsel %vm274, %v3489, 0
  %v3554 = vsel %vm274, %v3490, 0
  %v3557 = vsel %vm274, %v3491, 0
  %v3560 = vsel %vm274, %v3492, 0
  %v3563 = vsel %vm274, %v3493, 0
  %v3566 = vsel %vm274, %v3494, 0
  %v3569 = vsel %vm274, %v3495, 0
  %v3572 = vsel %vm274, %v3496, 0
  %v3575 = vsel %vm274, %v3497, 0
  %v3578 = vsel %vm274, %v3498, 0
  %v3581 = vsel %vm274, %v3499, 0
  %v3584 = vsel %vm274, %v3500, 0
  %v3587 = vsel %vm274, %v3501, 0
  %v3590 = vsel %vm274, %v3502, 0
  %v3593 = vsel %vm274, %v3503, 0
  %v3596 = vsel %vm274, %v3504, 0
  %v3599 = vsel %vm274, %v3505, 0
  %v3602 = vsel %vm274, %v3506, 0
  %v3605 = vsel %vm274, %v3507, 0
  %v3608 = vsel %vm274, %v3508, 0
  %v3611 = vsel %vm274, %v3509, 0
  %v3614 = vsel %vm274, %v3510, 0
  %v3617 = vsel %vm274, %v3511, 0
  %v3620 = vsel %vm274, %v3512, 0
  %v3623 = vsel %vm274, %v3513, 0
  %v3626 = vsel %vm274, %v3514, 0
  %3628 = vmatpush.bf16.msra.mxu0 0
  %3629 = vmatpush.bf16.msra.mxu0 0
  %3630 = vmatpush.bf16.msra.mxu0 0
  %3631 = vmatpush.bf16.msra.mxu0 0
  %3632 = vmatpush.bf16.msra.mxu0 0
  %3633 = vmatpush.bf16.msra.mxu0 0
  %3634 = vmatpush.bf16.msra.mxu0 %v3529
  %3635 = vmatpush.bf16.msra.mxu0 %v3528
  %3636 = vmatmul.bf16.gmra.mxu0 %v3533
  %v3637 = vpop.f32.mrf.mxu0
  %v3638 = vadd.f32 0.0, %v3637
  %v3639 = vpop.f32.mrf.mxu0
  %v3640 = vadd.f32 0.0, %v3639
  %3641 = vmatmul.bf16.gmra.mxu0 %v3536
  %v3642 = vpop.f32.mrf.mxu0
  %v3643 = vadd.f32 0.0, %v3642
  %v3644 = vpop.f32.mrf.mxu0
  %v3645 = vadd.f32 0.0, %v3644
  %3646 = vmatmul.bf16.gmra.mxu0 %v3539
  %v3647 = vpop.f32.mrf.mxu0
  %v3648 = vadd.f32 0.0, %v3647
  %v3649 = vpop.f32.mrf.mxu0
  %v3650 = vadd.f32 0.0, %v3649
  %3651 = vmatmul.bf16.gmra.mxu0 %v3542
  %v3652 = vpop.f32.mrf.mxu0
  %v3653 = vadd.f32 0.0, %v3652
  %v3654 = vpop.f32.mrf.mxu0
  %v3655 = vadd.f32 0.0, %v3654
  %3656 = vmatmul.bf16.gmra.mxu0 %v3545
  %v3657 = vpop.f32.mrf.mxu0
  %v3658 = vadd.f32 0.0, %v3657
  %v3659 = vpop.f32.mrf.mxu0
  %v3660 = vadd.f32 0.0, %v3659
  %3661 = vmatmul.bf16.gmra.mxu0 %v3548
  %v3662 = vpop.f32.mrf.mxu0
  %v3663 = vadd.f32 0.0, %v3662
  %v3664 = vpop.f32.mrf.mxu0
  %v3665 = vadd.f32 0.0, %v3664
  %3666 = vmatmul.bf16.gmra.mxu0 %v3551
  %v3667 = vpop.f32.mrf.mxu0
  %v3668 = vadd.f32 0.0, %v3667
  %v3669 = vpop.f32.mrf.mxu0
  %v3670 = vadd.f32 0.0, %v3669
  %3671 = vmatmul.bf16.gmra.mxu0 %v3554
  %v3672 = vpop.f32.mrf.mxu0
  %v3673 = vadd.f32 0.0, %v3672
  %v3674 = vpop.f32.mrf.mxu0
  %v3675 = vadd.f32 0.0, %v3674
  %3676 = vmatmul.bf16.gmra.mxu0 %v3557
  %v3677 = vpop.f32.mrf.mxu0
  %v3678 = vadd.f32 0.0, %v3677
  %v3679 = vpop.f32.mrf.mxu0
  %v3680 = vadd.f32 0.0, %v3679
  %3681 = vmatmul.bf16.gmra.mxu0 %v3560
  %v3682 = vpop.f32.mrf.mxu0
  %v3683 = vadd.f32 0.0, %v3682
  %v3684 = vpop.f32.mrf.mxu0
  %v3685 = vadd.f32 0.0, %v3684
  %3686 = vmatmul.bf16.gmra.mxu0 %v3563
  %v3687 = vpop.f32.mrf.mxu0
  %v3688 = vadd.f32 0.0, %v3687
  %v3689 = vpop.f32.mrf.mxu0
  %v3690 = vadd.f32 0.0, %v3689
  %3691 = vmatmul.bf16.gmra.mxu0 %v3566
  %v3692 = vpop.f32.mrf.mxu0
  %v3693 = vadd.f32 0.0, %v3692
  %v3694 = vpop.f32.mrf.mxu0
  %v3695 = vadd.f32 0.0, %v3694
  %3696 = vmatmul.bf16.gmra.mxu0 %v3569
  %v3697 = vpop.f32.mrf.mxu0
  %v3698 = vadd.f32 0.0, %v3697
  %v3699 = vpop.f32.mrf.mxu0
  %v3700 = vadd.f32 0.0, %v3699
  %3701 = vmatmul.bf16.gmra.mxu0 %v3572
  %v3702 = vpop.f32.mrf.mxu0
  %v3703 = vadd.f32 0.0, %v3702
  %v3704 = vpop.f32.mrf.mxu0
  %v3705 = vadd.f32 0.0, %v3704
  %3706 = vmatmul.bf16.gmra.mxu0 %v3575
  %v3707 = vpop.f32.mrf.mxu0
  %v3708 = vadd.f32 0.0, %v3707
  %v3709 = vpop.f32.mrf.mxu0
  %v3710 = vadd.f32 0.0, %v3709
  %3711 = vmatmul.bf16.gmra.mxu0 %v3578
  %v3712 = vpop.f32.mrf.mxu0
  %v3713 = vadd.f32 0.0, %v3712
  %v3714 = vpop.f32.mrf.mxu0
  %v3715 = vadd.f32 0.0, %v3714
  %3716 = vmatmul.bf16.gmra.mxu0 %v3581
  %v3717 = vpop.f32.mrf.mxu0
  %v3718 = vadd.f32 0.0, %v3717
  %v3719 = vpop.f32.mrf.mxu0
  %v3720 = vadd.f32 0.0, %v3719
  %3721 = vmatmul.bf16.gmra.mxu0 %v3584
  %v3722 = vpop.f32.mrf.mxu0
  %v3723 = vadd.f32 0.0, %v3722
  %v3724 = vpop.f32.mrf.mxu0
  %v3725 = vadd.f32 0.0, %v3724
  %3726 = vmatmul.bf16.gmra.mxu0 %v3587
  %v3727 = vpop.f32.mrf.mxu0
  %v3728 = vadd.f32 0.0, %v3727
  %v3729 = vpop.f32.mrf.mxu0
  %v3730 = vadd.f32 0.0, %v3729
  %3731 = vmatmul.bf16.gmra.mxu0 %v3590
  %v3732 = vpop.f32.mrf.mxu0
  %v3733 = vadd.f32 0.0, %v3732
  %v3734 = vpop.f32.mrf.mxu0
  %v3735 = vadd.f32 0.0, %v3734
  %3736 = vmatmul.bf16.gmra.mxu0 %v3593
  %v3737 = vpop.f32.mrf.mxu0
  %v3738 = vadd.f32 0.0, %v3737
  %v3739 = vpop.f32.mrf.mxu0
  %v3740 = vadd.f32 0.0, %v3739
  %3741 = vmatmul.bf16.gmra.mxu0 %v3596
  %v3742 = vpop.f32.mrf.mxu0
  %v3743 = vadd.f32 0.0, %v3742
  %v3744 = vpop.f32.mrf.mxu0
  %v3745 = vadd.f32 0.0, %v3744
  %3746 = vmatmul.bf16.gmra.mxu0 %v3599
  %v3747 = vpop.f32.mrf.mxu0
  %v3748 = vadd.f32 0.0, %v3747
  %v3749 = vpop.f32.mrf.mxu0
  %v3750 = vadd.f32 0.0, %v3749
  %3751 = vmatmul.bf16.gmra.mxu0 %v3602
  %v3752 = vpop.f32.mrf.mxu0
  %v3753 = vadd.f32 0.0, %v3752
  %v3754 = vpop.f32.mrf.mxu0
  %v3755 = vadd.f32 0.0, %v3754
  %3756 = vmatmul.bf16.gmra.mxu0 %v3605
  %v3757 = vpop.f32.mrf.mxu0
  %v3758 = vadd.f32 0.0, %v3757
  %v3759 = vpop.f32.mrf.mxu0
  %v3760 = vadd.f32 0.0, %v3759
  %3761 = vmatmul.bf16.gmra.mxu0 %v3608
  %v3762 = vpop.f32.mrf.mxu0
  %v3763 = vadd.f32 0.0, %v3762
  %v3764 = vpop.f32.mrf.mxu0
  %v3765 = vadd.f32 0.0, %v3764
  %3766 = vmatmul.bf16.gmra.mxu0 %v3611
  %v3767 = vpop.f32.mrf.mxu0
  %v3768 = vadd.f32 0.0, %v3767
  %v3769 = vpop.f32.mrf.mxu0
  %v3770 = vadd.f32 0.0, %v3769
  %3771 = vmatmul.bf16.gmra.mxu0 %v3614
  %v3772 = vpop.f32.mrf.mxu0
  %v3773 = vadd.f32 0.0, %v3772
  %v3774 = vpop.f32.mrf.mxu0
  %v3775 = vadd.f32 0.0, %v3774
  %3776 = vmatmul.bf16.gmra.mxu0 %v3617
  %v3777 = vpop.f32.mrf.mxu0
  %v3778 = vadd.f32 0.0, %v3777
  %v3779 = vpop.f32.mrf.mxu0
  %v3780 = vadd.f32 0.0, %v3779
  %3781 = vmatmul.bf16.gmra.mxu0 %v3620
  %v3782 = vpop.f32.mrf.mxu0
  %v3783 = vadd.f32 0.0, %v3782
  %v3784 = vpop.f32.mrf.mxu0
  %v3785 = vadd.f32 0.0, %v3784
  %3786 = vmatmul.bf16.gmra.mxu0 %v3623
  %v3787 = vpop.f32.mrf.mxu0
  %v3788 = vadd.f32 0.0, %v3787
  %v3789 = vpop.f32.mrf.mxu0
  %v3790 = vadd.f32 0.0, %v3789
  %3791 = vmatmul.bf16.gmra.mxu0 %v3626
  %v3792 = vpop.f32.mrf.mxu0
  %v3793 = vadd.f32 0.0, %v3792
  %v3794 = vpop.f32.mrf.mxu0
  %v3795 = vadd.f32 0.0, %v3794
  %3796 = vdwg.mxu0
  %v3797 = vadd.f32 %v3419, %v3638
  %v3798 = vadd.f32 %v3420, %v3640
  %v3799 = vadd.f32 %v3421, %v3643
  %v3800 = vadd.f32 %v3422, %v3645
  %v3801 = vadd.f32 %v3423, %v3648
  %v3802 = vadd.f32 %v3424, %v3650
  %v3803 = vadd.f32 %v3425, %v3653
  %v3804 = vadd.f32 %v3426, %v3655
  %v3805 = vadd.f32 %v3427, %v3658
  %v3806 = vadd.f32 %v3428, %v3660
  %v3807 = vadd.f32 %v3429, %v3663
  %v3808 = vadd.f32 %v3430, %v3665
  %v3809 = vadd.f32 %v3431, %v3668
  %v3810 = vadd.f32 %v3432, %v3670
  %v3811 = vadd.f32 %v3433, %v3673
  %v3812 = vadd.f32 %v3434, %v3675
  %v3813 = vadd.f32 %v3435, %v3678
  %v3814 = vadd.f32 %v3436, %v3680
  %v3815 = vadd.f32 %v3437, %v3683
  %v3816 = vadd.f32 %v3438, %v3685
  %v3817 = vadd.f32 %v3439, %v3688
  %v3818 = vadd.f32 %v3440, %v3690
  %v3819 = vadd.f32 %v3441, %v3693
  %v3820 = vadd.f32 %v3442, %v3695
  %v3821 = vadd.f32 %v3443, %v3698
  %v3822 = vadd.f32 %v3444, %v3700
  %v3823 = vadd.f32 %v3445, %v3703
  %v3824 = vadd.f32 %v3446, %v3705
  %v3825 = vadd.f32 %v3447, %v3708
  %v3826 = vadd.f32 %v3448, %v3710
  %v3827 = vadd.f32 %v3449, %v3713
  %v3828 = vadd.f32 %v3450, %v3715
  %v3829 = vadd.f32 %v3451, %v3718
  %v3830 = vadd.f32 %v3452, %v3720
  %v3831 = vadd.f32 %v3453, %v3723
  %v3832 = vadd.f32 %v3454, %v3725
  %v3833 = vadd.f32 %v3455, %v3728
  %v3834 = vadd.f32 %v3456, %v3730
  %v3835 = vadd.f32 %v3457, %v3733
  %v3836 = vadd.f32 %v3458, %v3735
  %v3837 = vadd.f32 %v3459, %v3738
  %v3838 = vadd.f32 %v3460, %v3740
  %v3839 = vadd.f32 %v3461, %v3743
  %v3840 = vadd.f32 %v3462, %v3745
  %v3841 = vadd.f32 %v3463, %v3748
  %v3842 = vadd.f32 %v3464, %v3750
  %v3843 = vadd.f32 %v3465, %v3753
  %v3844 = vadd.f32 %v3466, %v3755
  %v3845 = vadd.f32 %v3467, %v3758
  %v3846 = vadd.f32 %v3468, %v3760
  %v3847 = vadd.f32 %v3469, %v3763
  %v3848 = vadd.f32 %v3470, %v3765
  %v3849 = vadd.f32 %v3471, %v3768
  %v3850 = vadd.f32 %v3472, %v3770
  %v3851 = vadd.f32 %v3473, %v3773
  %v3852 = vadd.f32 %v3474, %v3775
  %v3853 = vadd.f32 %v3475, %v3778
  %v3854 = vadd.f32 %v3476, %v3780
  %v3855 = vadd.f32 %v3477, %v3783
  %v3856 = vadd.f32 %v3478, %v3785
  %v3857 = vadd.f32 %v3479, %v3788
  %v3858 = vadd.f32 %v3480, %v3790
  %v3859 = vadd.f32 %v3481, %v3793
  %v3860 = vadd.f32 %v3482, %v3795
  %3861 = vst [vmem:[#allocation2] sm:$0xff] %v3797
  %3862 = vst [vmem:[#allocation2 + $0x8] sm:$0xff] %v3798
  %3863 = vst [vmem:[#allocation2 + $0x10] sm:$0xff] %v3799
  %3864 = vst [vmem:[#allocation2 + $0x18] sm:$0xff] %v3800
  %3865 = vst [vmem:[#allocation2 + $0x20] sm:$0xff] %v3801
  %3866 = vst [vmem:[#allocation2 + $0x28] sm:$0xff] %v3802
  %3867 = vst [vmem:[#allocation2 + $0x30] sm:$0xff] %v3803
  %3868 = vst [vmem:[#allocation2 + $0x38] sm:$0xff] %v3804
  %3869 = vst [vmem:[#allocation2 + $0x40] sm:$0xff] %v3805
  %3870 = vst [vmem:[#allocation2 + $0x48] sm:$0xff] %v3806
  %3871 = vst [vmem:[#allocation2 + $0x50] sm:$0xff] %v3807
  %3872 = vst [vmem:[#allocation2 + $0x58] sm:$0xff] %v3808
  %3873 = vst [vmem:[#allocation2 + $0x60] sm:$0xff] %v3809
  %3874 = vst [vmem:[#allocation2 + $0x68] sm:$0xff] %v3810
  %3875 = vst [vmem:[#allocation2 + $0x70] sm:$0xff] %v3811
  %3876 = vst [vmem:[#allocation2 + $0x78] sm:$0xff] %v3812
  %3877 = vst [vmem:[#allocation2 + $0x80] sm:$0xff] %v3813
  %3878 = vst [vmem:[#allocation2 + $0x88] sm:$0xff] %v3814
  %3879 = vst [vmem:[#allocation2 + $0x90] sm:$0xff] %v3815
  %3880 = vst [vmem:[#allocation2 + $0x98] sm:$0xff] %v3816
  %3881 = vst [vmem:[#allocation2 + $0xa0] sm:$0xff] %v3817
  %3882 = vst [vmem:[#allocation2 + $0xa8] sm:$0xff] %v3818
  %3883 = vst [vmem:[#allocation2 + $0xb0] sm:$0xff] %v3819
  %3884 = vst [vmem:[#allocation2 + $0xb8] sm:$0xff] %v3820
  %3885 = vst [vmem:[#allocation2 + $0xc0] sm:$0xff] %v3821
  %3886 = vst [vmem:[#allocation2 + $0xc8] sm:$0xff] %v3822
  %3887 = vst [vmem:[#allocation2 + $0xd0] sm:$0xff] %v3823
  %3888 = vst [vmem:[#allocation2 + $0xd8] sm:$0xff] %v3824
  %3889 = vst [vmem:[#allocation2 + $0xe0] sm:$0xff] %v3825
  %3890 = vst [vmem:[#allocation2 + $0xe8] sm:$0xff] %v3826
  %3891 = vst [vmem:[#allocation2 + $0xf0] sm:$0xff] %v3827
  %3892 = vst [vmem:[#allocation2 + $0xf8] sm:$0xff] %v3828
  %3893 = vst [vmem:[#allocation2 + $0x100] sm:$0xff] %v3829
  %3894 = vst [vmem:[#allocation2 + $0x108] sm:$0xff] %v3830
  %3895 = vst [vmem:[#allocation2 + $0x110] sm:$0xff] %v3831
  %3896 = vst [vmem:[#allocation2 + $0x118] sm:$0xff] %v3832
  %3897 = vst [vmem:[#allocation2 + $0x120] sm:$0xff] %v3833
  %3898 = vst [vmem:[#allocation2 + $0x128] sm:$0xff] %v3834
  %3899 = vst [vmem:[#allocation2 + $0x130] sm:$0xff] %v3835
  %3900 = vst [vmem:[#allocation2 + $0x138] sm:$0xff] %v3836
  %3901 = vst [vmem:[#allocation2 + $0x140] sm:$0xff] %v3837
  %3902 = vst [vmem:[#allocation2 + $0x148] sm:$0xff] %v3838
  %3903 = vst [vmem:[#allocation2 + $0x150] sm:$0xff] %v3839
  %3904 = vst [vmem:[#allocation2 + $0x158] sm:$0xff] %v3840
  %3905 = vst [vmem:[#allocation2 + $0x160] sm:$0xff] %v3841
  %3906 = vst [vmem:[#allocation2 + $0x168] sm:$0xff] %v3842
  %3907 = vst [vmem:[#allocation2 + $0x170] sm:$0xff] %v3843
  %3908 = vst [vmem:[#allocation2 + $0x178] sm:$0xff] %v3844
  %3909 = vst [vmem:[#allocation2 + $0x180] sm:$0xff] %v3845
  %3910 = vst [vmem:[#allocation2 + $0x188] sm:$0xff] %v3846
  %3911 = vst [vmem:[#allocation2 + $0x190] sm:$0xff] %v3847
  %3912 = vst [vmem:[#allocation2 + $0x198] sm:$0xff] %v3848
  %3913 = vst [vmem:[#allocation2 + $0x1a0] sm:$0xff] %v3849
  %3914 = vst [vmem:[#allocation2 + $0x1a8] sm:$0xff] %v3850
  %3915 = vst [vmem:[#allocation2 + $0x1b0] sm:$0xff] %v3851
  %3916 = vst [vmem:[#allocation2 + $0x1b8] sm:$0xff] %v3852
  %3917 = vst [vmem:[#allocation2 + $0x1c0] sm:$0xff] %v3853
  %3918 = vst [vmem:[#allocation2 + $0x1c8] sm:$0xff] %v3854
  %3919 = vst [vmem:[#allocation2 + $0x1d0] sm:$0xff] %v3855
  %3920 = vst [vmem:[#allocation2 + $0x1d8] sm:$0xff] %v3856
  %3921 = vst [vmem:[#allocation2 + $0x1e0] sm:$0xff] %v3857
  %3922 = vst [vmem:[#allocation2 + $0x1e8] sm:$0xff] %v3858
  %3923 = vst [vmem:[#allocation2 + $0x1f0] sm:$0xff] %v3859
  %3924 = vst [vmem:[#allocation2 + $0x1f8] sm:$0xff] %v3860
  %v3925 = vld [vmem:[#allocation2] sm:$0xff]
  %v3926 = vld [vmem:[#allocation2 + $0x8] sm:$0xff]
  %v3927 = vld [vmem:[#allocation2 + $0x10] sm:$0xff]
  %v3928 = vld [vmem:[#allocation2 + $0x18] sm:$0xff]
  %v3929 = vld [vmem:[#allocation2 + $0x20] sm:$0xff]
  %v3930 = vld [vmem:[#allocation2 + $0x28] sm:$0xff]
  %v3931 = vld [vmem:[#allocation2 + $0x30] sm:$0xff]
  %v3932 = vld [vmem:[#allocation2 + $0x38] sm:$0xff]
  %v3933 = vld [vmem:[#allocation2 + $0x40] sm:$0xff]
  %v3934 = vld [vmem:[#allocation2 + $0x48] sm:$0xff]
  %v3935 = vld [vmem:[#allocation2 + $0x50] sm:$0xff]
  %v3936 = vld [vmem:[#allocation2 + $0x58] sm:$0xff]
  %v3937 = vld [vmem:[#allocation2 + $0x60] sm:$0xff]
  %v3938 = vld [vmem:[#allocation2 + $0x68] sm:$0xff]
  %v3939 = vld [vmem:[#allocation2 + $0x70] sm:$0xff]
  %v3940 = vld [vmem:[#allocation2 + $0x78] sm:$0xff]
  %v3941 = vld [vmem:[#allocation2 + $0x80] sm:$0xff]
  %v3942 = vld [vmem:[#allocation2 + $0x88] sm:$0xff]
  %v3943 = vld [vmem:[#allocation2 + $0x90] sm:$0xff]
  %v3944 = vld [vmem:[#allocation2 + $0x98] sm:$0xff]
  %v3945 = vld [vmem:[#allocation2 + $0xa0] sm:$0xff]
  %v3946 = vld [vmem:[#allocation2 + $0xa8] sm:$0xff]
  %v3947 = vld [vmem:[#allocation2 + $0xb0] sm:$0xff]
  %v3948 = vld [vmem:[#allocation2 + $0xb8] sm:$0xff]
  %v3949 = vld [vmem:[#allocation2 + $0xc0] sm:$0xff]
  %v3950 = vld [vmem:[#allocation2 + $0xc8] sm:$0xff]
  %v3951 = vld [vmem:[#allocation2 + $0xd0] sm:$0xff]
  %v3952 = vld [vmem:[#allocation2 + $0xd8] sm:$0xff]
  %v3953 = vld [vmem:[#allocation2 + $0xe0] sm:$0xff]
  %v3954 = vld [vmem:[#allocation2 + $0xe8] sm:$0xff]
  %v3955 = vld [vmem:[#allocation2 + $0xf0] sm:$0xff]
  %v3956 = vld [vmem:[#allocation2 + $0xf8] sm:$0xff]
  %v3957 = vld [vmem:[#allocation2 + $0x100] sm:$0xff]
  %v3958 = vld [vmem:[#allocation2 + $0x108] sm:$0xff]
  %v3959 = vld [vmem:[#allocation2 + $0x110] sm:$0xff]
  %v3960 = vld [vmem:[#allocation2 + $0x118] sm:$0xff]
  %v3961 = vld [vmem:[#allocation2 + $0x120] sm:$0xff]
  %v3962 = vld [vmem:[#allocation2 + $0x128] sm:$0xff]
  %v3963 = vld [vmem:[#allocation2 + $0x130] sm:$0xff]
  %v3964 = vld [vmem:[#allocation2 + $0x138] sm:$0xff]
  %v3965 = vld [vmem:[#allocation2 + $0x140] sm:$0xff]
  %v3966 = vld [vmem:[#allocation2 + $0x148] sm:$0xff]
  %v3967 = vld [vmem:[#allocation2 + $0x150] sm:$0xff]
  %v3968 = vld [vmem:[#allocation2 + $0x158] sm:$0xff]
  %v3969 = vld [vmem:[#allocation2 + $0x160] sm:$0xff]
  %v3970 = vld [vmem:[#allocation2 + $0x168] sm:$0xff]
  %v3971 = vld [vmem:[#allocation2 + $0x170] sm:$0xff]
  %v3972 = vld [vmem:[#allocation2 + $0x178] sm:$0xff]
  %v3973 = vld [vmem:[#allocation2 + $0x180] sm:$0xff]
  %v3974 = vld [vmem:[#allocation2 + $0x188] sm:$0xff]
  %v3975 = vld [vmem:[#allocation2 + $0x190] sm:$0xff]
  %v3976 = vld [vmem:[#allocation2 + $0x198] sm:$0xff]
  %v3977 = vld [vmem:[#allocation2 + $0x1a0] sm:$0xff]
  %v3978 = vld [vmem:[#allocation2 + $0x1a8] sm:$0xff]
  %v3979 = vld [vmem:[#allocation2 + $0x1b0] sm:$0xff]
  %v3980 = vld [vmem:[#allocation2 + $0x1b8] sm:$0xff]
  %v3981 = vld [vmem:[#allocation2 + $0x1c0] sm:$0xff]
  %v3982 = vld [vmem:[#allocation2 + $0x1c8] sm:$0xff]
  %v3983 = vld [vmem:[#allocation2 + $0x1d0] sm:$0xff]
  %v3984 = vld [vmem:[#allocation2 + $0x1d8] sm:$0xff]
  %v3985 = vld [vmem:[#allocation2 + $0x1e0] sm:$0xff]
  %v3986 = vld [vmem:[#allocation2 + $0x1e8] sm:$0xff]
  %v3987 = vld [vmem:[#allocation2 + $0x1f0] sm:$0xff]
  %v3988 = vld [vmem:[#allocation2 + $0x1f8] sm:$0xff]
  %v3989 = vpack.c.bf16 %v3925, %v3925
  %v3990 = vpack.c.bf16 %v3926, %v3926
  %v3991 = vpack.c.bf16 %v3927, %v3927
  %v3992 = vpack.c.bf16 %v3928, %v3928
  %v3993 = vpack.c.bf16 %v3929, %v3929
  %v3994 = vpack.c.bf16 %v3930, %v3930
  %v3995 = vpack.c.bf16 %v3931, %v3931
  %v3996 = vpack.c.bf16 %v3932, %v3932
  %v3997 = vpack.c.bf16 %v3933, %v3933
  %v3998 = vpack.c.bf16 %v3934, %v3934
  %v3999 = vpack.c.bf16 %v3935, %v3935
  %v4000 = vpack.c.bf16 %v3936, %v3936
  %v4001 = vpack.c.bf16 %v3937, %v3937
  %v4002 = vpack.c.bf16 %v3938, %v3938
  %v4003 = vpack.c.bf16 %v3939, %v3939
  %v4004 = vpack.c.bf16 %v3940, %v3940
  %v4005 = vpack.c.bf16 %v3941, %v3941
  %v4006 = vpack.c.bf16 %v3942, %v3942
  %v4007 = vpack.c.bf16 %v3943, %v3943
  %v4008 = vpack.c.bf16 %v3944, %v3944
  %v4009 = vpack.c.bf16 %v3945, %v3945
  %v4010 = vpack.c.bf16 %v3946, %v3946
  %v4011 = vpack.c.bf16 %v3947, %v3947
  %v4012 = vpack.c.bf16 %v3948, %v3948
  %v4013 = vpack.c.bf16 %v3949, %v3949
  %v4014 = vpack.c.bf16 %v3950, %v3950
  %v4015 = vpack.c.bf16 %v3951, %v3951
  %v4016 = vpack.c.bf16 %v3952, %v3952
  %v4017 = vpack.c.bf16 %v3953, %v3953
  %v4018 = vpack.c.bf16 %v3954, %v3954
  %v4019 = vpack.c.bf16 %v3955, %v3955
  %v4020 = vpack.c.bf16 %v3956, %v3956
  %v4021 = vpack.c.bf16 %v3957, %v3957
  %v4022 = vpack.c.bf16 %v3958, %v3958
  %v4023 = vpack.c.bf16 %v3959, %v3959
  %v4024 = vpack.c.bf16 %v3960, %v3960
  %v4025 = vpack.c.bf16 %v3961, %v3961
  %v4026 = vpack.c.bf16 %v3962, %v3962
  %v4027 = vpack.c.bf16 %v3963, %v3963
  %v4028 = vpack.c.bf16 %v3964, %v3964
  %v4029 = vpack.c.bf16 %v3965, %v3965
  %v4030 = vpack.c.bf16 %v3966, %v3966
  %v4031 = vpack.c.bf16 %v3967, %v3967
  %v4032 = vpack.c.bf16 %v3968, %v3968
  %v4033 = vpack.c.bf16 %v3969, %v3969
  %v4034 = vpack.c.bf16 %v3970, %v3970
  %v4035 = vpack.c.bf16 %v3971, %v3971
  %v4036 = vpack.c.bf16 %v3972, %v3972
  %v4037 = vpack.c.bf16 %v3973, %v3973
  %v4038 = vpack.c.bf16 %v3974, %v3974
  %v4039 = vpack.c.bf16 %v3975, %v3975
  %v4040 = vpack.c.bf16 %v3976, %v3976
  %v4041 = vpack.c.bf16 %v3977, %v3977
  %v4042 = vpack.c.bf16 %v3978, %v3978
  %v4043 = vpack.c.bf16 %v3979, %v3979
  %v4044 = vpack.c.bf16 %v3980, %v3980
  %v4045 = vpack.c.bf16 %v3981, %v3981
  %v4046 = vpack.c.bf16 %v3982, %v3982
  %v4047 = vpack.c.bf16 %v3983, %v3983
  %v4048 = vpack.c.bf16 %v3984, %v3984
  %v4049 = vpack.c.bf16 %v3985, %v3985
  %v4050 = vpack.c.bf16 %v3986, %v3986
  %v4051 = vpack.c.bf16 %v3987, %v3987
  %v4052 = vpack.c.bf16 %v3988, %v3988
  %4053 = vst [vmem:[%s8] sm:$0xf] %v3989
  %4054 = vst [vmem:[%s8 + $0x4] sm:$0xf] %v3990
  %4055 = vst [vmem:[%s8 + $0x8] sm:$0xf] %v3991
  %4056 = vst [vmem:[%s8 + $0xc] sm:$0xf] %v3992
  %4057 = vst [vmem:[%s8 + $0x10] sm:$0xf] %v3993
  %4058 = vst [vmem:[%s8 + $0x14] sm:$0xf] %v3994
  %4059 = vst [vmem:[%s8 + $0x18] sm:$0xf] %v3995
  %4060 = vst [vmem:[%s8 + $0x1c] sm:$0xf] %v3996
  %4061 = vst [vmem:[%s8 + $0x20] sm:$0xf] %v3997
  %4062 = vst [vmem:[%s8 + $0x24] sm:$0xf] %v3998
  %4063 = vst [vmem:[%s8 + $0x28] sm:$0xf] %v3999
  %4064 = vst [vmem:[%s8 + $0x2c] sm:$0xf] %v4000
  %4065 = vst [vmem:[%s8 + $0x30] sm:$0xf] %v4001
  %4066 = vst [vmem:[%s8 + $0x34] sm:$0xf] %v4002
  %4067 = vst [vmem:[%s8 + $0x38] sm:$0xf] %v4003
  %4068 = vst [vmem:[%s8 + $0x3c] sm:$0xf] %v4004
  %4069 = vst [vmem:[%s8 + $0x40] sm:$0xf] %v4005
  %4070 = vst [vmem:[%s8 + $0x44] sm:$0xf] %v4006
  %4071 = vst [vmem:[%s8 + $0x48] sm:$0xf] %v4007
  %4072 = vst [vmem:[%s8 + $0x4c] sm:$0xf] %v4008
  %4073 = vst [vmem:[%s8 + $0x50] sm:$0xf] %v4009
  %4074 = vst [vmem:[%s8 + $0x54] sm:$0xf] %v4010
  %4075 = vst [vmem:[%s8 + $0x58] sm:$0xf] %v4011
  %4076 = vst [vmem:[%s8 + $0x5c] sm:$0xf] %v4012
  %4077 = vst [vmem:[%s8 + $0x60] sm:$0xf] %v4013
  %4078 = vst [vmem:[%s8 + $0x64] sm:$0xf] %v4014
  %4079 = vst [vmem:[%s8 + $0x68] sm:$0xf] %v4015
  %4080 = vst [vmem:[%s8 + $0x6c] sm:$0xf] %v4016
  %4081 = vst [vmem:[%s8 + $0x70] sm:$0xf] %v4017
  %4082 = vst [vmem:[%s8 + $0x74] sm:$0xf] %v4018
  %4083 = vst [vmem:[%s8 + $0x78] sm:$0xf] %v4019
  %4084 = vst [vmem:[%s8 + $0x7c] sm:$0xf] %v4020
  %4085 = vst [vmem:[%s8 + $0x80] sm:$0xf] %v4021
  %4086 = vst [vmem:[%s8 + $0x84] sm:$0xf] %v4022
  %4087 = vst [vmem:[%s8 + $0x88] sm:$0xf] %v4023
  %4088 = vst [vmem:[%s8 + $0x8c] sm:$0xf] %v4024
  %4089 = vst [vmem:[%s8 + $0x90] sm:$0xf] %v4025
  %4090 = vst [vmem:[%s8 + $0x94] sm:$0xf] %v4026
  %4091 = vst [vmem:[%s8 + $0x98] sm:$0xf] %v4027
  %4092 = vst [vmem:[%s8 + $0x9c] sm:$0xf] %v4028
  %4093 = vst [vmem:[%s8 + $0xa0] sm:$0xf] %v4029
  %4094 = vst [vmem:[%s8 + $0xa4] sm:$0xf] %v4030
  %4095 = vst [vmem:[%s8 + $0xa8] sm:$0xf] %v4031
  %4096 = vst [vmem:[%s8 + $0xac] sm:$0xf] %v4032
  %4097 = vst [vmem:[%s8 + $0xb0] sm:$0xf] %v4033
  %4098 = vst [vmem:[%s8 + $0xb4] sm:$0xf] %v4034
  %4099 = vst [vmem:[%s8 + $0xb8] sm:$0xf] %v4035
  %4100 = vst [vmem:[%s8 + $0xbc] sm:$0xf] %v4036
  %4101 = vst [vmem:[%s8 + $0xc0] sm:$0xf] %v4037
  %4102 = vst [vmem:[%s8 + $0xc4] sm:$0xf] %v4038
  %4103 = vst [vmem:[%s8 + $0xc8] sm:$0xf] %v4039
  %4104 = vst [vmem:[%s8 + $0xcc] sm:$0xf] %v4040
  %4105 = vst [vmem:[%s8 + $0xd0] sm:$0xf] %v4041
  %4106 = vst [vmem:[%s8 + $0xd4] sm:$0xf] %v4042
  %4107 = vst [vmem:[%s8 + $0xd8] sm:$0xf] %v4043
  %4108 = vst [vmem:[%s8 + $0xdc] sm:$0xf] %v4044
  %4109 = vst [vmem:[%s8 + $0xe0] sm:$0xf] %v4045
  %4110 = vst [vmem:[%s8 + $0xe4] sm:$0xf] %v4046
  %4111 = vst [vmem:[%s8 + $0xe8] sm:$0xf] %v4047
  %4112 = vst [vmem:[%s8 + $0xec] sm:$0xf] %v4048
  %4113 = vst [vmem:[%s8 + $0xf0] sm:$0xf] %v4049
  %4114 = vst [vmem:[%s8 + $0xf4] sm:$0xf] %v4050
  %4115 = vst [vmem:[%s8 + $0xf8] sm:$0xf] %v4051
  %4116 = vst [vmem:[%s8 + $0xfc] sm:$0xf] %v4052
  // Predicated region
  $region34: #{kpcollider_forward.3} parent=0 // pred_check
    _
  $region35: #{kpcollider_forward.3} parent=0 // pred_check_branch
    %4118 = sbr.rel (0) target = $region37
  $region36: #{kpcollider_forward.3} parent=0 // pred_region
    _
  $region37: #{kpcollider_forward.3} parent=0 // pred_fallthru
    _
  // Predicated region
  $region38: #{kpcollider_forward.3} parent=0 // pred_check
    _
  $region39: #{kpcollider_forward.3} parent=0 // pred_check_branch
    %4120 = sbr.rel (0) target = $region41
  $region40: #{kpcollider_forward.3} parent=0 // pred_region
    _
  $region41: #{kpcollider_forward.3} parent=0 // pred_fallthru
    _

</llo_original>
